<compile_context>
chip_gen: v7x
topology: tpu7x:2x2x1
jax: 0.10.0
libtpu: 0.0.40
codegen_flags: <defaults>
</compile_context>

<pallas_src>
import functools

import jax
import jax.numpy as jnp
from jax.experimental import pallas as pl
from jax.experimental.pallas import tpu as pltpu


def _cdiv(a, b):
    return -(-a // b)


def _round_up(a, b):
    return _cdiv(a, b) * b


def _choose_tiling(M):
    """Pick (tile_rows, num_tiles, padded_rows) for an (M, K) @ (K, N) call.

    Large tiles (<= 512 rows) to amortize per-grid-step overhead, but keep at
    least 2 'parallel' steps when M is big enough so v7x's two TensorCores can
    each take work.  Tiny M (e.g. the final 5x5 conv, M = batch) gets a single
    minimal tile instead of a padded 128-row one.
    """
    if M <= 32:
        ntiles = 1
    else:
        ntiles = max(2, _cdiv(M, 512))
    tm = _round_up(_cdiv(M, ntiles), 16)  # multiple of 16 (bf16 sublane tile)
    return tm, ntiles, tm * ntiles


# ---------------------------------------------------------------------------
# Pallas kernels
# ---------------------------------------------------------------------------
def _conv_kernel(p_ref, w_ref, b_ref, o_ref):
    """One conv as a matmul: relu(P @ W + b).  BN scale already in W."""
    acc = jnp.dot(p_ref[...], w_ref[...], preferred_element_type=jnp.float32)
    o_ref[...] = jnp.maximum(acc + b_ref[...], 0.0).astype(o_ref.dtype)


def _block_kernel(p3_ref, w3_ref, b3_ref, w1_ref, b1_ref, o_ref):
    """Re-parameterized RepVGG block fused with its trailing 1x1 ConvModule.

      y = relu(P3 @ W3_eq + b3_eq)   # 3x3 + 1x1 + identity branches folded
      z = relu(y  @ W1x1 + b1x1)     # the Block{n}_1x1 ConvModule
    """
    acc = jnp.dot(p3_ref[...], w3_ref[...], preferred_element_type=jnp.float32)
    y = jnp.maximum(acc + b3_ref[...], 0.0)                       # f32 epilogue
    acc2 = jnp.dot(y.astype(jnp.bfloat16), w1_ref[...],
                   preferred_element_type=jnp.float32)
    o_ref[...] = jnp.maximum(acc2 + b1_ref[...], 0.0).astype(o_ref.dtype)


# ---------------------------------------------------------------------------
# Pallas call wrappers (use_pallas=False is the pure-jnp mirror / reference)
# ---------------------------------------------------------------------------
def _matmul_bias_relu(patches, w, b, use_pallas):
    M, K = patches.shape
    N = w.shape[1]
    if not use_pallas:
        acc = jnp.dot(patches, w, preferred_element_type=jnp.float32)
        return jnp.maximum(acc + b, 0.0).astype(jnp.bfloat16)

    tm, nt, Mp = _choose_tiling(M)
    xp = jnp.pad(patches, ((0, Mp - M), (0, 0)))
    out = pl.pallas_call(
        _conv_kernel,
        out_shape=jax.ShapeDtypeStruct((Mp, N), jnp.bfloat16),
        grid=(nt,),
        in_specs=[
            pl.BlockSpec((tm, K), lambda i: (i, 0)),
            pl.BlockSpec((K, N), lambda i: (0, 0)),
            pl.BlockSpec((1, N), lambda i: (0, 0)),
        ],
        out_specs=pl.BlockSpec((tm, N), lambda i: (i, 0)),
        compiler_params=pltpu.CompilerParams(
            dimension_semantics=("parallel",)),
    )(xp, w, b)
    return out[:M]


def _block_matmul(p3, w3, b3, w1, b1, use_pallas):
    M, K3 = p3.shape
    N = w3.shape[1]
    if not use_pallas:
        y = jnp.maximum(
            jnp.dot(p3, w3, preferred_element_type=jnp.float32) + b3, 0.0)
        z = jnp.maximum(
            jnp.dot(y.astype(jnp.bfloat16), w1,
                    preferred_element_type=jnp.float32) + b1, 0.0)
        return z.astype(jnp.bfloat16)

    tm, nt, Mp = _choose_tiling(M)
    p3p = jnp.pad(p3, ((0, Mp - M), (0, 0)))
    # TODO(synk): at real RepVGG widths (cout 512+), add N/K grid axes with a
    # VMEM f32 accumulator and set vmem_limit_bytes (v7x has only 64 MiB VMEM).
    out = pl.pallas_call(
        _block_kernel,
        out_shape=jax.ShapeDtypeStruct((Mp, N), jnp.bfloat16),
        grid=(nt,),
        in_specs=[
            pl.BlockSpec((tm, K3), lambda i: (i, 0)),
            pl.BlockSpec((K3, N), lambda i: (0, 0)),
            pl.BlockSpec((1, N), lambda i: (0, 0)),
            pl.BlockSpec((N, N), lambda i: (0, 0)),
            pl.BlockSpec((1, N), lambda i: (0, 0)),
        ],
        out_specs=pl.BlockSpec((tm, N), lambda i: (i, 0)),
        compiler_params=pltpu.CompilerParams(
            dimension_semantics=("parallel",)),
    )(p3p, w3, b3, w1, b1)
    return out[:M]


# ---------------------------------------------------------------------------
# Glue: im2col + layer forwards (NHWC, bf16 activations internally)
# ---------------------------------------------------------------------------
def _im2col(x_nhwc, kh, kw, stride, padding):
    # TODO(synk): for large images, build the patches inside the kernel (9
    # shifted matmuls on a VMEM-resident tile) instead of materializing the
    # KxM patch matrix in HBM; at these tiny bf16 sizes the patch buffers are
    # a few tens of KB so host-side im2col is kept for lowering robustness.
    N, H, W, C = x_nhwc.shape
    xp = jnp.pad(x_nhwc, ((0, 0), (padding, padding), (padding, padding), (0, 0)))
    OH = (H + 2 * padding - kh) // stride + 1
    OW = (W + 2 * padding - kw) // stride + 1
    taps = []
    for i in range(kh):
        for j in range(kw):
            taps.append(xp[:, i:i + stride * OH:stride, j:j + stride * OW:stride, :])
    patches = jnp.concatenate(taps, axis=-1)          # (N, OH, OW, kh*kw*C)
    return patches.reshape(N * OH * OW, kh * kw * C), (N, OH, OW)


def conv_module(x_nhwc, params, kh, kw, stride, padding, use_pallas):
    """ConvModule: conv(bias=False) + BN (folded into W/b) + ReLU."""
    w, b = params
    cout = w.shape[1]
    patches, (N, OH, OW) = _im2col(x_nhwc, kh, kw, stride, padding)
    y = _matmul_bias_relu(patches, w, b, use_pallas)
    return y.reshape(N, OH, OW, cout)


def repvgg_block_unit(x_nhwc, params, stride, use_pallas):
    """RepVGGBlock (re-parameterized) + its trailing Block{n}_1x1 ConvModule."""
    w3, b3, w1, b1 = params
    cout = w3.shape[1]
    patches, (N, OH, OW) = _im2col(x_nhwc, 3, 3, stride, 1)
    z = _block_matmul(patches, w3, b3, w1, b1, use_pallas)
    return z.reshape(N, OH, OW, cout)


# ---------------------------------------------------------------------------
# Deterministic parameter construction + host-side folding (float32)
# ---------------------------------------------------------------------------
def _make_bn(key, ch):
    k1, k2, k3, k4 = jax.random.split(key, 4)
    gamma = jax.random.uniform(k1, (ch,), jnp.float32, 0.5, 1.5)
    beta = 0.1 * jax.random.normal(k2, (ch,), jnp.float32)
    mean = 0.1 * jax.random.normal(k3, (ch,), jnp.float32)
    var = jax.random.uniform(k4, (ch,), jnp.float32, 0.5, 1.5)
    scale = gamma / jnp.sqrt(var + 1e-5)
    bias = beta - mean * scale
    return scale, bias


def _make_conv_bn(key, kh, kw, cin, cout):
    kw_, kb = jax.random.split(key)
    w = 0.1 * jax.random.normal(kw_, (kh, kw, cin, cout), jnp.float32)
    scale, bias = _make_bn(kb, cout)
    return w, scale, bias


def _make_repvgg_block(key, cin, cout, stride):
    k3, k1, kid = jax.random.split(key, 3)
    b3 = _make_conv_bn(k3, 3, 3, cin, cout)
    b1 = _make_conv_bn(k1, 1, 1, cin, cout)
    idn = _make_bn(kid, cout) if (cin == cout and stride == 1) else None
    return b3, b1, idn


def _fold_conv_bn(w, scale, bias):
    """Fold the BN scale into the conv weight.  Returns bf16 W, f32 bias."""
    kh, kw, cin, cout = w.shape
    wf = (w * scale).reshape(kh * kw * cin, cout)
    return wf.astype(jnp.bfloat16), bias.reshape(1, cout).astype(jnp.float32)


def _fold_repvgg(block3, block1, idn):
    """Classic RepVGG reparam (f32): 3x3 + centre(1x1) + centre(identity-BN)."""
    w3, s3, b3 = block3
    w1, s1, b1 = block1
    cin, cout = w3.shape[2], w3.shape[3]
    w_eq = w3 * s3
    b_eq = b3 + b1
    w_eq = w_eq.at[1, 1].add(w1[0, 0] * s1)
    if idn is not None:
        sid, bid = idn
        w_eq = w_eq.at[1, 1].add(jnp.eye(cin, cout, dtype=jnp.float32) * sid)
        b_eq = b_eq + bid
    return (w_eq.reshape(9 * cin, cout).astype(jnp.bfloat16),
            b_eq.reshape(1, cout).astype(jnp.float32))


def build_repvggnet_params(key, stem_channels, stage_channels, block_per_stage):
    keys = jax.random.split(key, 3)
    params = {"stem": _fold_conv_bn(*_make_conv_bn(keys[0], 3, 3, 3, stem_channels))}

    stages = []
    in_ch = stem_channels
    skeys = jax.random.split(keys[1], len(stage_channels))
    for s, (stage_ch, nblk) in enumerate(zip(stage_channels, block_per_stage)):
        blocks = []
        bkeys = jax.random.split(skeys[s], 2 * nblk)
        for bidx in range(nblk):
            stride = 2 if bidx == 0 else 1
            cin = in_ch if bidx == 0 else stage_ch
            rep_raw = _make_repvgg_block(bkeys[2 * bidx], cin, stage_ch, stride)
            w3, b3 = _fold_repvgg(*rep_raw)
            w1, b1 = _fold_conv_bn(
                *_make_conv_bn(bkeys[2 * bidx + 1], 1, 1, stage_ch, stage_ch))
            blocks.append((w3, b3, w1, b1))
        stages.append(blocks)
        in_ch = stage_ch
    params["stages"] = stages

    lkeys = jax.random.split(keys[2], 2)
    params["last"] = [
        _fold_conv_bn(*_make_conv_bn(lkeys[0], 1, 1, in_ch, in_ch)),
        _fold_conv_bn(*_make_conv_bn(lkeys[1], 5, 5, in_ch, 512)),
    ]
    return params


# ---------------------------------------------------------------------------
# RepVGGNet forward (mirrors the PyTorch module's forward)
# ---------------------------------------------------------------------------
@functools.partial(jax.jit, static_argnums=(2, 3))
def repvggnet_forward(x_nchw, params, num_out, use_pallas=True):
    x = jnp.transpose(x_nchw, (0, 2, 3, 1)).astype(jnp.bfloat16)  # NCHW -> NHWC
    x = conv_module(x, params["stem"], 3, 3, 2, 1, use_pallas)

    stages = params["stages"]
    start_stage = len(stages) - num_out + 1

    def run_stage(x, blocks):
        for bidx, bp in enumerate(blocks):
            stride = 2 if bidx == 0 else 1
            x = repvgg_block_unit(x, bp, stride, use_pallas)
        return x

    for i in range(start_stage):
        x = run_stage(x, stages[i])

    out = []
    for i in range(start_stage, len(stages)):
        out.append(x)
        x = run_stage(x, stages[i])
    out.append(x)

    lc0, lc1 = params["last"]
    y = conv_module(x, lc0, 1, 1, 1, 0, use_pallas)
    y = conv_module(y, lc1, 5, 5, 1, 0, use_pallas)
    out.append(y)

    # back to NCHW float32 to match the PyTorch module's output convention
    return [jnp.transpose(o, (0, 3, 1, 2)).astype(jnp.float32) for o in out]


# ---------------------------------------------------------------------------
if __name__ == "__main__":
    key = jax.random.PRNGKey(0)
    kparams, kx = jax.random.split(key)

    # Small config: stem=8, stages=[8, 16], blocks per stage=[2, 1], num_out=2.
    stem_channels = 8
    stage_channels = [8, 16]
    block_per_stage = [2, 1]
    num_out = 2

    params = build_repvggnet_params(kparams, stem_channels, stage_channels,
                                    block_per_stage)

    # Input NCHW, spatial 40 so the final 5x5 valid conv is well defined:
    # 40 -> stem/2 -> 20 -> stage0/2 -> 10 -> stage1/2 -> 5 -> 5x5 conv -> 1.
    x = jax.random.normal(kx, (2, 3, 40, 40), jnp.float32)

    outs = repvggnet_forward(x, params, num_out, True)
    for o in outs:
        jax.block_until_ready(o)

    expected_shapes = [(2, 8, 10, 10), (2, 16, 5, 5), (2, 512, 1, 1)]
    assert [tuple(o.shape) for o in outs] == expected_shapes, \
        [tuple(o.shape) for o in outs]
    assert all(bool(jnp.all(jnp.isfinite(o))) for o in outs)

    # Pure-jnp mirror of the exact same bf16 math as a numerical reference.
    refs = repvggnet_forward(x, params, num_out, False)
    for o, r in zip(outs, refs):
        err = float(jnp.max(jnp.abs(o - r)))
        scl = max(1.0, float(jnp.max(jnp.abs(r))))
        assert err <= 5e-2 * scl, (err, scl)

    print("KERNEL_OK")
</pallas_src>

<mosaic_0001>
module attributes {stable_mosaic.version = 11 : i64} {
  func.func @_conv_kernel(%arg0: i32, %arg1: memref<400x27xbf16, #tpu.memory_space<vmem>>, %arg2: memref<27x8xbf16, #tpu.memory_space<vmem>>, %arg3: memref<1x8xf32, #tpu.memory_space<vmem>>, %arg4: memref<400x8xbf16, #tpu.memory_space<vmem>>) attributes {dimension_semantics = [#tpu.dimension_semantics<parallel>], iteration_bounds = array<i64: 2>, scalar_prefetch = 0 : i64, scratch_operands = 0 : i64, tpu.core_type = #tpu.core_type<tc>, window_params = [{transform_indices = @transform_0, window_bounds = array<i64: 400, 27>}, {pipeline_mode = #tpu.pipeline_mode<synchronous>, transform_indices = @transform_1, window_bounds = array<i64: 27, 8>}, {pipeline_mode = #tpu.pipeline_mode<synchronous>, transform_indices = @transform_2, window_bounds = array<i64: 1, 8>}, {transform_indices = @transform_3, window_bounds = array<i64: 400, 8>}]} {
    %c0 = arith.constant 0 : index
    %c0_0 = arith.constant 0 : index
    %0 = vector.load %arg1[%c0, %c0_0] : memref<400x27xbf16, #tpu.memory_space<vmem>>, vector<400x27xbf16>
    %c0_1 = arith.constant 0 : index
    %c0_2 = arith.constant 0 : index
    %1 = vector.load %arg2[%c0_1, %c0_2] : memref<27x8xbf16, #tpu.memory_space<vmem>>, vector<27x8xbf16>
    %cst = arith.constant dense<0.000000e+00> : vector<400x8xf32>
    %2 = tpu.matmul %0, %1, %cst {dimension_numbers = #tpu.dot_dimension_numbers<[1], [0], [0], [1], [0, 0, 1, 1], [], []>} : vector<400x27xbf16>, vector<27x8xbf16>, vector<400x8xf32> -> vector<400x8xf32>
    %c0_3 = arith.constant 0 : index
    %c0_4 = arith.constant 0 : index
    %3 = vector.load %arg3[%c0_3, %c0_4] : memref<1x8xf32, #tpu.memory_space<vmem>>, vector<1x8xf32>
    %4 = vector.broadcast %3 : vector<1x8xf32> to vector<400x8xf32>
    %5 = arith.addf %2, %4 : vector<400x8xf32>
    %cst_5 = arith.constant 0.000000e+00 : f32
    %6 = vector.broadcast %cst_5 : f32 to vector<400x8xf32>
    %7 = arith.maximumf %5, %6 : vector<400x8xf32>
    %8 = arith.truncf %7 : vector<400x8xf32> to vector<400x8xbf16>
    %c0_6 = arith.constant 0 : index
    %c0_7 = arith.constant 0 : index
    %9 = vector.load %arg4[%c0_6, %c0_7] : memref<400x8xbf16, #tpu.memory_space<vmem>>, vector<400x8xbf16>
    tpu.vector_store %arg4[%c0_6, %c0_7], %8 {strides = array<i32>} : memref<400x8xbf16, #tpu.memory_space<vmem>>, vector<400x8xbf16>,
    return
  }
  func.func @transform_0(%arg0: i32) -> (i32, i32) {
    %c0_i32 = arith.constant 0 : i32
    %c0_i32_0 = arith.constant 0 : i32
    return %arg0, %c0_i32 : i32, i32
  }
  func.func @transform_1(%arg0: i32) -> (i32, i32) {
    %c0_i32 = arith.constant 0 : i32
    %c0_i32_0 = arith.constant 0 : i32
    %c0_i32_1 = arith.constant 0 : i32
    return %c0_i32, %c0_i32_0 : i32, i32
  }
  func.func @transform_2(%arg0: i32) -> (i32, i32) {
    %c0_i32 = arith.constant 0 : i32
    %c0_i32_0 = arith.constant 0 : i32
    %c0_i32_1 = arith.constant 0 : i32
    return %c0_i32, %c0_i32_0 : i32, i32
  }
  func.func @transform_3(%arg0: i32) -> (i32, i32) {
    %c0_i32 = arith.constant 0 : i32
    %c0_i32_0 = arith.constant 0 : i32
    return %arg0, %c0_i32 : i32, i32
  }
}

module attributes {stable_mosaic.version = 11 : i64} {
  func.func @_block_kernel(%arg0: i32, %arg1: memref<112x72xbf16, #tpu.memory_space<vmem>>, %arg2: memref<72x8xbf16, #tpu.memory_space<vmem>>, %arg3: memref<1x8xf32, #tpu.memory_space<vmem>>, %arg4: memref<8x8xbf16, #tpu.memory_space<vmem>>, %arg5: memref<1x8xf32, #tpu.memory_space<vmem>>, %arg6: memref<112x8xbf16, #tpu.memory_space<vmem>>) attributes {dimension_semantics = [#tpu.dimension_semantics<parallel>], iteration_bounds = array<i64: 2>, scalar_prefetch = 0 : i64, scratch_operands = 0 : i64, tpu.core_type = #tpu.core_type<tc>, window_params = [{transform_indices = @transform_0, window_bounds = array<i64: 112, 72>}, {pipeline_mode = #tpu.pipeline_mode<synchronous>, transform_indices = @transform_1, window_bounds = array<i64: 72, 8>}, {pipeline_mode = #tpu.pipeline_mode<synchronous>, transform_indices = @transform_2, window_bounds = array<i64: 1, 8>}, {pipeline_mode = #tpu.pipeline_mode<synchronous>, transform_indices = @transform_3, window_bounds = array<i64: 8, 8>}, {pipeline_mode = #tpu.pipeline_mode<synchronous>, transform_indices = @transform_4, window_bounds = array<i64: 1, 8>}, {transform_indices = @transform_5, window_bounds = array<i64: 112, 8>}]} {
    %c0 = arith.constant 0 : index
    %c0_0 = arith.constant 0 : index
    %0 = vector.load %arg1[%c0, %c0_0] : memref<112x72xbf16, #tpu.memory_space<vmem>>, vector<112x72xbf16>
    %c0_1 = arith.constant 0 : index
    %c0_2 = arith.constant 0 : index
    %1 = vector.load %arg2[%c0_1, %c0_2] : memref<72x8xbf16, #tpu.memory_space<vmem>>, vector<72x8xbf16>
    %cst = arith.constant dense<0.000000e+00> : vector<112x8xf32>
    %2 = tpu.matmul %0, %1, %cst {dimension_numbers = #tpu.dot_dimension_numbers<[1], [0], [0], [1], [0, 0, 1, 1], [], []>} : vector<112x72xbf16>, vector<72x8xbf16>, vector<112x8xf32> -> vector<112x8xf32>
    %c0_3 = arith.constant 0 : index
    %c0_4 = arith.constant 0 : index
    %3 = vector.load %arg3[%c0_3, %c0_4] : memref<1x8xf32, #tpu.memory_space<vmem>>, vector<1x8xf32>
    %4 = vector.broadcast %3 : vector<1x8xf32> to vector<112x8xf32>
    %5 = arith.addf %2, %4 : vector<112x8xf32>
    %cst_5 = arith.constant 0.000000e+00 : f32
    %6 = vector.broadcast %cst_5 : f32 to vector<112x8xf32>
    %7 = arith.maximumf %5, %6 : vector<112x8xf32>
    %8 = arith.truncf %7 : vector<112x8xf32> to vector<112x8xbf16>
    %c0_6 = arith.constant 0 : index
    %c0_7 = arith.constant 0 : index
    %9 = vector.load %arg4[%c0_6, %c0_7] : memref<8x8xbf16, #tpu.memory_space<vmem>>, vector<8x8xbf16>
    %cst_8 = arith.constant dense<0.000000e+00> : vector<112x8xf32>
    %10 = tpu.matmul %8, %9, %cst_8 {dimension_numbers = #tpu.dot_dimension_numbers<[1], [0], [0], [1], [0, 0, 1, 1], [], []>} : vector<112x8xbf16>, vector<8x8xbf16>, vector<112x8xf32> -> vector<112x8xf32>
    %c0_9 = arith.constant 0 : index
    %c0_10 = arith.constant 0 : index
    %11 = vector.load %arg5[%c0_9, %c0_10] : memref<1x8xf32, #tpu.memory_space<vmem>>, vector<1x8xf32>
    %12 = vector.broadcast %11 : vector<1x8xf32> to vector<112x8xf32>
    %13 = arith.addf %10, %12 : vector<112x8xf32>
    %cst_11 = arith.constant 0.000000e+00 : f32
    %14 = vector.broadcast %cst_11 : f32 to vector<112x8xf32>
    %15 = arith.maximumf %13, %14 : vector<112x8xf32>
    %16 = arith.truncf %15 : vector<112x8xf32> to vector<112x8xbf16>
    %c0_12 = arith.constant 0 : index
    %c0_13 = arith.constant 0 : index
    %17 = vector.load %arg6[%c0_12, %c0_13] : memref<112x8xbf16, #tpu.memory_space<vmem>>, vector<112x8xbf16>
    tpu.vector_store %arg6[%c0_12, %c0_13], %16 {strides = array<i32>} : memref<112x8xbf16, #tpu.memory_space<vmem>>, vector<112x8xbf16>,
    return
  }
  func.func @transform_0(%arg0: i32) -> (i32, i32) {
    %c0_i32 = arith.constant 0 : i32
    %c0_i32_0 = arith.constant 0 : i32
    return %arg0, %c0_i32 : i32, i32
  }
  func.func @transform_1(%arg0: i32) -> (i32, i32) {
    %c0_i32 = arith.constant 0 : i32
    %c0_i32_0 = arith.constant 0 : i32
    %c0_i32_1 = arith.constant 0 : i32
    return %c0_i32, %c0_i32_0 : i32, i32
  }
  func.func @transform_2(%arg0: i32) -> (i32, i32) {
    %c0_i32 = arith.constant 0 : i32
    %c0_i32_0 = arith.constant 0 : i32
    %c0_i32_1 = arith.constant 0 : i32
    return %c0_i32, %c0_i32_0 : i32, i32
  }
  func.func @transform_3(%arg0: i32) -> (i32, i32) {
    %c0_i32 = arith.constant 0 : i32
    %c0_i32_0 = arith.constant 0 : i32
    %c0_i32_1 = arith.constant 0 : i32
    return %c0_i32, %c0_i32_0 : i32, i32
  }
  func.func @transform_4(%arg0: i32) -> (i32, i32) {
    %c0_i32 = arith.constant 0 : i32
    %c0_i32_0 = arith.constant 0 : i32
    %c0_i32_1 = arith.constant 0 : i32
    return %c0_i32, %c0_i32_0 : i32, i32
  }
  func.func @transform_5(%arg0: i32) -> (i32, i32) {
    %c0_i32 = arith.constant 0 : i32
    %c0_i32_0 = arith.constant 0 : i32
    return %arg0, %c0_i32 : i32, i32
  }
}

module attributes {stable_mosaic.version = 11 : i64} {
  func.func @_block_kernel(%arg0: i32, %arg1: memref<32x72xbf16, #tpu.memory_space<vmem>>, %arg2: memref<72x16xbf16, #tpu.memory_space<vmem>>, %arg3: memref<1x16xf32, #tpu.memory_space<vmem>>, %arg4: memref<16x16xbf16, #tpu.memory_space<vmem>>, %arg5: memref<1x16xf32, #tpu.memory_space<vmem>>, %arg6: memref<32x16xbf16, #tpu.memory_space<vmem>>) attributes {dimension_semantics = [#tpu.dimension_semantics<parallel>], iteration_bounds = array<i64: 2>, scalar_prefetch = 0 : i64, scratch_operands = 0 : i64, tpu.core_type = #tpu.core_type<tc>, window_params = [{transform_indices = @transform_0, window_bounds = array<i64: 32, 72>}, {pipeline_mode = #tpu.pipeline_mode<synchronous>, transform_indices = @transform_1, window_bounds = array<i64: 72, 16>}, {pipeline_mode = #tpu.pipeline_mode<synchronous>, transform_indices = @transform_2, window_bounds = array<i64: 1, 16>}, {pipeline_mode = #tpu.pipeline_mode<synchronous>, transform_indices = @transform_3, window_bounds = array<i64: 16, 16>}, {pipeline_mode = #tpu.pipeline_mode<synchronous>, transform_indices = @transform_4, window_bounds = array<i64: 1, 16>}, {transform_indices = @transform_5, window_bounds = array<i64: 32, 16>}]} {
    %c0 = arith.constant 0 : index
    %c0_0 = arith.constant 0 : index
    %0 = vector.load %arg1[%c0, %c0_0] : memref<32x72xbf16, #tpu.memory_space<vmem>>, vector<32x72xbf16>
    %c0_1 = arith.constant 0 : index
    %c0_2 = arith.constant 0 : index
    %1 = vector.load %arg2[%c0_1, %c0_2] : memref<72x16xbf16, #tpu.memory_space<vmem>>, vector<72x16xbf16>
    %cst = arith.constant dense<0.000000e+00> : vector<32x16xf32>
    %2 = tpu.matmul %0, %1, %cst {dimension_numbers = #tpu.dot_dimension_numbers<[1], [0], [0], [1], [0, 0, 1, 1], [], []>} : vector<32x72xbf16>, vector<72x16xbf16>, vector<32x16xf32> -> vector<32x16xf32>
    %c0_3 = arith.constant 0 : index
    %c0_4 = arith.constant 0 : index
    %3 = vector.load %arg3[%c0_3, %c0_4] : memref<1x16xf32, #tpu.memory_space<vmem>>, vector<1x16xf32>
    %4 = vector.broadcast %3 : vector<1x16xf32> to vector<32x16xf32>
    %5 = arith.addf %2, %4 : vector<32x16xf32>
    %cst_5 = arith.constant 0.000000e+00 : f32
    %6 = vector.broadcast %cst_5 : f32 to vector<32x16xf32>
    %7 = arith.maximumf %5, %6 : vector<32x16xf32>
    %8 = arith.truncf %7 : vector<32x16xf32> to vector<32x16xbf16>
    %c0_6 = arith.constant 0 : index
    %c0_7 = arith.constant 0 : index
    %9 = vector.load %arg4[%c0_6, %c0_7] : memref<16x16xbf16, #tpu.memory_space<vmem>>, vector<16x16xbf16>
    %cst_8 = arith.constant dense<0.000000e+00> : vector<32x16xf32>
    %10 = tpu.matmul %8, %9, %cst_8 {dimension_numbers = #tpu.dot_dimension_numbers<[1], [0], [0], [1], [0, 0, 1, 1], [], []>} : vector<32x16xbf16>, vector<16x16xbf16>, vector<32x16xf32> -> vector<32x16xf32>
    %c0_9 = arith.constant 0 : index
    %c0_10 = arith.constant 0 : index
    %11 = vector.load %arg5[%c0_9, %c0_10] : memref<1x16xf32, #tpu.memory_space<vmem>>, vector<1x16xf32>
    %12 = vector.broadcast %11 : vector<1x16xf32> to vector<32x16xf32>
    %13 = arith.addf %10, %12 : vector<32x16xf32>
    %cst_11 = arith.constant 0.000000e+00 : f32
    %14 = vector.broadcast %cst_11 : f32 to vector<32x16xf32>
    %15 = arith.maximumf %13, %14 : vector<32x16xf32>
    %16 = arith.truncf %15 : vector<32x16xf32> to vector<32x16xbf16>
    %c0_12 = arith.constant 0 : index
    %c0_13 = arith.constant 0 : index
    %17 = vector.load %arg6[%c0_12, %c0_13] : memref<32x16xbf16, #tpu.memory_space<vmem>>, vector<32x16xbf16>
    tpu.vector_store %arg6[%c0_12, %c0_13], %16 {strides = array<i32>} : memref<32x16xbf16, #tpu.memory_space<vmem>>, vector<32x16xbf16>,
    return
  }
  func.func @transform_0(%arg0: i32) -> (i32, i32) {
    %c0_i32 = arith.constant 0 : i32
    %c0_i32_0 = arith.constant 0 : i32
    return %arg0, %c0_i32 : i32, i32
  }
  func.func @transform_1(%arg0: i32) -> (i32, i32) {
    %c0_i32 = arith.constant 0 : i32
    %c0_i32_0 = arith.constant 0 : i32
    %c0_i32_1 = arith.constant 0 : i32
    return %c0_i32, %c0_i32_0 : i32, i32
  }
  func.func @transform_2(%arg0: i32) -> (i32, i32) {
    %c0_i32 = arith.constant 0 : i32
    %c0_i32_0 = arith.constant 0 : i32
    %c0_i32_1 = arith.constant 0 : i32
    return %c0_i32, %c0_i32_0 : i32, i32
  }
  func.func @transform_3(%arg0: i32) -> (i32, i32) {
    %c0_i32 = arith.constant 0 : i32
    %c0_i32_0 = arith.constant 0 : i32
    %c0_i32_1 = arith.constant 0 : i32
    return %c0_i32, %c0_i32_0 : i32, i32
  }
  func.func @transform_4(%arg0: i32) -> (i32, i32) {
    %c0_i32 = arith.constant 0 : i32
    %c0_i32_0 = arith.constant 0 : i32
    %c0_i32_1 = arith.constant 0 : i32
    return %c0_i32, %c0_i32_0 : i32, i32
  }
  func.func @transform_5(%arg0: i32) -> (i32, i32) {
    %c0_i32 = arith.constant 0 : i32
    %c0_i32_0 = arith.constant 0 : i32
    return %arg0, %c0_i32 : i32, i32
  }
}

module attributes {stable_mosaic.version = 11 : i64} {
  func.func @_conv_kernel(%arg0: i32, %arg1: memref<32x16xbf16, #tpu.memory_space<vmem>>, %arg2: memref<16x16xbf16, #tpu.memory_space<vmem>>, %arg3: memref<1x16xf32, #tpu.memory_space<vmem>>, %arg4: memref<32x16xbf16, #tpu.memory_space<vmem>>) attributes {dimension_semantics = [#tpu.dimension_semantics<parallel>], iteration_bounds = array<i64: 2>, scalar_prefetch = 0 : i64, scratch_operands = 0 : i64, tpu.core_type = #tpu.core_type<tc>, window_params = [{transform_indices = @transform_0, window_bounds = array<i64: 32, 16>}, {pipeline_mode = #tpu.pipeline_mode<synchronous>, transform_indices = @transform_1, window_bounds = array<i64: 16, 16>}, {pipeline_mode = #tpu.pipeline_mode<synchronous>, transform_indices = @transform_2, window_bounds = array<i64: 1, 16>}, {transform_indices = @transform_3, window_bounds = array<i64: 32, 16>}]} {
    %c0 = arith.constant 0 : index
    %c0_0 = arith.constant 0 : index
    %0 = vector.load %arg1[%c0, %c0_0] : memref<32x16xbf16, #tpu.memory_space<vmem>>, vector<32x16xbf16>
    %c0_1 = arith.constant 0 : index
    %c0_2 = arith.constant 0 : index
    %1 = vector.load %arg2[%c0_1, %c0_2] : memref<16x16xbf16, #tpu.memory_space<vmem>>, vector<16x16xbf16>
    %cst = arith.constant dense<0.000000e+00> : vector<32x16xf32>
    %2 = tpu.matmul %0, %1, %cst {dimension_numbers = #tpu.dot_dimension_numbers<[1], [0], [0], [1], [0, 0, 1, 1], [], []>} : vector<32x16xbf16>, vector<16x16xbf16>, vector<32x16xf32> -> vector<32x16xf32>
    %c0_3 = arith.constant 0 : index
    %c0_4 = arith.constant 0 : index
    %3 = vector.load %arg3[%c0_3, %c0_4] : memref<1x16xf32, #tpu.memory_space<vmem>>, vector<1x16xf32>
    %4 = vector.broadcast %3 : vector<1x16xf32> to vector<32x16xf32>
    %5 = arith.addf %2, %4 : vector<32x16xf32>
    %cst_5 = arith.constant 0.000000e+00 : f32
    %6 = vector.broadcast %cst_5 : f32 to vector<32x16xf32>
    %7 = arith.maximumf %5, %6 : vector<32x16xf32>
    %8 = arith.truncf %7 : vector<32x16xf32> to vector<32x16xbf16>
    %c0_6 = arith.constant 0 : index
    %c0_7 = arith.constant 0 : index
    %9 = vector.load %arg4[%c0_6, %c0_7] : memref<32x16xbf16, #tpu.memory_space<vmem>>, vector<32x16xbf16>
    tpu.vector_store %arg4[%c0_6, %c0_7], %8 {strides = array<i32>} : memref<32x16xbf16, #tpu.memory_space<vmem>>, vector<32x16xbf16>,
    return
  }
  func.func @transform_0(%arg0: i32) -> (i32, i32) {
    %c0_i32 = arith.constant 0 : i32
    %c0_i32_0 = arith.constant 0 : i32
    return %arg0, %c0_i32 : i32, i32
  }
  func.func @transform_1(%arg0: i32) -> (i32, i32) {
    %c0_i32 = arith.constant 0 : i32
    %c0_i32_0 = arith.constant 0 : i32
    %c0_i32_1 = arith.constant 0 : i32
    return %c0_i32, %c0_i32_0 : i32, i32
  }
  func.func @transform_2(%arg0: i32) -> (i32, i32) {
    %c0_i32 = arith.constant 0 : i32
    %c0_i32_0 = arith.constant 0 : i32
    %c0_i32_1 = arith.constant 0 : i32
    return %c0_i32, %c0_i32_0 : i32, i32
  }
  func.func @transform_3(%arg0: i32) -> (i32, i32) {
    %c0_i32 = arith.constant 0 : i32
    %c0_i32_0 = arith.constant 0 : i32
    return %arg0, %c0_i32 : i32, i32
  }
}

module attributes {stable_mosaic.version = 11 : i64} {
  func.func @_conv_kernel(%arg0: i32, %arg1: memref<16x400xbf16, #tpu.memory_space<vmem>>, %arg2: memref<400x512xbf16, #tpu.memory_space<vmem>>, %arg3: memref<1x512xf32, #tpu.memory_space<vmem>>, %arg4: memref<16x512xbf16, #tpu.memory_space<vmem>>) attributes {dimension_semantics = [#tpu.dimension_semantics<parallel>], iteration_bounds = array<i64: 1>, scalar_prefetch = 0 : i64, scratch_operands = 0 : i64, tpu.core_type = #tpu.core_type<tc>, window_params = [{transform_indices = @transform_0, window_bounds = array<i64: 16, 400>}, {pipeline_mode = #tpu.pipeline_mode<synchronous>, transform_indices = @transform_1, window_bounds = array<i64: 400, 512>}, {pipeline_mode = #tpu.pipeline_mode<synchronous>, transform_indices = @transform_2, window_bounds = array<i64: 1, 512>}, {transform_indices = @transform_3, window_bounds = array<i64: 16, 512>}]} {
    %c0 = arith.constant 0 : index
    %c0_0 = arith.constant 0 : index
    %0 = vector.load %arg1[%c0, %c0_0] : memref<16x400xbf16, #tpu.memory_space<vmem>>, vector<16x400xbf16>
    %c0_1 = arith.constant 0 : index
    %c0_2 = arith.constant 0 : index
    %1 = vector.load %arg2[%c0_1, %c0_2] : memref<400x512xbf16, #tpu.memory_space<vmem>>, vector<400x512xbf16>
    %cst = arith.constant dense<0.000000e+00> : vector<16x512xf32>
    %2 = tpu.matmul %0, %1, %cst {dimension_numbers = #tpu.dot_dimension_numbers<[1], [0], [0], [1], [0, 0, 1, 1], [], []>} : vector<16x400xbf16>, vector<400x512xbf16>, vector<16x512xf32> -> vector<16x512xf32>
    %c0_3 = arith.constant 0 : index
    %c0_4 = arith.constant 0 : index
    %3 = vector.load %arg3[%c0_3, %c0_4] : memref<1x512xf32, #tpu.memory_space<vmem>>, vector<1x512xf32>
    %4 = vector.broadcast %3 : vector<1x512xf32> to vector<16x512xf32>
    %5 = arith.addf %2, %4 : vector<16x512xf32>
    %cst_5 = arith.constant 0.000000e+00 : f32
    %6 = vector.broadcast %cst_5 : f32 to vector<16x512xf32>
    %7 = arith.maximumf %5, %6 : vector<16x512xf32>
    %8 = arith.truncf %7 : vector<16x512xf32> to vector<16x512xbf16>
    %c0_6 = arith.constant 0 : index
    %c0_7 = arith.constant 0 : index
    %9 = vector.load %arg4[%c0_6, %c0_7] : memref<16x512xbf16, #tpu.memory_space<vmem>>, vector<16x512xbf16>
    tpu.vector_store %arg4[%c0_6, %c0_7], %8 {strides = array<i32>} : memref<16x512xbf16, #tpu.memory_space<vmem>>, vector<16x512xbf16>,
    return
  }
  func.func @transform_0(%arg0: i32) -> (i32, i32) {
    %c0_i32 = arith.constant 0 : i32
    %c0_i32_0 = arith.constant 0 : i32
    return %arg0, %c0_i32 : i32, i32
  }
  func.func @transform_1(%arg0: i32) -> (i32, i32) {
    %c0_i32 = arith.constant 0 : i32
    %c0_i32_0 = arith.constant 0 : i32
    %c0_i32_1 = arith.constant 0 : i32
    return %c0_i32, %c0_i32_0 : i32, i32
  }
  func.func @transform_2(%arg0: i32) -> (i32, i32) {
    %c0_i32 = arith.constant 0 : i32
    %c0_i32_0 = arith.constant 0 : i32
    %c0_i32_1 = arith.constant 0 : i32
    return %c0_i32, %c0_i32_0 : i32, i32
  }
  func.func @transform_3(%arg0: i32) -> (i32, i32) {
    %c0_i32 = arith.constant 0 : i32
    %c0_i32_0 = arith.constant 0 : i32
    return %arg0, %c0_i32 : i32, i32
  }
}

</mosaic_0001>

<llo_original>
// kernel: repvggnet_forward.6
$region0: #{repvggnet_forward.6}
  #allocation0 [shape = 'u32[]', space=smem, size = 0x4, offset = 0x4, fixed_abs, tag = 'smem constant byte address 0x4 - core index']
  #allocation1 [shape = 'u32[144,128]{1,0:T(1,128)}', space=vmem, size = 0x12000, scoped, tag = 'internal scratch']
  %s0 = inlined_call_operand.vmem [shape: bf16[800,27], index: 0, kind: input, shape index: {}]
  %s1 = inlined_call_operand.vmem [shape: bf16[27,8], index: 1, kind: input, shape index: {}]
  %s2 = inlined_call_operand.vmem [shape: f32[1,8], index: 2, kind: input, shape index: {}]
  %s3 = inlined_call_operand.vmem [shape: bf16[800,8], index: 3, kind: output, shape index: {}]
  %s4 = sld [smem:[#allocation0]]
  $region45: #{repvggnet_forward.6} parent=0
    _
  %s6 = ssub.s32 1, %s4
  %s7 = scalar_select 0, %s6, %s4
  loop: start=0, step=1, limit=4
  $region2: #{repvggnet_forward.6} parent=0 // loop_pre_header
    _
  $region3: #{repvggnet_forward.6} parent=0 // loop_header
    %s9 = sphi 0, %s13
    %p10 = scmp.ge.s32.totalorder %s9, 4
    %s19 = sphi 0, %s21
    %s22 = sphi 0, %s19
    %s23 = sphi 0, %s22
    %s39 = sphi 0, %s23
    %s43 = sphi 0, %s43
    %s45 = sphi 0, %s43
    %s46 = sphi 0, %s45
    %s60 = sphi 0, %s46
    %s64 = sphi 0, %s64
    %s66 = sphi 0, %s64
    %s67 = sphi 0, %s66
    %s81 = sphi 0, %s67
    %s87 = sphi 0, %s89
    %s90 = sphi 0, %s87
    %s91 = sphi 0, %s90
    %s107 = sphi 0, %s91
  $region4: #{repvggnet_forward.6} parent=0 // loop_header_branch
    %12 = sbr.rel (%p10) target = $region8
  $region5: #{repvggnet_forward.6} parent=0 // loop_body
    %s14 = ssub.s32 %s9, 1
    %s15 = ssub.s32 %s9, 2
    %s16 = sadd.s32 %s9, 1
    %s17 = ssub.s32 %s9, %s16
    %p18 = scmp.eq.s32.totalorder %s17, 0
    %s20 = sadd.s32 %s19, 1
    %s21 = scalar_select %p18, %s19, %s20
    %p24 = pneg %p18
    %p25 = scmp.eq.s32.totalorder %s9, 1
    %p26 = por %p24, %p25
    %p27 = scmp.ne.s32.totalorder %s19, %s22
    %p28 = scmp.eq.s32.totalorder %s9, 0
    %p29 = por %p27, %p28
    %p30 = scmp.ne.s32.totalorder %s19, %s22
    %p31 = scmp.eq.s32.totalorder %s14, 1
    %p32 = por %p30, %p31
    %p33 = scmp.ne.s32.totalorder %s22, %s23
    %p34 = scmp.eq.s32.totalorder %s14, 0
    %p35 = por %p33, %p34
    %p36 = scmp.ne.s32.totalorder %s22, %s23
    %p37 = scmp.eq.s32.totalorder %s15, 1
    %p38 = por %p36, %p37
    %p40 = scmp.ne.s32.totalorder %s23, %s39
    %p41 = scmp.eq.s32.totalorder %s15, 0
    %p42 = por %p40, %p41
    %s44 = sadd.s32 %s43, 1
    %p47 = scmp.eq.s32.totalorder %s9, 1
    %p48 = scmp.ne.s32.totalorder %s43, %s45
    %p49 = scmp.eq.s32.totalorder %s9, 0
    %p50 = por %p48, %p49
    %p51 = scmp.ne.s32.totalorder %s43, %s45
    %p52 = scmp.eq.s32.totalorder %s14, 1
    %p53 = por %p51, %p52
    %p54 = scmp.ne.s32.totalorder %s45, %s46
    %p55 = scmp.eq.s32.totalorder %s14, 0
    %p56 = por %p54, %p55
    %p57 = scmp.ne.s32.totalorder %s45, %s46
    %p58 = scmp.eq.s32.totalorder %s15, 1
    %p59 = por %p57, %p58
    %p61 = scmp.ne.s32.totalorder %s46, %s60
    %p62 = scmp.eq.s32.totalorder %s15, 0
    %p63 = por %p61, %p62
    %s65 = sadd.s32 %s64, 1
    %p68 = scmp.eq.s32.totalorder %s9, 1
    %p69 = scmp.ne.s32.totalorder %s64, %s66
    %p70 = scmp.eq.s32.totalorder %s9, 0
    %p71 = por %p69, %p70
    %p72 = scmp.ne.s32.totalorder %s64, %s66
    %p73 = scmp.eq.s32.totalorder %s14, 1
    %p74 = por %p72, %p73
    %p75 = scmp.ne.s32.totalorder %s66, %s67
    %p76 = scmp.eq.s32.totalorder %s14, 0
    %p77 = por %p75, %p76
    %p78 = scmp.ne.s32.totalorder %s66, %s67
    %p79 = scmp.eq.s32.totalorder %s15, 1
    %p80 = por %p78, %p79
    %p82 = scmp.ne.s32.totalorder %s67, %s81
    %p83 = scmp.eq.s32.totalorder %s15, 0
    %p84 = por %p82, %p83
    %s85 = ssub.s32 %s9, %s16
    %p86 = scmp.eq.s32.totalorder %s85, 0
    %s88 = sadd.s32 %s87, 1
    %s89 = scalar_select %p86, %s87, %s88
    %p92 = pneg %p86
    %p93 = scmp.eq.s32.totalorder %s9, 1
    %p94 = por %p92, %p93
    %p95 = scmp.ne.s32.totalorder %s87, %s90
    %p96 = scmp.eq.s32.totalorder %s9, 0
    %p97 = por %p95, %p96
    %p98 = scmp.ne.s32.totalorder %s87, %s90
    %p99 = scmp.eq.s32.totalorder %s14, 1
    %p100 = por %p98, %p99
    %p101 = scmp.ne.s32.totalorder %s90, %s91
    %p102 = scmp.eq.s32.totalorder %s14, 0
    %p103 = por %p101, %p102
    %p104 = scmp.ne.s32.totalorder %s90, %s91
    %p105 = scmp.eq.s32.totalorder %s15, 1
    %p106 = por %p104, %p105
    %p108 = scmp.ne.s32.totalorder %s91, %s107
    %p109 = scmp.eq.s32.totalorder %s15, 0
    %p110 = por %p108, %p109
    %p111 = scmp.le.s32.totalorder 1, %s9
    %p112 = scmp.lt.s32.totalorder %s9, 3
    %p113 = pnand %p111, %p112
    %p114 = pneg %p113
    // Predicated region
    $region9: #{repvggnet_forward.6} parent=5 // pred_check
      _
    $region10: #{repvggnet_forward.6} parent=5 // pred_check_branch
      %116 = sbr.rel (%p113) target = $region12
    $region11: #{repvggnet_forward.6} parent=5 // pred_region
      %s117 = ssub.s32 %s9, 1
      // Predicated region
      $region13: #{repvggnet_forward.6} parent=11 // pred_check
        %p118 = pneg %p56
      $region14: #{repvggnet_forward.6} parent=11 // pred_check_branch
        %120 = sbr.rel (%p118) target = $region16
      $region15: #{repvggnet_forward.6} parent=11 // pred_region
        _
      $region16: #{repvggnet_forward.6} parent=11 // pred_fallthru
        _
      // Predicated region
      $region17: #{repvggnet_forward.6} parent=11 // pred_check
        %p121 = pneg %p77
      $region18: #{repvggnet_forward.6} parent=11 // pred_check_branch
        %123 = sbr.rel (%p121) target = $region20
      $region19: #{repvggnet_forward.6} parent=11 // pred_region
        _
      $region20: #{repvggnet_forward.6} parent=11 // pred_fallthru
        _
    $region12: #{repvggnet_forward.6} parent=5 // pred_fallthru
      _
    %p124 = scmp.lt.s32.totalorder %s9, 2
    // Predicated region
    $region21: #{repvggnet_forward.6} parent=5 // pred_check
      %p125 = pneg %p124
    $region22: #{repvggnet_forward.6} parent=5 // pred_check_branch
      %127 = sbr.rel (%p125) target = $region24
    $region23: #{repvggnet_forward.6} parent=5 // pred_region
      // Predicated region
      $region25: #{repvggnet_forward.6} parent=23 // pred_check
        %p128 = pneg %p29
      $region26: #{repvggnet_forward.6} parent=23 // pred_check_branch
        %130 = sbr.rel (%p128) target = $region28
      $region27: #{repvggnet_forward.6} parent=23 // pred_region
        %s131 = smul.u32 50, %s9
        %p132 = scmp.lt.s32.totalorder %s131, 99
        %s133 = scalar_select %p132, %s131, 99
        %s134 = smul.addr %s133, 4
        %s135 = scalar_lea.vmem %s0, %s134
        %s136 = smul.u32 50, %s9
      $region28: #{repvggnet_forward.6} parent=23 // pred_fallthru
        _
    $region24: #{repvggnet_forward.6} parent=5 // pred_fallthru
      _
    %p137 = scmp.le.s32.totalorder 1, %s9
    %p138 = scmp.lt.s32.totalorder %s9, 3
    %p139 = pnand %p137, %p138
    %p140 = pneg %p139
    // Predicated region
    $region29: #{repvggnet_forward.6} parent=5 // pred_check
      _
    $region30: #{repvggnet_forward.6} parent=5 // pred_check_branch
      %142 = sbr.rel (%p139) target = $region32
    $region31: #{repvggnet_forward.6} parent=5 // pred_region
      %s143 = ssub.s32 %s9, 1
      %s144 = smul.u32 50, %s14
      %p145 = scmp.lt.s32.totalorder %s144, 99
      %s146 = scalar_select %p145, %s144, 99
      %s147 = smul.addr %s146, 4
      %s148 = scalar_lea.vmem %s0, %s147
      %p149 = pneg %p35
      %p150 = pneg %p32
      %p151 = pneg %p56
      %p152 = pneg %p53
      %p153 = pneg %p77
      %p154 = pneg %p74
      %p155 = pneg %p103
      %p156 = pneg %p100
      %s157 = smul.u32 50, %s14
      %p158 = scmp.lt.s32.totalorder %s157, 99
      %s159 = scalar_select %p158, %s157, 99
      %s160 = smul.addr %s159, 4
      %s161 = scalar_lea.vmem %s3, %s160
      %s162 = smul.u32 50, %s14
      %p163 = scmp.lt.s32.totalorder %s162, 99
      %s164 = scalar_select %p163, %s162, 99
      %s165 = smul.addr %s164, 4
      %s166 = scalar_lea.vmem %s0, %s165
      %s167 = smul.u32 50, %s14
      %s168 = smul.u32 50, %s14
      %p169 = scmp.lt.s32.totalorder %s168, 99
      %s170 = scalar_select %p169, %s168, 99
      %s171 = smul.addr %s170, 4
      %s172 = scalar_lea.vmem %s3, %s171
      %s173 = smul.u32 50, %s14
      %v175 = vld [vmem:[%s166] sm:$0xf]
      %v176 = vld [vmem:[%s166 + $0x4] sm:$0xf]
      %v177 = vld [vmem:[%s166 + $0x8] sm:$0xf]
      %v178 = vld [vmem:[%s166 + $0xc] sm:$0xf]
      %v179 = vld [vmem:[%s166 + $0x10] sm:$0xf]
      %v180 = vld [vmem:[%s166 + $0x14] sm:$0xf]
      %v181 = vld [vmem:[%s166 + $0x18] sm:$0xf]
      %v182 = vld [vmem:[%s166 + $0x1c] sm:$0xf]
      %v183 = vld [vmem:[%s166 + $0x20] sm:$0xf]
      %v184 = vld [vmem:[%s166 + $0x24] sm:$0xf]
      %v185 = vld [vmem:[%s166 + $0x28] sm:$0xf]
      %v186 = vld [vmem:[%s166 + $0x2c] sm:$0xf]
      %v187 = vld [vmem:[%s166 + $0x30] sm:$0xf]
      %v188 = vld [vmem:[%s166 + $0x34] sm:$0xf]
      %v189 = vld [vmem:[%s166 + $0x38] sm:$0xf]
      %v190 = vld [vmem:[%s166 + $0x3c] sm:$0xf]
      %v191 = vld [vmem:[%s166 + $0x40] sm:$0xf]
      %v192 = vld [vmem:[%s166 + $0x44] sm:$0xf]
      %v193 = vld [vmem:[%s166 + $0x48] sm:$0xf]
      %v194 = vld [vmem:[%s166 + $0x4c] sm:$0xf]
      %v195 = vld [vmem:[%s166 + $0x50] sm:$0xf]
      %v196 = vld [vmem:[%s166 + $0x54] sm:$0xf]
      %v197 = vld [vmem:[%s166 + $0x58] sm:$0xf]
      %v198 = vld [vmem:[%s166 + $0x5c] sm:$0xf]
      %v199 = vld [vmem:[%s166 + $0x60] sm:$0xf]
      %v200 = vld [vmem:[%s166 + $0x64] sm:$0xf]
      %v201 = vld [vmem:[%s166 + $0x68] sm:$0xf]
      %v202 = vld [vmem:[%s166 + $0x6c] sm:$0xf]
      %v203 = vld [vmem:[%s166 + $0x70] sm:$0xf]
      %v204 = vld [vmem:[%s166 + $0x74] sm:$0xf]
      %v205 = vld [vmem:[%s166 + $0x78] sm:$0xf]
      %v206 = vld [vmem:[%s166 + $0x7c] sm:$0xf]
      %v207 = vld [vmem:[%s166 + $0x80] sm:$0xf]
      %v208 = vld [vmem:[%s166 + $0x84] sm:$0xf]
      %v209 = vld [vmem:[%s166 + $0x88] sm:$0xf]
      %v210 = vld [vmem:[%s166 + $0x8c] sm:$0xf]
      %v211 = vld [vmem:[%s166 + $0x90] sm:$0xf]
      %v212 = vld [vmem:[%s166 + $0x94] sm:$0xf]
      %v213 = vld [vmem:[%s166 + $0x98] sm:$0xf]
      %v214 = vld [vmem:[%s166 + $0x9c] sm:$0xf]
      %v215 = vld [vmem:[%s166 + $0xa0] sm:$0xf]
      %v216 = vld [vmem:[%s166 + $0xa4] sm:$0xf]
      %v217 = vld [vmem:[%s166 + $0xa8] sm:$0xf]
      %v218 = vld [vmem:[%s166 + $0xac] sm:$0xf]
      %v219 = vld [vmem:[%s166 + $0xb0] sm:$0xf]
      %v220 = vld [vmem:[%s166 + $0xb4] sm:$0xf]
      %v221 = vld [vmem:[%s166 + $0xb8] sm:$0xf]
      %v222 = vld [vmem:[%s166 + $0xbc] sm:$0xf]
      %v223 = vld [vmem:[%s166 + $0xc0] sm:$0xf]
      %v224 = vld [vmem:[%s166 + $0xc4] sm:$0xf]
      %v225 = vld [vmem:[%s1] sm:$0xf]
      %v226 = vld [vmem:[%s1 + $0x4] sm:$0xf]
      %v227 = vld [vmem:[%s1 + $0x8] sm:$0xf]
      %v228 = vld [vmem:[%s1 + $0xc] sm:$0x3]
      %v229 = vld [vmem:[%s2] sm:$0x1]
      %v231 = vlaneseq
      %v232 = vshrl.u32 %v231, 7
      %v233 = vsub.s32 0, %v232
      %v234 = vrot.slane %v229, %v233
      %v286 = vunpack.c.l.b16 %v175
      %v287 = vunpack.c.l.b16 %v176
      %v288 = vunpack.c.l.b16 %v177
      %v289 = vunpack.c.l.b16 %v178
      %v290 = vunpack.c.l.b16 %v179
      %v291 = vunpack.c.l.b16 %v180
      %v292 = vunpack.c.l.b16 %v181
      %v293 = vunpack.c.l.b16 %v182
      %v294 = vunpack.c.l.b16 %v183
      %v295 = vunpack.c.l.b16 %v184
      %v296 = vunpack.c.l.b16 %v185
      %v297 = vunpack.c.l.b16 %v186
      %v298 = vunpack.c.l.b16 %v187
      %v299 = vunpack.c.l.b16 %v188
      %v300 = vunpack.c.l.b16 %v189
      %v301 = vunpack.c.l.b16 %v190
      %v302 = vunpack.c.l.b16 %v191
      %v303 = vunpack.c.l.b16 %v192
      %v304 = vunpack.c.l.b16 %v193
      %v305 = vunpack.c.l.b16 %v194
      %v306 = vunpack.c.l.b16 %v195
      %v307 = vunpack.c.l.b16 %v196
      %v308 = vunpack.c.l.b16 %v197
      %v309 = vunpack.c.l.b16 %v198
      %v310 = vunpack.c.l.b16 %v199
      %v311 = vunpack.c.l.b16 %v200
      %v312 = vunpack.c.l.b16 %v201
      %v313 = vunpack.c.l.b16 %v202
      %v314 = vunpack.c.l.b16 %v203
      %v315 = vunpack.c.l.b16 %v204
      %v316 = vunpack.c.l.b16 %v205
      %v317 = vunpack.c.l.b16 %v206
      %v318 = vunpack.c.l.b16 %v207
      %v319 = vunpack.c.l.b16 %v208
      %v320 = vunpack.c.l.b16 %v209
      %v321 = vunpack.c.l.b16 %v210
      %v322 = vunpack.c.l.b16 %v211
      %v323 = vunpack.c.l.b16 %v212
      %v324 = vunpack.c.l.b16 %v213
      %v325 = vunpack.c.l.b16 %v214
      %v326 = vunpack.c.l.b16 %v215
      %v327 = vunpack.c.l.b16 %v216
      %v328 = vunpack.c.l.b16 %v217
      %v329 = vunpack.c.l.b16 %v218
      %v330 = vunpack.c.l.b16 %v219
      %v331 = vunpack.c.l.b16 %v220
      %v332 = vunpack.c.l.b16 %v221
      %v333 = vunpack.c.l.b16 %v222
      %v334 = vunpack.c.l.b16 %v223
      %v335 = vunpack.c.l.b16 %v224
      %v336 = vpack.c.b16 %v287, %v286
      %v337 = vpack.c.b16 %v289, %v288
      %v338 = vpack.c.b16 %v291, %v290
      %v339 = vpack.c.b16 %v293, %v292
      %v340 = vpack.c.b16 %v295, %v294
      %v341 = vpack.c.b16 %v297, %v296
      %v342 = vpack.c.b16 %v299, %v298
      %v343 = vpack.c.b16 %v301, %v300
      %v344 = vpack.c.b16 %v303, %v302
      %v345 = vpack.c.b16 %v305, %v304
      %v346 = vpack.c.b16 %v307, %v306
      %v347 = vpack.c.b16 %v309, %v308
      %v348 = vpack.c.b16 %v311, %v310
      %v349 = vpack.c.b16 %v313, %v312
      %v350 = vpack.c.b16 %v315, %v314
      %v351 = vpack.c.b16 %v317, %v316
      %v352 = vpack.c.b16 %v319, %v318
      %v353 = vpack.c.b16 %v321, %v320
      %v354 = vpack.c.b16 %v323, %v322
      %v355 = vpack.c.b16 %v325, %v324
      %v356 = vpack.c.b16 %v327, %v326
      %v357 = vpack.c.b16 %v329, %v328
      %v358 = vpack.c.b16 %v331, %v330
      %v359 = vpack.c.b16 %v333, %v332
      %v360 = vpack.c.b16 %v335, %v334
      %v365 = vunpack.c.l.b16 %v225
      %v366 = vunpack.c.l.b16 %v226
      %v367 = vunpack.c.l.b16 %v227
      %v368 = vunpack.c.l.b16 %v228
      %v369 = vpack.c.b16 %v366, %v365
      %v370 = vpack.c.b16 %v368, %v367
      %vm372 = vcmask 220160
      %v374 = vsel %vm372, %v336, 0
      %v377 = vsel %vm372, %v337, 0
      %v380 = vsel %vm372, %v338, 0
      %v383 = vsel %vm372, %v339, 0
      %v386 = vsel %vm372, %v340, 0
      %v389 = vsel %vm372, %v341, 0
      %v392 = vsel %vm372, %v342, 0
      %v395 = vsel %vm372, %v343, 0
      %v398 = vsel %vm372, %v344, 0
      %v401 = vsel %vm372, %v345, 0
      %v404 = vsel %vm372, %v346, 0
      %v407 = vsel %vm372, %v347, 0
      %v410 = vsel %vm372, %v348, 0
      %v413 = vsel %vm372, %v349, 0
      %v416 = vsel %vm372, %v350, 0
      %v419 = vsel %vm372, %v351, 0
      %v422 = vsel %vm372, %v352, 0
      %v425 = vsel %vm372, %v353, 0
      %v428 = vsel %vm372, %v354, 0
      %v431 = vsel %vm372, %v355, 0
      %v434 = vsel %vm372, %v356, 0
      %v437 = vsel %vm372, %v357, 0
      %v440 = vsel %vm372, %v358, 0
      %v443 = vsel %vm372, %v359, 0
      %v446 = vsel %vm372, %v360, 0
      %vm448 = vcmask 1044480
      %vm449 = vcmask 1045504
      %v450 = vsel %vm448, 4294967295, 65535
      %v451 = vsel %vm449, %v450, 0
      %v453 = vand.u32 %v370, %v451
      %455 = vmatprep.subr.bf16.mxu0 0
      %456 = vmatpush1.bf16.msra.mxu0 %v369
      %457 = vmatprep.subr.bf16.mxu0 0
      %458 = vmatpush1.bf16.msra.mxu0 %v453
      %459 = vmatprep.subr.bf16.mxu0 0
      %460 = vmatpush1.bf16.msra.mxu0 0
      %461 = vmatprep.subr.bf16.mxu0 0
      %462 = vmatpush1.bf16.msra.mxu0 0
      %463 = vmatprep.subr.bf16.mxu0 0
      %464 = vmatpush1.bf16.msra.mxu0 0
      %465 = vmatprep.subr.bf16.mxu0 0
      %466 = vmatpush1.bf16.msra.mxu0 0
      %467 = vmatprep.subr.bf16.mxu0 0
      %468 = vmatpush1.bf16.msra.mxu0 0
      %469 = vmatprep.subr.bf16.mxu0 0
      %470 = vmatpush1.bf16.msra.mxu0 0
      %471 = vmatprep.subr.bf16.mxu0 0
      %472 = vmatpush1.bf16.msra.mxu0 0
      %473 = vmatprep.subr.bf16.mxu0 0
      %474 = vmatpush1.bf16.msra.mxu0 0
      %475 = vmatprep.subr.bf16.mxu0 0
      %476 = vmatpush1.bf16.msra.mxu0 0
      %477 = vmatprep.subr.bf16.mxu0 0
      %478 = vmatpush1.bf16.msra.mxu0 0
      %479 = vmatprep.subr.bf16.mxu0 0
      %480 = vmatpush1.bf16.msra.mxu0 0
      %481 = vmatprep.subr.bf16.mxu0 0
      %482 = vmatpush1.bf16.msra.mxu0 0
      %483 = vmatprep.subr.bf16.mxu0 0
      %484 = vmatpush1.bf16.msra.mxu0 0
      %485 = vmatprep.subr.bf16.mxu0 0
      %486 = vmatpush1.bf16.msra.mxu0 0
      %487 = vmatprep.mubr.bf16.mxu0 0
      %488 = vmatmul.mubr.bf16.gmra.mrb[0].mxu0 %v374
      %v489 = vpop.f32.mrb[0].mxu0
      %v490 = vadd.f32 %v234, %v489
      %v491 = vpop.f32.mrb[0].mxu0
      %v492 = vpop.f32.mrb[0].mxu0
      %v493 = vadd.f32 %v234, %v492
      %v494 = vpop.f32.mrb[0].mxu0
      %495 = vmatprep.mubr.bf16.mxu0 0
      %496 = vmatmul.mubr.bf16.gmra.mrb[0].mxu0 %v377
      %v497 = vpop.f32.mrb[0].mxu0
      %v498 = vadd.f32 %v234, %v497
      %v499 = vpop.f32.mrb[0].mxu0
      %v500 = vpop.f32.mrb[0].mxu0
      %v501 = vadd.f32 %v234, %v500
      %v502 = vpop.f32.mrb[0].mxu0
      %503 = vmatprep.mubr.bf16.mxu0 0
      %504 = vmatmul.mubr.bf16.gmra.mrb[0].mxu0 %v380
      %v505 = vpop.f32.mrb[0].mxu0
      %v506 = vadd.f32 %v234, %v505
      %v507 = vpop.f32.mrb[0].mxu0
      %v508 = vpop.f32.mrb[0].mxu0
      %v509 = vadd.f32 %v234, %v508
      %v510 = vpop.f32.mrb[0].mxu0
      %511 = vmatprep.mubr.bf16.mxu0 0
      %512 = vmatmul.mubr.bf16.gmra.mrb[0].mxu0 %v383
      %v513 = vpop.f32.mrb[0].mxu0
      %v514 = vadd.f32 %v234, %v513
      %v515 = vpop.f32.mrb[0].mxu0
      %v516 = vpop.f32.mrb[0].mxu0
      %v517 = vadd.f32 %v234, %v516
      %v518 = vpop.f32.mrb[0].mxu0
      %519 = vmatprep.mubr.bf16.mxu0 0
      %520 = vmatmul.mubr.bf16.gmra.mrb[0].mxu0 %v386
      %v521 = vpop.f32.mrb[0].mxu0
      %v522 = vadd.f32 %v234, %v521
      %v523 = vpop.f32.mrb[0].mxu0
      %v524 = vpop.f32.mrb[0].mxu0
      %v525 = vadd.f32 %v234, %v524
      %v526 = vpop.f32.mrb[0].mxu0
      %527 = vmatprep.mubr.bf16.mxu0 0
      %528 = vmatmul.mubr.bf16.gmra.mrb[0].mxu0 %v389
      %v529 = vpop.f32.mrb[0].mxu0
      %v530 = vadd.f32 %v234, %v529
      %v531 = vpop.f32.mrb[0].mxu0
      %v532 = vpop.f32.mrb[0].mxu0
      %v533 = vadd.f32 %v234, %v532
      %v534 = vpop.f32.mrb[0].mxu0
      %535 = vmatprep.mubr.bf16.mxu0 0
      %536 = vmatmul.mubr.bf16.gmra.mrb[0].mxu0 %v392
      %v537 = vpop.f32.mrb[0].mxu0
      %v538 = vadd.f32 %v234, %v537
      %v539 = vpop.f32.mrb[0].mxu0
      %v540 = vpop.f32.mrb[0].mxu0
      %v541 = vadd.f32 %v234, %v540
      %v542 = vpop.f32.mrb[0].mxu0
      %543 = vmatprep.mubr.bf16.mxu0 0
      %544 = vmatmul.mubr.bf16.gmra.mrb[0].mxu0 %v395
      %v545 = vpop.f32.mrb[0].mxu0
      %v546 = vadd.f32 %v234, %v545
      %v547 = vpop.f32.mrb[0].mxu0
      %v548 = vpop.f32.mrb[0].mxu0
      %v549 = vadd.f32 %v234, %v548
      %v550 = vpop.f32.mrb[0].mxu0
      %551 = vmatprep.mubr.bf16.mxu0 0
      %552 = vmatmul.mubr.bf16.gmra.mrb[0].mxu0 %v398
      %v553 = vpop.f32.mrb[0].mxu0
      %v554 = vadd.f32 %v234, %v553
      %v555 = vpop.f32.mrb[0].mxu0
      %v556 = vpop.f32.mrb[0].mxu0
      %v557 = vadd.f32 %v234, %v556
      %v558 = vpop.f32.mrb[0].mxu0
      %559 = vmatprep.mubr.bf16.mxu0 0
      %560 = vmatmul.mubr.bf16.gmra.mrb[0].mxu0 %v401
      %v561 = vpop.f32.mrb[0].mxu0
      %v562 = vadd.f32 %v234, %v561
      %v563 = vpop.f32.mrb[0].mxu0
      %v564 = vpop.f32.mrb[0].mxu0
      %v565 = vadd.f32 %v234, %v564
      %v566 = vpop.f32.mrb[0].mxu0
      %567 = vmatprep.mubr.bf16.mxu0 0
      %568 = vmatmul.mubr.bf16.gmra.mrb[0].mxu0 %v404
      %v569 = vpop.f32.mrb[0].mxu0
      %v570 = vadd.f32 %v234, %v569
      %v571 = vpop.f32.mrb[0].mxu0
      %v572 = vpop.f32.mrb[0].mxu0
      %v573 = vadd.f32 %v234, %v572
      %v574 = vpop.f32.mrb[0].mxu0
      %575 = vmatprep.mubr.bf16.mxu0 0
      %576 = vmatmul.mubr.bf16.gmra.mrb[0].mxu0 %v407
      %v577 = vpop.f32.mrb[0].mxu0
      %v578 = vadd.f32 %v234, %v577
      %v579 = vpop.f32.mrb[0].mxu0
      %v580 = vpop.f32.mrb[0].mxu0
      %v581 = vadd.f32 %v234, %v580
      %v582 = vpop.f32.mrb[0].mxu0
      %583 = vmatprep.mubr.bf16.mxu0 0
      %584 = vmatmul.mubr.bf16.gmra.mrb[0].mxu0 %v410
      %v585 = vpop.f32.mrb[0].mxu0
      %v586 = vadd.f32 %v234, %v585
      %v587 = vpop.f32.mrb[0].mxu0
      %v588 = vpop.f32.mrb[0].mxu0
      %v589 = vadd.f32 %v234, %v588
      %v590 = vpop.f32.mrb[0].mxu0
      %591 = vmatprep.mubr.bf16.mxu0 0
      %592 = vmatmul.mubr.bf16.gmra.mrb[0].mxu0 %v413
      %v593 = vpop.f32.mrb[0].mxu0
      %v594 = vadd.f32 %v234, %v593
      %v595 = vpop.f32.mrb[0].mxu0
      %v596 = vpop.f32.mrb[0].mxu0
      %v597 = vadd.f32 %v234, %v596
      %v598 = vpop.f32.mrb[0].mxu0
      %599 = vmatprep.mubr.bf16.mxu0 0
      %600 = vmatmul.mubr.bf16.gmra.mrb[0].mxu0 %v416
      %v601 = vpop.f32.mrb[0].mxu0
      %v602 = vadd.f32 %v234, %v601
      %v603 = vpop.f32.mrb[0].mxu0
      %v604 = vpop.f32.mrb[0].mxu0
      %v605 = vadd.f32 %v234, %v604
      %v606 = vpop.f32.mrb[0].mxu0
      %607 = vmatprep.mubr.bf16.mxu0 0
      %608 = vmatmul.mubr.bf16.gmra.mrb[0].mxu0 %v419
      %v609 = vpop.f32.mrb[0].mxu0
      %v610 = vadd.f32 %v234, %v609
      %v611 = vpop.f32.mrb[0].mxu0
      %v612 = vpop.f32.mrb[0].mxu0
      %v613 = vadd.f32 %v234, %v612
      %v614 = vpop.f32.mrb[0].mxu0
      %615 = vmatprep.mubr.bf16.mxu0 0
      %616 = vmatmul.mubr.bf16.gmra.mrb[0].mxu0 %v422
      %v617 = vpop.f32.mrb[0].mxu0
      %v618 = vadd.f32 %v234, %v617
      %v619 = vpop.f32.mrb[0].mxu0
      %v620 = vpop.f32.mrb[0].mxu0
      %v621 = vadd.f32 %v234, %v620
      %v622 = vpop.f32.mrb[0].mxu0
      %623 = vmatprep.mubr.bf16.mxu0 0
      %624 = vmatmul.mubr.bf16.gmra.mrb[0].mxu0 %v425
      %v625 = vpop.f32.mrb[0].mxu0
      %v626 = vadd.f32 %v234, %v625
      %v627 = vpop.f32.mrb[0].mxu0
      %v628 = vpop.f32.mrb[0].mxu0
      %v629 = vadd.f32 %v234, %v628
      %v630 = vpop.f32.mrb[0].mxu0
      %631 = vmatprep.mubr.bf16.mxu0 0
      %632 = vmatmul.mubr.bf16.gmra.mrb[0].mxu0 %v428
      %v633 = vpop.f32.mrb[0].mxu0
      %v634 = vadd.f32 %v234, %v633
      %v635 = vpop.f32.mrb[0].mxu0
      %v636 = vpop.f32.mrb[0].mxu0
      %v637 = vadd.f32 %v234, %v636
      %v638 = vpop.f32.mrb[0].mxu0
      %639 = vmatprep.mubr.bf16.mxu0 0
      %640 = vmatmul.mubr.bf16.gmra.mrb[0].mxu0 %v431
      %v641 = vpop.f32.mrb[0].mxu0
      %v642 = vadd.f32 %v234, %v641
      %v643 = vpop.f32.mrb[0].mxu0
      %v644 = vpop.f32.mrb[0].mxu0
      %v645 = vadd.f32 %v234, %v644
      %v646 = vpop.f32.mrb[0].mxu0
      %647 = vmatprep.mubr.bf16.mxu0 0
      %648 = vmatmul.mubr.bf16.gmra.mrb[0].mxu0 %v434
      %v649 = vpop.f32.mrb[0].mxu0
      %v650 = vadd.f32 %v234, %v649
      %v651 = vpop.f32.mrb[0].mxu0
      %v652 = vpop.f32.mrb[0].mxu0
      %v653 = vadd.f32 %v234, %v652
      %v654 = vpop.f32.mrb[0].mxu0
      %655 = vmatprep.mubr.bf16.mxu0 0
      %656 = vmatmul.mubr.bf16.gmra.mrb[0].mxu0 %v437
      %v657 = vpop.f32.mrb[0].mxu0
      %v658 = vadd.f32 %v234, %v657
      %v659 = vpop.f32.mrb[0].mxu0
      %v660 = vpop.f32.mrb[0].mxu0
      %v661 = vadd.f32 %v234, %v660
      %v662 = vpop.f32.mrb[0].mxu0
      %663 = vmatprep.mubr.bf16.mxu0 0
      %664 = vmatmul.mubr.bf16.gmra.mrb[0].mxu0 %v440
      %v665 = vpop.f32.mrb[0].mxu0
      %v666 = vadd.f32 %v234, %v665
      %v667 = vpop.f32.mrb[0].mxu0
      %v668 = vpop.f32.mrb[0].mxu0
      %v669 = vadd.f32 %v234, %v668
      %v670 = vpop.f32.mrb[0].mxu0
      %671 = vmatprep.mubr.bf16.mxu0 0
      %672 = vmatmul.mubr.bf16.gmra.mrb[0].mxu0 %v443
      %v673 = vpop.f32.mrb[0].mxu0
      %v674 = vadd.f32 %v234, %v673
      %v675 = vpop.f32.mrb[0].mxu0
      %v676 = vpop.f32.mrb[0].mxu0
      %v677 = vadd.f32 %v234, %v676
      %v678 = vpop.f32.mrb[0].mxu0
      %679 = vmatprep.mubr.bf16.mxu0 0
      %680 = vmatmul.mubr.bf16.gmra.mrb[0].mxu0 %v446
      %v681 = vpop.f32.mrb[0].mxu0
      %v682 = vadd.f32 %v234, %v681
      %v683 = vpop.f32.mrb[0].mxu0
      %v684 = vpop.f32.mrb[0].mxu0
      %v685 = vadd.f32 %v234, %v684
      %v686 = vpop.f32.mrb[0].mxu0
      %687 = vdwg.mxu0
      %v688 = vmax.f32 %v490, 0.0
      %v689 = vmax.f32 %v493, 0.0
      %v690 = vmax.f32 %v498, 0.0
      %v691 = vmax.f32 %v501, 0.0
      %v692 = vmax.f32 %v506, 0.0
      %v693 = vmax.f32 %v509, 0.0
      %v694 = vmax.f32 %v514, 0.0
      %v695 = vmax.f32 %v517, 0.0
      %v696 = vmax.f32 %v522, 0.0
      %v697 = vmax.f32 %v525, 0.0
      %v698 = vmax.f32 %v530, 0.0
      %v699 = vmax.f32 %v533, 0.0
      %v700 = vmax.f32 %v538, 0.0
      %v701 = vmax.f32 %v541, 0.0
      %v702 = vmax.f32 %v546, 0.0
      %v703 = vmax.f32 %v549, 0.0
      %v704 = vmax.f32 %v554, 0.0
      %v705 = vmax.f32 %v557, 0.0
      %v706 = vmax.f32 %v562, 0.0
      %v707 = vmax.f32 %v565, 0.0
      %v708 = vmax.f32 %v570, 0.0
      %v709 = vmax.f32 %v573, 0.0
      %v710 = vmax.f32 %v578, 0.0
      %v711 = vmax.f32 %v581, 0.0
      %v712 = vmax.f32 %v586, 0.0
      %v713 = vmax.f32 %v589, 0.0
      %v714 = vmax.f32 %v594, 0.0
      %v715 = vmax.f32 %v597, 0.0
      %v716 = vmax.f32 %v602, 0.0
      %v717 = vmax.f32 %v605, 0.0
      %v718 = vmax.f32 %v610, 0.0
      %v719 = vmax.f32 %v613, 0.0
      %v720 = vmax.f32 %v618, 0.0
      %v721 = vmax.f32 %v621, 0.0
      %v722 = vmax.f32 %v626, 0.0
      %v723 = vmax.f32 %v629, 0.0
      %v724 = vmax.f32 %v634, 0.0
      %v725 = vmax.f32 %v637, 0.0
      %v726 = vmax.f32 %v642, 0.0
      %v727 = vmax.f32 %v645, 0.0
      %v728 = vmax.f32 %v650, 0.0
      %v729 = vmax.f32 %v653, 0.0
      %v730 = vmax.f32 %v658, 0.0
      %v731 = vmax.f32 %v661, 0.0
      %v732 = vmax.f32 %v666, 0.0
      %v733 = vmax.f32 %v669, 0.0
      %v734 = vmax.f32 %v674, 0.0
      %v735 = vmax.f32 %v677, 0.0
      %v736 = vmax.f32 %v682, 0.0
      %v737 = vmax.f32 %v685, 0.0
      %v738 = vpack.c.bf16 %v689, %v688
      %v739 = vpack.c.bf16 %v691, %v690
      %v740 = vpack.c.bf16 %v693, %v692
      %v741 = vpack.c.bf16 %v695, %v694
      %v742 = vpack.c.bf16 %v697, %v696
      %v743 = vpack.c.bf16 %v699, %v698
      %v744 = vpack.c.bf16 %v701, %v700
      %v745 = vpack.c.bf16 %v703, %v702
      %v746 = vpack.c.bf16 %v705, %v704
      %v747 = vpack.c.bf16 %v707, %v706
      %v748 = vpack.c.bf16 %v709, %v708
      %v749 = vpack.c.bf16 %v711, %v710
      %v750 = vpack.c.bf16 %v713, %v712
      %v751 = vpack.c.bf16 %v715, %v714
      %v752 = vpack.c.bf16 %v717, %v716
      %v753 = vpack.c.bf16 %v719, %v718
      %v754 = vpack.c.bf16 %v721, %v720
      %v755 = vpack.c.bf16 %v723, %v722
      %v756 = vpack.c.bf16 %v725, %v724
      %v757 = vpack.c.bf16 %v727, %v726
      %v758 = vpack.c.bf16 %v729, %v728
      %v759 = vpack.c.bf16 %v731, %v730
      %v760 = vpack.c.bf16 %v733, %v732
      %v761 = vpack.c.bf16 %v735, %v734
      %v762 = vpack.c.bf16 %v737, %v736
      %v788 = vunpack.c.l.b16 %v738
      %v789 = vunpack.c.h.b16 %v738
      %v790 = vunpack.c.l.b16 %v739
      %v791 = vunpack.c.h.b16 %v739
      %v792 = vunpack.c.l.b16 %v740
      %v793 = vunpack.c.h.b16 %v740
      %v794 = vunpack.c.l.b16 %v741
      %v795 = vunpack.c.h.b16 %v741
      %v796 = vunpack.c.l.b16 %v742
      %v797 = vunpack.c.h.b16 %v742
      %v798 = vunpack.c.l.b16 %v743
      %v799 = vunpack.c.h.b16 %v743
      %v800 = vunpack.c.l.b16 %v744
      %v801 = vunpack.c.h.b16 %v744
      %v802 = vunpack.c.l.b16 %v745
      %v803 = vunpack.c.h.b16 %v745
      %v804 = vunpack.c.l.b16 %v746
      %v805 = vunpack.c.h.b16 %v746
      %v806 = vunpack.c.l.b16 %v747
      %v807 = vunpack.c.h.b16 %v747
      %v808 = vunpack.c.l.b16 %v748
      %v809 = vunpack.c.h.b16 %v748
      %v810 = vunpack.c.l.b16 %v749
      %v811 = vunpack.c.h.b16 %v749
      %v812 = vunpack.c.l.b16 %v750
      %v813 = vunpack.c.h.b16 %v750
      %v814 = vunpack.c.l.b16 %v751
      %v815 = vunpack.c.h.b16 %v751
      %v816 = vunpack.c.l.b16 %v752
      %v817 = vunpack.c.h.b16 %v752
      %v818 = vunpack.c.l.b16 %v753
      %v819 = vunpack.c.h.b16 %v753
      %v820 = vunpack.c.l.b16 %v754
      %v821 = vunpack.c.h.b16 %v754
      %v822 = vunpack.c.l.b16 %v755
      %v823 = vunpack.c.h.b16 %v755
      %v824 = vunpack.c.l.b16 %v756
      %v825 = vunpack.c.h.b16 %v756
      %v826 = vunpack.c.l.b16 %v757
      %v827 = vunpack.c.h.b16 %v757
      %v828 = vunpack.c.l.b16 %v758
      %v829 = vunpack.c.h.b16 %v758
      %v830 = vunpack.c.l.b16 %v759
      %v831 = vunpack.c.h.b16 %v759
      %v832 = vunpack.c.l.b16 %v760
      %v833 = vunpack.c.h.b16 %v760
      %v834 = vunpack.c.l.b16 %v761
      %v835 = vunpack.c.h.b16 %v761
      %v836 = vunpack.c.l.b16 %v762
      %v837 = vunpack.c.h.b16 %v762
      %v838 = vpack.c.b16 %v788, %v788
      %v839 = vpack.c.b16 %v789, %v789
      %v840 = vpack.c.b16 %v790, %v790
      %v841 = vpack.c.b16 %v791, %v791
      %v842 = vpack.c.b16 %v792, %v792
      %v843 = vpack.c.b16 %v793, %v793
      %v844 = vpack.c.b16 %v794, %v794
      %v845 = vpack.c.b16 %v795, %v795
      %v846 = vpack.c.b16 %v796, %v796
      %v847 = vpack.c.b16 %v797, %v797
      %v848 = vpack.c.b16 %v798, %v798
      %v849 = vpack.c.b16 %v799, %v799
      %v850 = vpack.c.b16 %v800, %v800
      %v851 = vpack.c.b16 %v801, %v801
      %v852 = vpack.c.b16 %v802, %v802
      %v853 = vpack.c.b16 %v803, %v803
      %v854 = vpack.c.b16 %v804, %v804
      %v855 = vpack.c.b16 %v805, %v805
      %v856 = vpack.c.b16 %v806, %v806
      %v857 = vpack.c.b16 %v807, %v807
      %v858 = vpack.c.b16 %v808, %v808
      %v859 = vpack.c.b16 %v809, %v809
      %v860 = vpack.c.b16 %v810, %v810
      %v861 = vpack.c.b16 %v811, %v811
      %v862 = vpack.c.b16 %v812, %v812
      %v863 = vpack.c.b16 %v813, %v813
      %v864 = vpack.c.b16 %v814, %v814
      %v865 = vpack.c.b16 %v815, %v815
      %v866 = vpack.c.b16 %v816, %v816
      %v867 = vpack.c.b16 %v817, %v817
      %v868 = vpack.c.b16 %v818, %v818
      %v869 = vpack.c.b16 %v819, %v819
      %v870 = vpack.c.b16 %v820, %v820
      %v871 = vpack.c.b16 %v821, %v821
      %v872 = vpack.c.b16 %v822, %v822
      %v873 = vpack.c.b16 %v823, %v823
      %v874 = vpack.c.b16 %v824, %v824
      %v875 = vpack.c.b16 %v825, %v825
      %v876 = vpack.c.b16 %v826, %v826
      %v877 = vpack.c.b16 %v827, %v827
      %v878 = vpack.c.b16 %v828, %v828
      %v879 = vpack.c.b16 %v829, %v829
      %v880 = vpack.c.b16 %v830, %v830
      %v881 = vpack.c.b16 %v831, %v831
      %v882 = vpack.c.b16 %v832, %v832
      %v883 = vpack.c.b16 %v833, %v833
      %v884 = vpack.c.b16 %v834, %v834
      %v885 = vpack.c.b16 %v835, %v835
      %v886 = vpack.c.b16 %v836, %v836
      %v887 = vpack.c.b16 %v837, %v837
      %vm938 = vcmask 60416
      %939 = vst.msk [vmem:[%s172] sm:$0xf] %vm938, %v838
      %940 = vst.msk [vmem:[%s172 + $0x4] sm:$0xf] %vm938, %v839
      %941 = vst.msk [vmem:[%s172 + $0x8] sm:$0xf] %vm938, %v840
      %942 = vst.msk [vmem:[%s172 + $0xc] sm:$0xf] %vm938, %v841
      %943 = vst.msk [vmem:[%s172 + $0x10] sm:$0xf] %vm938, %v842
      %944 = vst.msk [vmem:[%s172 + $0x14] sm:$0xf] %vm938, %v843
      %945 = vst.msk [vmem:[%s172 + $0x18] sm:$0xf] %vm938, %v844
      %946 = vst.msk [vmem:[%s172 + $0x1c] sm:$0xf] %vm938, %v845
      %947 = vst.msk [vmem:[%s172 + $0x20] sm:$0xf] %vm938, %v846
      %948 = vst.msk [vmem:[%s172 + $0x24] sm:$0xf] %vm938, %v847
      %949 = vst.msk [vmem:[%s172 + $0x28] sm:$0xf] %vm938, %v848
      %950 = vst.msk [vmem:[%s172 + $0x2c] sm:$0xf] %vm938, %v849
      %951 = vst.msk [vmem:[%s172 + $0x30] sm:$0xf] %vm938, %v850
      %952 = vst.msk [vmem:[%s172 + $0x34] sm:$0xf] %vm938, %v851
      %953 = vst.msk [vmem:[%s172 + $0x38] sm:$0xf] %vm938, %v852
      %954 = vst.msk [vmem:[%s172 + $0x3c] sm:$0xf] %vm938, %v853
      %955 = vst.msk [vmem:[%s172 + $0x40] sm:$0xf] %vm938, %v854
      %956 = vst.msk [vmem:[%s172 + $0x44] sm:$0xf] %vm938, %v855
      %957 = vst.msk [vmem:[%s172 + $0x48] sm:$0xf] %vm938, %v856
      %958 = vst.msk [vmem:[%s172 + $0x4c] sm:$0xf] %vm938, %v857
      %959 = vst.msk [vmem:[%s172 + $0x50] sm:$0xf] %vm938, %v858
      %960 = vst.msk [vmem:[%s172 + $0x54] sm:$0xf] %vm938, %v859
      %961 = vst.msk [vmem:[%s172 + $0x58] sm:$0xf] %vm938, %v860
      %962 = vst.msk [vmem:[%s172 + $0x5c] sm:$0xf] %vm938, %v861
      %963 = vst.msk [vmem:[%s172 + $0x60] sm:$0xf] %vm938, %v862
      %964 = vst.msk [vmem:[%s172 + $0x64] sm:$0xf] %vm938, %v863
      %965 = vst.msk [vmem:[%s172 + $0x68] sm:$0xf] %vm938, %v864
      %966 = vst.msk [vmem:[%s172 + $0x6c] sm:$0xf] %vm938, %v865
      %967 = vst.msk [vmem:[%s172 + $0x70] sm:$0xf] %vm938, %v866
      %968 = vst.msk [vmem:[%s172 + $0x74] sm:$0xf] %vm938, %v867
      %969 = vst.msk [vmem:[%s172 + $0x78] sm:$0xf] %vm938, %v868
      %970 = vst.msk [vmem:[%s172 + $0x7c] sm:$0xf] %vm938, %v869
      %971 = vst.msk [vmem:[%s172 + $0x80] sm:$0xf] %vm938, %v870
      %972 = vst.msk [vmem:[%s172 + $0x84] sm:$0xf] %vm938, %v871
      %973 = vst.msk [vmem:[%s172 + $0x88] sm:$0xf] %vm938, %v872
      %974 = vst.msk [vmem:[%s172 + $0x8c] sm:$0xf] %vm938, %v873
      %975 = vst.msk [vmem:[%s172 + $0x90] sm:$0xf] %vm938, %v874
      %976 = vst.msk [vmem:[%s172 + $0x94] sm:$0xf] %vm938, %v875
      %977 = vst.msk [vmem:[%s172 + $0x98] sm:$0xf] %vm938, %v876
      %978 = vst.msk [vmem:[%s172 + $0x9c] sm:$0xf] %vm938, %v877
      %979 = vst.msk [vmem:[%s172 + $0xa0] sm:$0xf] %vm938, %v878
      %980 = vst.msk [vmem:[%s172 + $0xa4] sm:$0xf] %vm938, %v879
      %981 = vst.msk [vmem:[%s172 + $0xa8] sm:$0xf] %vm938, %v880
      %982 = vst.msk [vmem:[%s172 + $0xac] sm:$0xf] %vm938, %v881
      %983 = vst.msk [vmem:[%s172 + $0xb0] sm:$0xf] %vm938, %v882
      %984 = vst.msk [vmem:[%s172 + $0xb4] sm:$0xf] %vm938, %v883
      %985 = vst.msk [vmem:[%s172 + $0xb8] sm:$0xf] %vm938, %v884
      %986 = vst.msk [vmem:[%s172 + $0xbc] sm:$0xf] %vm938, %v885
      %987 = vst.msk [vmem:[%s172 + $0xc0] sm:$0xf] %vm938, %v886
      %988 = vst.msk [vmem:[%s172 + $0xc4] sm:$0xf] %vm938, %v887
      %s989 = smul.u32 50, %s14
      %p990 = scmp.lt.s32.totalorder %s989, 99
      %s991 = scalar_select %p990, %s989, 99
      %s992 = smul.addr %s991, 4
      %s993 = scalar_lea.vmem %s3, %s992
      // Predicated region
      $region33: #{repvggnet_forward.6} parent=31 // pred_check
        %p994 = pneg %p100
      $region34: #{repvggnet_forward.6} parent=31 // pred_check_branch
        %996 = sbr.rel (%p994) target = $region36
      $region35: #{repvggnet_forward.6} parent=31 // pred_region
        %s997 = smul.u32 50, %s14
      $region36: #{repvggnet_forward.6} parent=31 // pred_fallthru
        _
    $region32: #{repvggnet_forward.6} parent=5 // pred_fallthru
      _
    %p998 = scmp.le.s32.totalorder 2, %s9
    // Predicated region
    $region37: #{repvggnet_forward.6} parent=5 // pred_check
      %p999 = pneg %p998
    $region38: #{repvggnet_forward.6} parent=5 // pred_check_branch
      %1001 = sbr.rel (%p999) target = $region40
    $region39: #{repvggnet_forward.6} parent=5 // pred_region
      %s1002 = ssub.s32 %s9, 2
      // Predicated region
      $region41: #{repvggnet_forward.6} parent=39 // pred_check
        %p1003 = pneg %p106
      $region42: #{repvggnet_forward.6} parent=39 // pred_check_branch
        %1005 = sbr.rel (%p1003) target = $region44
      $region43: #{repvggnet_forward.6} parent=39 // pred_region
        %s1006 = smul.u32 50, %s15
        %p1007 = scmp.lt.s32.totalorder %s1006, 99
        %s1008 = scalar_select %p1007, %s1006, 99
        %s1009 = smul.addr %s1008, 4
        %s1010 = scalar_lea.vmem %s3, %s1009
      $region44: #{repvggnet_forward.6} parent=39 // pred_fallthru
        _
    $region40: #{repvggnet_forward.6} parent=5 // pred_fallthru
      _
  $region6: #{repvggnet_forward.6} parent=0 // loop_footer
    %s13 = sadd.s32 1, %s9
  $region7: #{repvggnet_forward.6} parent=0 // loop_footer_branch
    %8 = sbr.rel target = $region3
  $region8: #{repvggnet_forward.6} parent=0 // loop_exit
    _

// kernel: repvggnet_forward.7
$region0: #{repvggnet_forward.7}
  #allocation0 [shape = 'u32[]', space=smem, size = 0x4, offset = 0x4, fixed_abs, tag = 'smem constant byte address 0x4 - core index']
  #allocation1 [shape = 'u32[144,128]{1,0:T(1,128)}', space=vmem, size = 0x12000, scoped, tag = 'internal scratch']
  %s0 = inlined_call_operand.vmem [shape: bf16[224,72], index: 0, kind: input, shape index: {}]
  %s1 = inlined_call_operand.vmem [shape: bf16[72,8], index: 1, kind: input, shape index: {}]
  %s2 = inlined_call_operand.vmem [shape: f32[1,8], index: 2, kind: input, shape index: {}]
  %s3 = inlined_call_operand.vmem [shape: bf16[8,8], index: 3, kind: input, shape index: {}]
  %s4 = inlined_call_operand.vmem [shape: f32[1,8], index: 4, kind: input, shape index: {}]
  %s5 = inlined_call_operand.vmem [shape: bf16[224,8], index: 5, kind: output, shape index: {}]
  %s6 = sld [smem:[#allocation0]]
  $region53: #{repvggnet_forward.7} parent=0
    _
  %s8 = ssub.s32 1, %s6
  %s9 = scalar_select 0, %s8, %s6
  loop: start=0, step=1, limit=4
  $region2: #{repvggnet_forward.7} parent=0 // loop_pre_header
    _
  $region3: #{repvggnet_forward.7} parent=0 // loop_header
    %s11 = sphi 0, %s15
    %p12 = scmp.ge.s32.totalorder %s11, 4
    %s21 = sphi 0, %s23
    %s24 = sphi 0, %s21
    %s25 = sphi 0, %s24
    %s41 = sphi 0, %s25
    %s45 = sphi 0, %s45
    %s47 = sphi 0, %s45
    %s48 = sphi 0, %s47
    %s62 = sphi 0, %s48
    %s66 = sphi 0, %s66
    %s68 = sphi 0, %s66
    %s69 = sphi 0, %s68
    %s83 = sphi 0, %s69
    %s87 = sphi 0, %s87
    %s89 = sphi 0, %s87
    %s90 = sphi 0, %s89
    %s104 = sphi 0, %s90
    %s108 = sphi 0, %s108
    %s110 = sphi 0, %s108
    %s111 = sphi 0, %s110
    %s125 = sphi 0, %s111
    %s131 = sphi 0, %s133
    %s134 = sphi 0, %s131
    %s135 = sphi 0, %s134
    %s151 = sphi 0, %s135
  $region4: #{repvggnet_forward.7} parent=0 // loop_header_branch
    %14 = sbr.rel (%p12) target = $region8
  $region5: #{repvggnet_forward.7} parent=0 // loop_body
    %s16 = ssub.s32 %s11, 1
    %s17 = ssub.s32 %s11, 2
    %s18 = sadd.s32 %s11, 1
    %s19 = ssub.s32 %s11, %s18
    %p20 = scmp.eq.s32.totalorder %s19, 0
    %s22 = sadd.s32 %s21, 1
    %s23 = scalar_select %p20, %s21, %s22
    %p26 = pneg %p20
    %p27 = scmp.eq.s32.totalorder %s11, 1
    %p28 = por %p26, %p27
    %p29 = scmp.ne.s32.totalorder %s21, %s24
    %p30 = scmp.eq.s32.totalorder %s11, 0
    %p31 = por %p29, %p30
    %p32 = scmp.ne.s32.totalorder %s21, %s24
    %p33 = scmp.eq.s32.totalorder %s16, 1
    %p34 = por %p32, %p33
    %p35 = scmp.ne.s32.totalorder %s24, %s25
    %p36 = scmp.eq.s32.totalorder %s16, 0
    %p37 = por %p35, %p36
    %p38 = scmp.ne.s32.totalorder %s24, %s25
    %p39 = scmp.eq.s32.totalorder %s17, 1
    %p40 = por %p38, %p39
    %p42 = scmp.ne.s32.totalorder %s25, %s41
    %p43 = scmp.eq.s32.totalorder %s17, 0
    %p44 = por %p42, %p43
    %s46 = sadd.s32 %s45, 1
    %p49 = scmp.eq.s32.totalorder %s11, 1
    %p50 = scmp.ne.s32.totalorder %s45, %s47
    %p51 = scmp.eq.s32.totalorder %s11, 0
    %p52 = por %p50, %p51
    %p53 = scmp.ne.s32.totalorder %s45, %s47
    %p54 = scmp.eq.s32.totalorder %s16, 1
    %p55 = por %p53, %p54
    %p56 = scmp.ne.s32.totalorder %s47, %s48
    %p57 = scmp.eq.s32.totalorder %s16, 0
    %p58 = por %p56, %p57
    %p59 = scmp.ne.s32.totalorder %s47, %s48
    %p60 = scmp.eq.s32.totalorder %s17, 1
    %p61 = por %p59, %p60
    %p63 = scmp.ne.s32.totalorder %s48, %s62
    %p64 = scmp.eq.s32.totalorder %s17, 0
    %p65 = por %p63, %p64
    %s67 = sadd.s32 %s66, 1
    %p70 = scmp.eq.s32.totalorder %s11, 1
    %p71 = scmp.ne.s32.totalorder %s66, %s68
    %p72 = scmp.eq.s32.totalorder %s11, 0
    %p73 = por %p71, %p72
    %p74 = scmp.ne.s32.totalorder %s66, %s68
    %p75 = scmp.eq.s32.totalorder %s16, 1
    %p76 = por %p74, %p75
    %p77 = scmp.ne.s32.totalorder %s68, %s69
    %p78 = scmp.eq.s32.totalorder %s16, 0
    %p79 = por %p77, %p78
    %p80 = scmp.ne.s32.totalorder %s68, %s69
    %p81 = scmp.eq.s32.totalorder %s17, 1
    %p82 = por %p80, %p81
    %p84 = scmp.ne.s32.totalorder %s69, %s83
    %p85 = scmp.eq.s32.totalorder %s17, 0
    %p86 = por %p84, %p85
    %s88 = sadd.s32 %s87, 1
    %p91 = scmp.eq.s32.totalorder %s11, 1
    %p92 = scmp.ne.s32.totalorder %s87, %s89
    %p93 = scmp.eq.s32.totalorder %s11, 0
    %p94 = por %p92, %p93
    %p95 = scmp.ne.s32.totalorder %s87, %s89
    %p96 = scmp.eq.s32.totalorder %s16, 1
    %p97 = por %p95, %p96
    %p98 = scmp.ne.s32.totalorder %s89, %s90
    %p99 = scmp.eq.s32.totalorder %s16, 0
    %p100 = por %p98, %p99
    %p101 = scmp.ne.s32.totalorder %s89, %s90
    %p102 = scmp.eq.s32.totalorder %s17, 1
    %p103 = por %p101, %p102
    %p105 = scmp.ne.s32.totalorder %s90, %s104
    %p106 = scmp.eq.s32.totalorder %s17, 0
    %p107 = por %p105, %p106
    %s109 = sadd.s32 %s108, 1
    %p112 = scmp.eq.s32.totalorder %s11, 1
    %p113 = scmp.ne.s32.totalorder %s108, %s110
    %p114 = scmp.eq.s32.totalorder %s11, 0
    %p115 = por %p113, %p114
    %p116 = scmp.ne.s32.totalorder %s108, %s110
    %p117 = scmp.eq.s32.totalorder %s16, 1
    %p118 = por %p116, %p117
    %p119 = scmp.ne.s32.totalorder %s110, %s111
    %p120 = scmp.eq.s32.totalorder %s16, 0
    %p121 = por %p119, %p120
    %p122 = scmp.ne.s32.totalorder %s110, %s111
    %p123 = scmp.eq.s32.totalorder %s17, 1
    %p124 = por %p122, %p123
    %p126 = scmp.ne.s32.totalorder %s111, %s125
    %p127 = scmp.eq.s32.totalorder %s17, 0
    %p128 = por %p126, %p127
    %s129 = ssub.s32 %s11, %s18
    %p130 = scmp.eq.s32.totalorder %s129, 0
    %s132 = sadd.s32 %s131, 1
    %s133 = scalar_select %p130, %s131, %s132
    %p136 = pneg %p130
    %p137 = scmp.eq.s32.totalorder %s11, 1
    %p138 = por %p136, %p137
    %p139 = scmp.ne.s32.totalorder %s131, %s134
    %p140 = scmp.eq.s32.totalorder %s11, 0
    %p141 = por %p139, %p140
    %p142 = scmp.ne.s32.totalorder %s131, %s134
    %p143 = scmp.eq.s32.totalorder %s16, 1
    %p144 = por %p142, %p143
    %p145 = scmp.ne.s32.totalorder %s134, %s135
    %p146 = scmp.eq.s32.totalorder %s16, 0
    %p147 = por %p145, %p146
    %p148 = scmp.ne.s32.totalorder %s134, %s135
    %p149 = scmp.eq.s32.totalorder %s17, 1
    %p150 = por %p148, %p149
    %p152 = scmp.ne.s32.totalorder %s135, %s151
    %p153 = scmp.eq.s32.totalorder %s17, 0
    %p154 = por %p152, %p153
    %p155 = scmp.le.s32.totalorder 1, %s11
    %p156 = scmp.lt.s32.totalorder %s11, 3
    %p157 = pnand %p155, %p156
    %p158 = pneg %p157
    // Predicated region
    $region9: #{repvggnet_forward.7} parent=5 // pred_check
      _
    $region10: #{repvggnet_forward.7} parent=5 // pred_check_branch
      %160 = sbr.rel (%p157) target = $region12
    $region11: #{repvggnet_forward.7} parent=5 // pred_region
      %s161 = ssub.s32 %s11, 1
      // Predicated region
      $region13: #{repvggnet_forward.7} parent=11 // pred_check
        %p162 = pneg %p58
      $region14: #{repvggnet_forward.7} parent=11 // pred_check_branch
        %164 = sbr.rel (%p162) target = $region16
      $region15: #{repvggnet_forward.7} parent=11 // pred_region
        _
      $region16: #{repvggnet_forward.7} parent=11 // pred_fallthru
        _
      // Predicated region
      $region17: #{repvggnet_forward.7} parent=11 // pred_check
        %p165 = pneg %p79
      $region18: #{repvggnet_forward.7} parent=11 // pred_check_branch
        %167 = sbr.rel (%p165) target = $region20
      $region19: #{repvggnet_forward.7} parent=11 // pred_region
        _
      $region20: #{repvggnet_forward.7} parent=11 // pred_fallthru
        _
      // Predicated region
      $region21: #{repvggnet_forward.7} parent=11 // pred_check
        %p168 = pneg %p100
      $region22: #{repvggnet_forward.7} parent=11 // pred_check_branch
        %170 = sbr.rel (%p168) target = $region24
      $region23: #{repvggnet_forward.7} parent=11 // pred_region
        _
      $region24: #{repvggnet_forward.7} parent=11 // pred_fallthru
        _
      // Predicated region
      $region25: #{repvggnet_forward.7} parent=11 // pred_check
        %p171 = pneg %p121
      $region26: #{repvggnet_forward.7} parent=11 // pred_check_branch
        %173 = sbr.rel (%p171) target = $region28
      $region27: #{repvggnet_forward.7} parent=11 // pred_region
        _
      $region28: #{repvggnet_forward.7} parent=11 // pred_fallthru
        _
    $region12: #{repvggnet_forward.7} parent=5 // pred_fallthru
      _
    %p174 = scmp.lt.s32.totalorder %s11, 2
    // Predicated region
    $region29: #{repvggnet_forward.7} parent=5 // pred_check
      %p175 = pneg %p174
    $region30: #{repvggnet_forward.7} parent=5 // pred_check_branch
      %177 = sbr.rel (%p175) target = $region32
    $region31: #{repvggnet_forward.7} parent=5 // pred_region
      // Predicated region
      $region33: #{repvggnet_forward.7} parent=31 // pred_check
        %p178 = pneg %p31
      $region34: #{repvggnet_forward.7} parent=31 // pred_check_branch
        %180 = sbr.rel (%p178) target = $region36
      $region35: #{repvggnet_forward.7} parent=31 // pred_region
        %s181 = smul.u32 14, %s11
        %p182 = scmp.lt.s32.totalorder %s181, 27
        %s183 = scalar_select %p182, %s181, 27
        %s184 = smul.addr %s183, 4
        %s185 = scalar_lea.vmem %s0, %s184
        %s186 = smul.u32 14, %s11
      $region36: #{repvggnet_forward.7} parent=31 // pred_fallthru
        _
    $region32: #{repvggnet_forward.7} parent=5 // pred_fallthru
      _
    %p187 = scmp.le.s32.totalorder 1, %s11
    %p188 = scmp.lt.s32.totalorder %s11, 3
    %p189 = pnand %p187, %p188
    %p190 = pneg %p189
    // Predicated region
    $region37: #{repvggnet_forward.7} parent=5 // pred_check
      _
    $region38: #{repvggnet_forward.7} parent=5 // pred_check_branch
      %192 = sbr.rel (%p189) target = $region40
    $region39: #{repvggnet_forward.7} parent=5 // pred_region
      %s193 = ssub.s32 %s11, 1
      %s194 = smul.u32 14, %s16
      %p195 = scmp.lt.s32.totalorder %s194, 27
      %s196 = scalar_select %p195, %s194, 27
      %s197 = smul.addr %s196, 4
      %s198 = scalar_lea.vmem %s0, %s197
      %p199 = pneg %p37
      %p200 = pneg %p34
      %p201 = pneg %p58
      %p202 = pneg %p55
      %p203 = pneg %p79
      %p204 = pneg %p76
      %p205 = pneg %p100
      %p206 = pneg %p97
      %p207 = pneg %p121
      %p208 = pneg %p118
      %p209 = pneg %p147
      %p210 = pneg %p144
      %s211 = smul.u32 14, %s16
      %p212 = scmp.lt.s32.totalorder %s211, 27
      %s213 = scalar_select %p212, %s211, 27
      %s214 = smul.addr %s213, 4
      %s215 = scalar_lea.vmem %s5, %s214
      %s216 = smul.u32 14, %s16
      %p217 = scmp.lt.s32.totalorder %s216, 27
      %s218 = scalar_select %p217, %s216, 27
      %s219 = smul.addr %s218, 4
      %s220 = scalar_lea.vmem %s0, %s219
      %s221 = smul.u32 14, %s16
      %s222 = smul.u32 14, %s16
      %p223 = scmp.lt.s32.totalorder %s222, 27
      %s224 = scalar_select %p223, %s222, 27
      %s225 = smul.addr %s224, 4
      %s226 = scalar_lea.vmem %s5, %s225
      %s227 = smul.u32 14, %s16
      %v229 = vld [vmem:[%s220] sm:$0xf]
      %v230 = vld [vmem:[%s220 + $0x4] sm:$0xf]
      %v231 = vld [vmem:[%s220 + $0x8] sm:$0xf]
      %v232 = vld [vmem:[%s220 + $0xc] sm:$0xf]
      %v233 = vld [vmem:[%s220 + $0x10] sm:$0xf]
      %v234 = vld [vmem:[%s220 + $0x14] sm:$0xf]
      %v235 = vld [vmem:[%s220 + $0x18] sm:$0xf]
      %v236 = vld [vmem:[%s220 + $0x1c] sm:$0xf]
      %v237 = vld [vmem:[%s220 + $0x20] sm:$0xf]
      %v238 = vld [vmem:[%s220 + $0x24] sm:$0xf]
      %v239 = vld [vmem:[%s220 + $0x28] sm:$0xf]
      %v240 = vld [vmem:[%s220 + $0x2c] sm:$0xf]
      %v241 = vld [vmem:[%s220 + $0x30] sm:$0xf]
      %v242 = vld [vmem:[%s220 + $0x34] sm:$0xf]
      %v243 = vld [vmem:[%s1] sm:$0xf]
      %v244 = vld [vmem:[%s1 + $0x4] sm:$0xf]
      %v245 = vld [vmem:[%s1 + $0x8] sm:$0xf]
      %v246 = vld [vmem:[%s1 + $0xc] sm:$0xf]
      %v247 = vld [vmem:[%s1 + $0x10] sm:$0xf]
      %v248 = vld [vmem:[%s1 + $0x14] sm:$0xf]
      %v249 = vld [vmem:[%s1 + $0x18] sm:$0xf]
      %v250 = vld [vmem:[%s1 + $0x1c] sm:$0xf]
      %v251 = vld [vmem:[%s1 + $0x20] sm:$0xf]
      %v252 = vld [vmem:[%s2] sm:$0x1]
      %v254 = vlaneseq
      %v255 = vshrl.u32 %v254, 7
      %v256 = vsub.s32 0, %v255
      %v257 = vrot.slane %v252, %v256
      %v273 = vunpack.c.l.b16 %v229
      %v274 = vunpack.c.l.b16 %v230
      %v275 = vunpack.c.l.b16 %v231
      %v276 = vunpack.c.l.b16 %v232
      %v277 = vunpack.c.l.b16 %v233
      %v278 = vunpack.c.l.b16 %v234
      %v279 = vunpack.c.l.b16 %v235
      %v280 = vunpack.c.l.b16 %v236
      %v281 = vunpack.c.l.b16 %v237
      %v282 = vunpack.c.l.b16 %v238
      %v283 = vunpack.c.l.b16 %v239
      %v284 = vunpack.c.l.b16 %v240
      %v285 = vunpack.c.l.b16 %v241
      %v286 = vunpack.c.l.b16 %v242
      %v287 = vpack.c.b16 %v274, %v273
      %v288 = vpack.c.b16 %v276, %v275
      %v289 = vpack.c.b16 %v278, %v277
      %v290 = vpack.c.b16 %v280, %v279
      %v291 = vpack.c.b16 %v282, %v281
      %v292 = vpack.c.b16 %v284, %v283
      %v293 = vpack.c.b16 %v286, %v285
      %v303 = vunpack.c.l.b16 %v243
      %v304 = vunpack.c.l.b16 %v244
      %v305 = vunpack.c.l.b16 %v245
      %v306 = vunpack.c.l.b16 %v246
      %v307 = vunpack.c.l.b16 %v247
      %v308 = vunpack.c.l.b16 %v248
      %v309 = vunpack.c.l.b16 %v249
      %v310 = vunpack.c.l.b16 %v250
      %v311 = vunpack.c.l.b16 %v251
      %v312 = vpack.c.b16 %v304, %v303
      %v313 = vpack.c.b16 %v306, %v305
      %v314 = vpack.c.b16 %v308, %v307
      %v315 = vpack.c.b16 %v310, %v309
      %v316 = vpack.c.b16 %v311, %v311
      %vm321 = vcmask 588800
      %v323 = vsel %vm321, %v287, 0
      %v326 = vsel %vm321, %v288, 0
      %v329 = vsel %vm321, %v289, 0
      %v332 = vsel %vm321, %v290, 0
      %v335 = vsel %vm321, %v291, 0
      %v338 = vsel %vm321, %v292, 0
      %v341 = vsel %vm321, %v293, 0
      %vm343 = vcmask 1043456
      %v345 = vsel %vm343, %v316, 0
      %347 = vmatprep.subr.bf16.mxu0 0
      %348 = vmatpush1.bf16.msra.mxu0 %v312
      %349 = vmatprep.subr.bf16.mxu0 0
      %350 = vmatpush1.bf16.msra.mxu0 %v313
      %351 = vmatprep.subr.bf16.mxu0 0
      %352 = vmatpush1.bf16.msra.mxu0 %v314
      %353 = vmatprep.subr.bf16.mxu0 0
      %354 = vmatpush1.bf16.msra.mxu0 %v315
      %355 = vmatprep.subr.bf16.mxu0 0
      %356 = vmatpush1.bf16.msra.mxu0 %v345
      %357 = vmatprep.subr.bf16.mxu0 0
      %358 = vmatpush1.bf16.msra.mxu0 0
      %359 = vmatprep.subr.bf16.mxu0 0
      %360 = vmatpush1.bf16.msra.mxu0 0
      %361 = vmatprep.subr.bf16.mxu0 0
      %362 = vmatpush1.bf16.msra.mxu0 0
      %363 = vmatprep.subr.bf16.mxu0 0
      %364 = vmatpush1.bf16.msra.mxu0 0
      %365 = vmatprep.subr.bf16.mxu0 0
      %366 = vmatpush1.bf16.msra.mxu0 0
      %367 = vmatprep.subr.bf16.mxu0 0
      %368 = vmatpush1.bf16.msra.mxu0 0
      %369 = vmatprep.subr.bf16.mxu0 0
      %370 = vmatpush1.bf16.msra.mxu0 0
      %371 = vmatprep.subr.bf16.mxu0 0
      %372 = vmatpush1.bf16.msra.mxu0 0
      %373 = vmatprep.subr.bf16.mxu0 0
      %374 = vmatpush1.bf16.msra.mxu0 0
      %375 = vmatprep.subr.bf16.mxu0 0
      %376 = vmatpush1.bf16.msra.mxu0 0
      %377 = vmatprep.subr.bf16.mxu0 0
      %378 = vmatpush1.bf16.msra.mxu0 0
      %379 = vmatprep.mubr.bf16.mxu0 0
      %380 = vmatmul.mubr.bf16.gmra.mrb[0].mxu0 %v323
      %v381 = vpop.f32.mrb[0].mxu0
      %v382 = vadd.f32 %v257, %v381
      %v383 = vpop.f32.mrb[0].mxu0
      %v384 = vpop.f32.mrb[0].mxu0
      %v385 = vadd.f32 %v257, %v384
      %v386 = vpop.f32.mrb[0].mxu0
      %387 = vmatprep.mubr.bf16.mxu0 0
      %388 = vmatmul.mubr.bf16.gmra.mrb[0].mxu0 %v326
      %v389 = vpop.f32.mrb[0].mxu0
      %v390 = vadd.f32 %v257, %v389
      %v391 = vpop.f32.mrb[0].mxu0
      %v392 = vpop.f32.mrb[0].mxu0
      %v393 = vadd.f32 %v257, %v392
      %v394 = vpop.f32.mrb[0].mxu0
      %395 = vmatprep.mubr.bf16.mxu0 0
      %396 = vmatmul.mubr.bf16.gmra.mrb[0].mxu0 %v329
      %v397 = vpop.f32.mrb[0].mxu0
      %v398 = vadd.f32 %v257, %v397
      %v399 = vpop.f32.mrb[0].mxu0
      %v400 = vpop.f32.mrb[0].mxu0
      %v401 = vadd.f32 %v257, %v400
      %v402 = vpop.f32.mrb[0].mxu0
      %403 = vmatprep.mubr.bf16.mxu0 0
      %404 = vmatmul.mubr.bf16.gmra.mrb[0].mxu0 %v332
      %v405 = vpop.f32.mrb[0].mxu0
      %v406 = vadd.f32 %v257, %v405
      %v407 = vpop.f32.mrb[0].mxu0
      %v408 = vpop.f32.mrb[0].mxu0
      %v409 = vadd.f32 %v257, %v408
      %v410 = vpop.f32.mrb[0].mxu0
      %411 = vmatprep.mubr.bf16.mxu0 0
      %412 = vmatmul.mubr.bf16.gmra.mrb[0].mxu0 %v335
      %v413 = vpop.f32.mrb[0].mxu0
      %v414 = vadd.f32 %v257, %v413
      %v415 = vpop.f32.mrb[0].mxu0
      %v416 = vpop.f32.mrb[0].mxu0
      %v417 = vadd.f32 %v257, %v416
      %v418 = vpop.f32.mrb[0].mxu0
      %419 = vmatprep.mubr.bf16.mxu0 0
      %420 = vmatmul.mubr.bf16.gmra.mrb[0].mxu0 %v338
      %v421 = vpop.f32.mrb[0].mxu0
      %v422 = vadd.f32 %v257, %v421
      %v423 = vpop.f32.mrb[0].mxu0
      %v424 = vpop.f32.mrb[0].mxu0
      %v425 = vadd.f32 %v257, %v424
      %v426 = vpop.f32.mrb[0].mxu0
      %427 = vmatprep.mubr.bf16.mxu0 0
      %428 = vmatmul.mubr.bf16.gmra.mrb[0].mxu0 %v341
      %v429 = vpop.f32.mrb[0].mxu0
      %v430 = vadd.f32 %v257, %v429
      %v431 = vpop.f32.mrb[0].mxu0
      %v432 = vpop.f32.mrb[0].mxu0
      %v433 = vadd.f32 %v257, %v432
      %v434 = vpop.f32.mrb[0].mxu0
      %435 = vdwg.mxu0
      %v436 = vmax.f32 %v382, 0.0
      %v437 = vmax.f32 %v385, 0.0
      %v438 = vmax.f32 %v390, 0.0
      %v439 = vmax.f32 %v393, 0.0
      %v440 = vmax.f32 %v398, 0.0
      %v441 = vmax.f32 %v401, 0.0
      %v442 = vmax.f32 %v406, 0.0
      %v443 = vmax.f32 %v409, 0.0
      %v444 = vmax.f32 %v414, 0.0
      %v445 = vmax.f32 %v417, 0.0
      %v446 = vmax.f32 %v422, 0.0
      %v447 = vmax.f32 %v425, 0.0
      %v448 = vmax.f32 %v430, 0.0
      %v449 = vmax.f32 %v433, 0.0
      %v450 = vpack.c.bf16 %v437, %v436
      %v451 = vpack.c.bf16 %v439, %v438
      %v452 = vpack.c.bf16 %v441, %v440
      %v453 = vpack.c.bf16 %v443, %v442
      %v454 = vpack.c.bf16 %v445, %v444
      %v455 = vpack.c.bf16 %v447, %v446
      %v456 = vpack.c.bf16 %v449, %v448
      %v457 = vld [vmem:[%s3] sm:$0xf]
      %v458 = vld [vmem:[%s4] sm:$0x1]
      %v460 = vlaneseq
      %v461 = vshrl.u32 %v460, 7
      %v462 = vsub.s32 0, %v461
      %v463 = vrot.slane %v458, %v462
      %vm465 = vcmask 64512
      %v467 = vsel %vm465, %v450, 0
      %v470 = vsel %vm465, %v451, 0
      %v473 = vsel %vm465, %v452, 0
      %v476 = vsel %vm465, %v453, 0
      %v479 = vsel %vm465, %v454, 0
      %v482 = vsel %vm465, %v455, 0
      %v485 = vsel %vm465, %v456, 0
      %v488 = vsel %vm343, %v457, 0
      %490 = vmatprep.subr.bf16.mxu0 0
      %491 = vmatpush1.bf16.msra.mxu0 %v488
      %492 = vmatprep.subr.bf16.mxu0 0
      %493 = vmatpush1.bf16.msra.mxu0 0
      %494 = vmatprep.subr.bf16.mxu0 0
      %495 = vmatpush1.bf16.msra.mxu0 0
      %496 = vmatprep.subr.bf16.mxu0 0
      %497 = vmatpush1.bf16.msra.mxu0 0
      %498 = vmatprep.subr.bf16.mxu0 0
      %499 = vmatpush1.bf16.msra.mxu0 0
      %500 = vmatprep.subr.bf16.mxu0 0
      %501 = vmatpush1.bf16.msra.mxu0 0
      %502 = vmatprep.subr.bf16.mxu0 0
      %503 = vmatpush1.bf16.msra.mxu0 0
      %504 = vmatprep.subr.bf16.mxu0 0
      %505 = vmatpush1.bf16.msra.mxu0 0
      %506 = vmatprep.subr.bf16.mxu0 0
      %507 = vmatpush1.bf16.msra.mxu0 0
      %508 = vmatprep.subr.bf16.mxu0 0
      %509 = vmatpush1.bf16.msra.mxu0 0
      %510 = vmatprep.subr.bf16.mxu0 0
      %511 = vmatpush1.bf16.msra.mxu0 0
      %512 = vmatprep.subr.bf16.mxu0 0
      %513 = vmatpush1.bf16.msra.mxu0 0
      %514 = vmatprep.subr.bf16.mxu0 0
      %515 = vmatpush1.bf16.msra.mxu0 0
      %516 = vmatprep.subr.bf16.mxu0 0
      %517 = vmatpush1.bf16.msra.mxu0 0
      %518 = vmatprep.subr.bf16.mxu0 0
      %519 = vmatpush1.bf16.msra.mxu0 0
      %520 = vmatprep.subr.bf16.mxu0 0
      %521 = vmatpush1.bf16.msra.mxu0 0
      %522 = vmatprep.mubr.bf16.mxu0 0
      %523 = vmatmul.mubr.bf16.gmra.mrb[0].mxu0 %v467
      %v524 = vpop.f32.mrb[0].mxu0
      %v525 = vadd.f32 %v463, %v524
      %v526 = vpop.f32.mrb[0].mxu0
      %v527 = vpop.f32.mrb[0].mxu0
      %v528 = vadd.f32 %v463, %v527
      %v529 = vpop.f32.mrb[0].mxu0
      %530 = vmatprep.mubr.bf16.mxu0 0
      %531 = vmatmul.mubr.bf16.gmra.mrb[0].mxu0 %v470
      %v532 = vpop.f32.mrb[0].mxu0
      %v533 = vadd.f32 %v463, %v532
      %v534 = vpop.f32.mrb[0].mxu0
      %v535 = vpop.f32.mrb[0].mxu0
      %v536 = vadd.f32 %v463, %v535
      %v537 = vpop.f32.mrb[0].mxu0
      %538 = vmatprep.mubr.bf16.mxu0 0
      %539 = vmatmul.mubr.bf16.gmra.mrb[0].mxu0 %v473
      %v540 = vpop.f32.mrb[0].mxu0
      %v541 = vadd.f32 %v463, %v540
      %v542 = vpop.f32.mrb[0].mxu0
      %v543 = vpop.f32.mrb[0].mxu0
      %v544 = vadd.f32 %v463, %v543
      %v545 = vpop.f32.mrb[0].mxu0
      %546 = vmatprep.mubr.bf16.mxu0 0
      %547 = vmatmul.mubr.bf16.gmra.mrb[0].mxu0 %v476
      %v548 = vpop.f32.mrb[0].mxu0
      %v549 = vadd.f32 %v463, %v548
      %v550 = vpop.f32.mrb[0].mxu0
      %v551 = vpop.f32.mrb[0].mxu0
      %v552 = vadd.f32 %v463, %v551
      %v553 = vpop.f32.mrb[0].mxu0
      %554 = vmatprep.mubr.bf16.mxu0 0
      %555 = vmatmul.mubr.bf16.gmra.mrb[0].mxu0 %v479
      %v556 = vpop.f32.mrb[0].mxu0
      %v557 = vadd.f32 %v463, %v556
      %v558 = vpop.f32.mrb[0].mxu0
      %v559 = vpop.f32.mrb[0].mxu0
      %v560 = vadd.f32 %v463, %v559
      %v561 = vpop.f32.mrb[0].mxu0
      %562 = vmatprep.mubr.bf16.mxu0 0
      %563 = vmatmul.mubr.bf16.gmra.mrb[0].mxu0 %v482
      %v564 = vpop.f32.mrb[0].mxu0
      %v565 = vadd.f32 %v463, %v564
      %v566 = vpop.f32.mrb[0].mxu0
      %v567 = vpop.f32.mrb[0].mxu0
      %v568 = vadd.f32 %v463, %v567
      %v569 = vpop.f32.mrb[0].mxu0
      %570 = vmatprep.mubr.bf16.mxu0 0
      %571 = vmatmul.mubr.bf16.gmra.mrb[0].mxu0 %v485
      %v572 = vpop.f32.mrb[0].mxu0
      %v573 = vadd.f32 %v463, %v572
      %v574 = vpop.f32.mrb[0].mxu0
      %v575 = vpop.f32.mrb[0].mxu0
      %v576 = vadd.f32 %v463, %v575
      %v577 = vpop.f32.mrb[0].mxu0
      %578 = vdwg.mxu0
      %v579 = vmax.f32 %v525, 0.0
      %v580 = vmax.f32 %v528, 0.0
      %v581 = vmax.f32 %v533, 0.0
      %v582 = vmax.f32 %v536, 0.0
      %v583 = vmax.f32 %v541, 0.0
      %v584 = vmax.f32 %v544, 0.0
      %v585 = vmax.f32 %v549, 0.0
      %v586 = vmax.f32 %v552, 0.0
      %v587 = vmax.f32 %v557, 0.0
      %v588 = vmax.f32 %v560, 0.0
      %v589 = vmax.f32 %v565, 0.0
      %v590 = vmax.f32 %v568, 0.0
      %v591 = vmax.f32 %v573, 0.0
      %v592 = vmax.f32 %v576, 0.0
      %v593 = vpack.c.bf16 %v580, %v579
      %v594 = vpack.c.bf16 %v582, %v581
      %v595 = vpack.c.bf16 %v584, %v583
      %v596 = vpack.c.bf16 %v586, %v585
      %v597 = vpack.c.bf16 %v588, %v587
      %v598 = vpack.c.bf16 %v590, %v589
      %v599 = vpack.c.bf16 %v592, %v591
      %v607 = vunpack.c.l.b16 %v593
      %v608 = vunpack.c.h.b16 %v593
      %v609 = vunpack.c.l.b16 %v594
      %v610 = vunpack.c.h.b16 %v594
      %v611 = vunpack.c.l.b16 %v595
      %v612 = vunpack.c.h.b16 %v595
      %v613 = vunpack.c.l.b16 %v596
      %v614 = vunpack.c.h.b16 %v596
      %v615 = vunpack.c.l.b16 %v597
      %v616 = vunpack.c.h.b16 %v597
      %v617 = vunpack.c.l.b16 %v598
      %v618 = vunpack.c.h.b16 %v598
      %v619 = vunpack.c.l.b16 %v599
      %v620 = vunpack.c.h.b16 %v599
      %v621 = vpack.c.b16 %v607, %v607
      %v622 = vpack.c.b16 %v608, %v608
      %v623 = vpack.c.b16 %v609, %v609
      %v624 = vpack.c.b16 %v610, %v610
      %v625 = vpack.c.b16 %v611, %v611
      %v626 = vpack.c.b16 %v612, %v612
      %v627 = vpack.c.b16 %v613, %v613
      %v628 = vpack.c.b16 %v614, %v614
      %v629 = vpack.c.b16 %v615, %v615
      %v630 = vpack.c.b16 %v616, %v616
      %v631 = vpack.c.b16 %v617, %v617
      %v632 = vpack.c.b16 %v618, %v618
      %v633 = vpack.c.b16 %v619, %v619
      %v634 = vpack.c.b16 %v620, %v620
      %vm649 = vcmask 60416
      %650 = vst.msk [vmem:[%s226] sm:$0xf] %vm649, %v621
      %651 = vst.msk [vmem:[%s226 + $0x4] sm:$0xf] %vm649, %v622
      %652 = vst.msk [vmem:[%s226 + $0x8] sm:$0xf] %vm649, %v623
      %653 = vst.msk [vmem:[%s226 + $0xc] sm:$0xf] %vm649, %v624
      %654 = vst.msk [vmem:[%s226 + $0x10] sm:$0xf] %vm649, %v625
      %655 = vst.msk [vmem:[%s226 + $0x14] sm:$0xf] %vm649, %v626
      %656 = vst.msk [vmem:[%s226 + $0x18] sm:$0xf] %vm649, %v627
      %657 = vst.msk [vmem:[%s226 + $0x1c] sm:$0xf] %vm649, %v628
      %658 = vst.msk [vmem:[%s226 + $0x20] sm:$0xf] %vm649, %v629
      %659 = vst.msk [vmem:[%s226 + $0x24] sm:$0xf] %vm649, %v630
      %660 = vst.msk [vmem:[%s226 + $0x28] sm:$0xf] %vm649, %v631
      %661 = vst.msk [vmem:[%s226 + $0x2c] sm:$0xf] %vm649, %v632
      %662 = vst.msk [vmem:[%s226 + $0x30] sm:$0xf] %vm649, %v633
      %663 = vst.msk [vmem:[%s226 + $0x34] sm:$0xf] %vm649, %v634
      %s664 = smul.u32 14, %s16
      %p665 = scmp.lt.s32.totalorder %s664, 27
      %s666 = scalar_select %p665, %s664, 27
      %s667 = smul.addr %s666, 4
      %s668 = scalar_lea.vmem %s5, %s667
      // Predicated region
      $region41: #{repvggnet_forward.7} parent=39 // pred_check
        %p669 = pneg %p144
      $region42: #{repvggnet_forward.7} parent=39 // pred_check_branch
        %671 = sbr.rel (%p669) target = $region44
      $region43: #{repvggnet_forward.7} parent=39 // pred_region
        %s672 = smul.u32 14, %s16
      $region44: #{repvggnet_forward.7} parent=39 // pred_fallthru
        _
    $region40: #{repvggnet_forward.7} parent=5 // pred_fallthru
      _
    %p673 = scmp.le.s32.totalorder 2, %s11
    // Predicated region
    $region45: #{repvggnet_forward.7} parent=5 // pred_check
      %p674 = pneg %p673
    $region46: #{repvggnet_forward.7} parent=5 // pred_check_branch
      %676 = sbr.rel (%p674) target = $region48
    $region47: #{repvggnet_forward.7} parent=5 // pred_region
      %s677 = ssub.s32 %s11, 2
      // Predicated region
      $region49: #{repvggnet_forward.7} parent=47 // pred_check
        %p678 = pneg %p150
      $region50: #{repvggnet_forward.7} parent=47 // pred_check_branch
        %680 = sbr.rel (%p678) target = $region52
      $region51: #{repvggnet_forward.7} parent=47 // pred_region
        %s681 = smul.u32 14, %s17
        %p682 = scmp.lt.s32.totalorder %s681, 27
        %s683 = scalar_select %p682, %s681, 27
        %s684 = smul.addr %s683, 4
        %s685 = scalar_lea.vmem %s5, %s684
      $region52: #{repvggnet_forward.7} parent=47 // pred_fallthru
        _
    $region48: #{repvggnet_forward.7} parent=5 // pred_fallthru
      _
  $region6: #{repvggnet_forward.7} parent=0 // loop_footer
    %s15 = sadd.s32 1, %s11
  $region7: #{repvggnet_forward.7} parent=0 // loop_footer_branch
    %10 = sbr.rel target = $region3
  $region8: #{repvggnet_forward.7} parent=0 // loop_exit
    _

// kernel: repvggnet_forward.9
$region0: #{repvggnet_forward.9}
  #allocation0 [shape = 'u32[]', space=smem, size = 0x4, offset = 0x4, fixed_abs, tag = 'smem constant byte address 0x4 - core index']
  #allocation1 [shape = 'u32[144,128]{1,0:T(1,128)}', space=vmem, size = 0x12000, scoped, tag = 'internal scratch']
  %s0 = inlined_call_operand.vmem [shape: bf16[64,72], index: 0, kind: input, shape index: {}]
  %s1 = inlined_call_operand.vmem [shape: bf16[72,16], index: 1, kind: input, shape index: {}]
  %s2 = inlined_call_operand.vmem [shape: f32[1,16], index: 2, kind: input, shape index: {}]
  %s3 = inlined_call_operand.vmem [shape: bf16[16,16], index: 3, kind: input, shape index: {}]
  %s4 = inlined_call_operand.vmem [shape: f32[1,16], index: 4, kind: input, shape index: {}]
  %s5 = inlined_call_operand.vmem [shape: bf16[64,16], index: 5, kind: output, shape index: {}]
  %s6 = sld [smem:[#allocation0]]
  $region53: #{repvggnet_forward.9} parent=0
    _
  %s8 = ssub.s32 1, %s6
  %s9 = scalar_select 0, %s8, %s6
  loop: start=0, step=1, limit=4
  $region2: #{repvggnet_forward.9} parent=0 // loop_pre_header
    _
  $region3: #{repvggnet_forward.9} parent=0 // loop_header
    %s11 = sphi 0, %s15
    %p12 = scmp.ge.s32.totalorder %s11, 4
    %s21 = sphi 0, %s23
    %s24 = sphi 0, %s21
    %s25 = sphi 0, %s24
    %s41 = sphi 0, %s25
    %s45 = sphi 0, %s45
    %s47 = sphi 0, %s45
    %s48 = sphi 0, %s47
    %s62 = sphi 0, %s48
    %s66 = sphi 0, %s66
    %s68 = sphi 0, %s66
    %s69 = sphi 0, %s68
    %s83 = sphi 0, %s69
    %s87 = sphi 0, %s87
    %s89 = sphi 0, %s87
    %s90 = sphi 0, %s89
    %s104 = sphi 0, %s90
    %s108 = sphi 0, %s108
    %s110 = sphi 0, %s108
    %s111 = sphi 0, %s110
    %s125 = sphi 0, %s111
    %s131 = sphi 0, %s133
    %s134 = sphi 0, %s131
    %s135 = sphi 0, %s134
    %s151 = sphi 0, %s135
  $region4: #{repvggnet_forward.9} parent=0 // loop_header_branch
    %14 = sbr.rel (%p12) target = $region8
  $region5: #{repvggnet_forward.9} parent=0 // loop_body
    %s16 = ssub.s32 %s11, 1
    %s17 = ssub.s32 %s11, 2
    %s18 = sadd.s32 %s11, 1
    %s19 = ssub.s32 %s11, %s18
    %p20 = scmp.eq.s32.totalorder %s19, 0
    %s22 = sadd.s32 %s21, 1
    %s23 = scalar_select %p20, %s21, %s22
    %p26 = pneg %p20
    %p27 = scmp.eq.s32.totalorder %s11, 1
    %p28 = por %p26, %p27
    %p29 = scmp.ne.s32.totalorder %s21, %s24
    %p30 = scmp.eq.s32.totalorder %s11, 0
    %p31 = por %p29, %p30
    %p32 = scmp.ne.s32.totalorder %s21, %s24
    %p33 = scmp.eq.s32.totalorder %s16, 1
    %p34 = por %p32, %p33
    %p35 = scmp.ne.s32.totalorder %s24, %s25
    %p36 = scmp.eq.s32.totalorder %s16, 0
    %p37 = por %p35, %p36
    %p38 = scmp.ne.s32.totalorder %s24, %s25
    %p39 = scmp.eq.s32.totalorder %s17, 1
    %p40 = por %p38, %p39
    %p42 = scmp.ne.s32.totalorder %s25, %s41
    %p43 = scmp.eq.s32.totalorder %s17, 0
    %p44 = por %p42, %p43
    %s46 = sadd.s32 %s45, 1
    %p49 = scmp.eq.s32.totalorder %s11, 1
    %p50 = scmp.ne.s32.totalorder %s45, %s47
    %p51 = scmp.eq.s32.totalorder %s11, 0
    %p52 = por %p50, %p51
    %p53 = scmp.ne.s32.totalorder %s45, %s47
    %p54 = scmp.eq.s32.totalorder %s16, 1
    %p55 = por %p53, %p54
    %p56 = scmp.ne.s32.totalorder %s47, %s48
    %p57 = scmp.eq.s32.totalorder %s16, 0
    %p58 = por %p56, %p57
    %p59 = scmp.ne.s32.totalorder %s47, %s48
    %p60 = scmp.eq.s32.totalorder %s17, 1
    %p61 = por %p59, %p60
    %p63 = scmp.ne.s32.totalorder %s48, %s62
    %p64 = scmp.eq.s32.totalorder %s17, 0
    %p65 = por %p63, %p64
    %s67 = sadd.s32 %s66, 1
    %p70 = scmp.eq.s32.totalorder %s11, 1
    %p71 = scmp.ne.s32.totalorder %s66, %s68
    %p72 = scmp.eq.s32.totalorder %s11, 0
    %p73 = por %p71, %p72
    %p74 = scmp.ne.s32.totalorder %s66, %s68
    %p75 = scmp.eq.s32.totalorder %s16, 1
    %p76 = por %p74, %p75
    %p77 = scmp.ne.s32.totalorder %s68, %s69
    %p78 = scmp.eq.s32.totalorder %s16, 0
    %p79 = por %p77, %p78
    %p80 = scmp.ne.s32.totalorder %s68, %s69
    %p81 = scmp.eq.s32.totalorder %s17, 1
    %p82 = por %p80, %p81
    %p84 = scmp.ne.s32.totalorder %s69, %s83
    %p85 = scmp.eq.s32.totalorder %s17, 0
    %p86 = por %p84, %p85
    %s88 = sadd.s32 %s87, 1
    %p91 = scmp.eq.s32.totalorder %s11, 1
    %p92 = scmp.ne.s32.totalorder %s87, %s89
    %p93 = scmp.eq.s32.totalorder %s11, 0
    %p94 = por %p92, %p93
    %p95 = scmp.ne.s32.totalorder %s87, %s89
    %p96 = scmp.eq.s32.totalorder %s16, 1
    %p97 = por %p95, %p96
    %p98 = scmp.ne.s32.totalorder %s89, %s90
    %p99 = scmp.eq.s32.totalorder %s16, 0
    %p100 = por %p98, %p99
    %p101 = scmp.ne.s32.totalorder %s89, %s90
    %p102 = scmp.eq.s32.totalorder %s17, 1
    %p103 = por %p101, %p102
    %p105 = scmp.ne.s32.totalorder %s90, %s104
    %p106 = scmp.eq.s32.totalorder %s17, 0
    %p107 = por %p105, %p106
    %s109 = sadd.s32 %s108, 1
    %p112 = scmp.eq.s32.totalorder %s11, 1
    %p113 = scmp.ne.s32.totalorder %s108, %s110
    %p114 = scmp.eq.s32.totalorder %s11, 0
    %p115 = por %p113, %p114
    %p116 = scmp.ne.s32.totalorder %s108, %s110
    %p117 = scmp.eq.s32.totalorder %s16, 1
    %p118 = por %p116, %p117
    %p119 = scmp.ne.s32.totalorder %s110, %s111
    %p120 = scmp.eq.s32.totalorder %s16, 0
    %p121 = por %p119, %p120
    %p122 = scmp.ne.s32.totalorder %s110, %s111
    %p123 = scmp.eq.s32.totalorder %s17, 1
    %p124 = por %p122, %p123
    %p126 = scmp.ne.s32.totalorder %s111, %s125
    %p127 = scmp.eq.s32.totalorder %s17, 0
    %p128 = por %p126, %p127
    %s129 = ssub.s32 %s11, %s18
    %p130 = scmp.eq.s32.totalorder %s129, 0
    %s132 = sadd.s32 %s131, 1
    %s133 = scalar_select %p130, %s131, %s132
    %p136 = pneg %p130
    %p137 = scmp.eq.s32.totalorder %s11, 1
    %p138 = por %p136, %p137
    %p139 = scmp.ne.s32.totalorder %s131, %s134
    %p140 = scmp.eq.s32.totalorder %s11, 0
    %p141 = por %p139, %p140
    %p142 = scmp.ne.s32.totalorder %s131, %s134
    %p143 = scmp.eq.s32.totalorder %s16, 1
    %p144 = por %p142, %p143
    %p145 = scmp.ne.s32.totalorder %s134, %s135
    %p146 = scmp.eq.s32.totalorder %s16, 0
    %p147 = por %p145, %p146
    %p148 = scmp.ne.s32.totalorder %s134, %s135
    %p149 = scmp.eq.s32.totalorder %s17, 1
    %p150 = por %p148, %p149
    %p152 = scmp.ne.s32.totalorder %s135, %s151
    %p153 = scmp.eq.s32.totalorder %s17, 0
    %p154 = por %p152, %p153
    %p155 = scmp.le.s32.totalorder 1, %s11
    %p156 = scmp.lt.s32.totalorder %s11, 3
    %p157 = pnand %p155, %p156
    %p158 = pneg %p157
    // Predicated region
    $region9: #{repvggnet_forward.9} parent=5 // pred_check
      _
    $region10: #{repvggnet_forward.9} parent=5 // pred_check_branch
      %160 = sbr.rel (%p157) target = $region12
    $region11: #{repvggnet_forward.9} parent=5 // pred_region
      %s161 = ssub.s32 %s11, 1
      // Predicated region
      $region13: #{repvggnet_forward.9} parent=11 // pred_check
        %p162 = pneg %p58
      $region14: #{repvggnet_forward.9} parent=11 // pred_check_branch
        %164 = sbr.rel (%p162) target = $region16
      $region15: #{repvggnet_forward.9} parent=11 // pred_region
        _
      $region16: #{repvggnet_forward.9} parent=11 // pred_fallthru
        _
      // Predicated region
      $region17: #{repvggnet_forward.9} parent=11 // pred_check
        %p165 = pneg %p79
      $region18: #{repvggnet_forward.9} parent=11 // pred_check_branch
        %167 = sbr.rel (%p165) target = $region20
      $region19: #{repvggnet_forward.9} parent=11 // pred_region
        _
      $region20: #{repvggnet_forward.9} parent=11 // pred_fallthru
        _
      // Predicated region
      $region21: #{repvggnet_forward.9} parent=11 // pred_check
        %p168 = pneg %p100
      $region22: #{repvggnet_forward.9} parent=11 // pred_check_branch
        %170 = sbr.rel (%p168) target = $region24
      $region23: #{repvggnet_forward.9} parent=11 // pred_region
        _
      $region24: #{repvggnet_forward.9} parent=11 // pred_fallthru
        _
      // Predicated region
      $region25: #{repvggnet_forward.9} parent=11 // pred_check
        %p171 = pneg %p121
      $region26: #{repvggnet_forward.9} parent=11 // pred_check_branch
        %173 = sbr.rel (%p171) target = $region28
      $region27: #{repvggnet_forward.9} parent=11 // pred_region
        _
      $region28: #{repvggnet_forward.9} parent=11 // pred_fallthru
        _
    $region12: #{repvggnet_forward.9} parent=5 // pred_fallthru
      _
    %p174 = scmp.lt.s32.totalorder %s11, 2
    // Predicated region
    $region29: #{repvggnet_forward.9} parent=5 // pred_check
      %p175 = pneg %p174
    $region30: #{repvggnet_forward.9} parent=5 // pred_check_branch
      %177 = sbr.rel (%p175) target = $region32
    $region31: #{repvggnet_forward.9} parent=5 // pred_region
      // Predicated region
      $region33: #{repvggnet_forward.9} parent=31 // pred_check
        %p178 = pneg %p31
      $region34: #{repvggnet_forward.9} parent=31 // pred_check_branch
        %180 = sbr.rel (%p178) target = $region36
      $region35: #{repvggnet_forward.9} parent=31 // pred_region
        %s181 = smul.u32 4, %s11
        %p182 = scmp.lt.s32.totalorder %s181, 7
        %s183 = scalar_select %p182, %s181, 7
        %s184 = smul.addr %s183, 4
        %s185 = scalar_lea.vmem %s0, %s184
        %s186 = smul.u32 4, %s11
      $region36: #{repvggnet_forward.9} parent=31 // pred_fallthru
        _
    $region32: #{repvggnet_forward.9} parent=5 // pred_fallthru
      _
    %p187 = scmp.le.s32.totalorder 1, %s11
    %p188 = scmp.lt.s32.totalorder %s11, 3
    %p189 = pnand %p187, %p188
    %p190 = pneg %p189
    // Predicated region
    $region37: #{repvggnet_forward.9} parent=5 // pred_check
      _
    $region38: #{repvggnet_forward.9} parent=5 // pred_check_branch
      %192 = sbr.rel (%p189) target = $region40
    $region39: #{repvggnet_forward.9} parent=5 // pred_region
      %s193 = ssub.s32 %s11, 1
      %s194 = smul.u32 4, %s16
      %p195 = scmp.lt.s32.totalorder %s194, 7
      %s196 = scalar_select %p195, %s194, 7
      %s197 = smul.addr %s196, 4
      %s198 = scalar_lea.vmem %s0, %s197
      %p199 = pneg %p37
      %p200 = pneg %p34
      %p201 = pneg %p58
      %p202 = pneg %p55
      %p203 = pneg %p79
      %p204 = pneg %p76
      %p205 = pneg %p100
      %p206 = pneg %p97
      %p207 = pneg %p121
      %p208 = pneg %p118
      %p209 = pneg %p147
      %p210 = pneg %p144
      %s211 = smul.u32 4, %s16
      %p212 = scmp.lt.s32.totalorder %s211, 7
      %s213 = scalar_select %p212, %s211, 7
      %s214 = smul.addr %s213, 4
      %s215 = scalar_lea.vmem %s5, %s214
      %s216 = smul.u32 4, %s16
      %p217 = scmp.lt.s32.totalorder %s216, 7
      %s218 = scalar_select %p217, %s216, 7
      %s219 = smul.addr %s218, 4
      %s220 = scalar_lea.vmem %s0, %s219
      %s221 = smul.u32 4, %s16
      %s222 = smul.u32 4, %s16
      %p223 = scmp.lt.s32.totalorder %s222, 7
      %s224 = scalar_select %p223, %s222, 7
      %s225 = smul.addr %s224, 4
      %s226 = scalar_lea.vmem %s5, %s225
      %s227 = smul.u32 4, %s16
      %v229 = vld [vmem:[%s220] sm:$0xf]
      %v230 = vld [vmem:[%s220 + $0x4] sm:$0xf]
      %v231 = vld [vmem:[%s220 + $0x8] sm:$0xf]
      %v232 = vld [vmem:[%s220 + $0xc] sm:$0xf]
      %v233 = vld [vmem:[%s1] sm:$0xf]
      %v234 = vld [vmem:[%s1 + $0x4] sm:$0xf]
      %v235 = vld [vmem:[%s1 + $0x8] sm:$0xf]
      %v236 = vld [vmem:[%s1 + $0xc] sm:$0xf]
      %v237 = vld [vmem:[%s1 + $0x10] sm:$0xf]
      %v238 = vld [vmem:[%s1 + $0x14] sm:$0xf]
      %v239 = vld [vmem:[%s1 + $0x18] sm:$0xf]
      %v240 = vld [vmem:[%s1 + $0x1c] sm:$0xf]
      %v241 = vld [vmem:[%s1 + $0x20] sm:$0xf]
      %v242 = vld [vmem:[%s2] sm:$0x1]
      %v244 = vlaneseq
      %v245 = vshrl.u32 %v244, 7
      %v246 = vsub.s32 0, %v245
      %v247 = vrot.slane %v242, %v246
      %v253 = vunpack.c.l.b16 %v229
      %v254 = vunpack.c.l.b16 %v230
      %v255 = vunpack.c.l.b16 %v231
      %v256 = vunpack.c.l.b16 %v232
      %v257 = vpack.c.b16 %v254, %v253
      %v258 = vpack.c.b16 %v256, %v255
      %v268 = vunpack.c.l.b16 %v233
      %v269 = vunpack.c.l.b16 %v234
      %v270 = vunpack.c.l.b16 %v235
      %v271 = vunpack.c.l.b16 %v236
      %v272 = vunpack.c.l.b16 %v237
      %v273 = vunpack.c.l.b16 %v238
      %v274 = vunpack.c.l.b16 %v239
      %v275 = vunpack.c.l.b16 %v240
      %v276 = vunpack.c.l.b16 %v241
      %v277 = vpack.c.b16 %v269, %v268
      %v278 = vpack.c.b16 %v271, %v270
      %v279 = vpack.c.b16 %v273, %v272
      %v280 = vpack.c.b16 %v275, %v274
      %v281 = vpack.c.b16 %v276, %v276
      %vm286 = vcmask 588800
      %v288 = vsel %vm286, %v257, 0
      %v291 = vsel %vm286, %v258, 0
      %vm293 = vcmask 1043456
      %v295 = vsel %vm293, %v281, 0
      %297 = vmatprep.subr.bf16.mxu0 0
      %298 = vmatpush1.bf16.msra.mxu0 %v277
      %299 = vmatprep.subr.bf16.mxu0 0
      %300 = vmatpush1.bf16.msra.mxu0 %v278
      %301 = vmatprep.subr.bf16.mxu0 0
      %302 = vmatpush1.bf16.msra.mxu0 %v279
      %303 = vmatprep.subr.bf16.mxu0 0
      %304 = vmatpush1.bf16.msra.mxu0 %v280
      %305 = vmatprep.subr.bf16.mxu0 0
      %306 = vmatpush1.bf16.msra.mxu0 %v295
      %307 = vmatprep.subr.bf16.mxu0 0
      %308 = vmatpush1.bf16.msra.mxu0 0
      %309 = vmatprep.subr.bf16.mxu0 0
      %310 = vmatpush1.bf16.msra.mxu0 0
      %311 = vmatprep.subr.bf16.mxu0 0
      %312 = vmatpush1.bf16.msra.mxu0 0
      %313 = vmatprep.subr.bf16.mxu0 0
      %314 = vmatpush1.bf16.msra.mxu0 0
      %315 = vmatprep.subr.bf16.mxu0 0
      %316 = vmatpush1.bf16.msra.mxu0 0
      %317 = vmatprep.subr.bf16.mxu0 0
      %318 = vmatpush1.bf16.msra.mxu0 0
      %319 = vmatprep.subr.bf16.mxu0 0
      %320 = vmatpush1.bf16.msra.mxu0 0
      %321 = vmatprep.subr.bf16.mxu0 0
      %322 = vmatpush1.bf16.msra.mxu0 0
      %323 = vmatprep.subr.bf16.mxu0 0
      %324 = vmatpush1.bf16.msra.mxu0 0
      %325 = vmatprep.subr.bf16.mxu0 0
      %326 = vmatpush1.bf16.msra.mxu0 0
      %327 = vmatprep.subr.bf16.mxu0 0
      %328 = vmatpush1.bf16.msra.mxu0 0
      %329 = vmatprep.mubr.bf16.mxu0 0
      %330 = vmatmul.mubr.bf16.gmra.mrb[0].mxu0 %v288
      %v331 = vpop.f32.mrb[0].mxu0
      %v332 = vadd.f32 %v247, %v331
      %v333 = vpop.f32.mrb[0].mxu0
      %v334 = vpop.f32.mrb[0].mxu0
      %v335 = vadd.f32 %v247, %v334
      %v336 = vpop.f32.mrb[0].mxu0
      %337 = vmatprep.mubr.bf16.mxu0 0
      %338 = vmatmul.mubr.bf16.gmra.mrb[0].mxu0 %v291
      %v339 = vpop.f32.mrb[0].mxu0
      %v340 = vadd.f32 %v247, %v339
      %v341 = vpop.f32.mrb[0].mxu0
      %v342 = vpop.f32.mrb[0].mxu0
      %v343 = vadd.f32 %v247, %v342
      %v344 = vpop.f32.mrb[0].mxu0
      %345 = vdwg.mxu0
      %v346 = vmax.f32 %v332, 0.0
      %v347 = vmax.f32 %v335, 0.0
      %v348 = vmax.f32 %v340, 0.0
      %v349 = vmax.f32 %v343, 0.0
      %v350 = vpack.c.bf16 %v347, %v346
      %v351 = vpack.c.bf16 %v349, %v348
      %v352 = vld [vmem:[%s3] sm:$0xf]
      %v353 = vld [vmem:[%s3 + $0x4] sm:$0xf]
      %v354 = vld [vmem:[%s4] sm:$0x1]
      %v356 = vlaneseq
      %v357 = vshrl.u32 %v356, 7
      %v358 = vsub.s32 0, %v357
      %v359 = vrot.slane %v354, %v358
      %v363 = vunpack.c.l.b16 %v352
      %v364 = vunpack.c.l.b16 %v353
      %v365 = vpack.c.b16 %v364, %v363
      %vm367 = vcmask 130048
      %v369 = vsel %vm367, %v350, 0
      %v372 = vsel %vm367, %v351, 0
      %374 = vmatprep.subr.bf16.mxu0 0
      %375 = vmatpush1.bf16.msra.mxu0 %v365
      %376 = vmatprep.subr.bf16.mxu0 0
      %377 = vmatpush1.bf16.msra.mxu0 0
      %378 = vmatprep.subr.bf16.mxu0 0
      %379 = vmatpush1.bf16.msra.mxu0 0
      %380 = vmatprep.subr.bf16.mxu0 0
      %381 = vmatpush1.bf16.msra.mxu0 0
      %382 = vmatprep.subr.bf16.mxu0 0
      %383 = vmatpush1.bf16.msra.mxu0 0
      %384 = vmatprep.subr.bf16.mxu0 0
      %385 = vmatpush1.bf16.msra.mxu0 0
      %386 = vmatprep.subr.bf16.mxu0 0
      %387 = vmatpush1.bf16.msra.mxu0 0
      %388 = vmatprep.subr.bf16.mxu0 0
      %389 = vmatpush1.bf16.msra.mxu0 0
      %390 = vmatprep.subr.bf16.mxu0 0
      %391 = vmatpush1.bf16.msra.mxu0 0
      %392 = vmatprep.subr.bf16.mxu0 0
      %393 = vmatpush1.bf16.msra.mxu0 0
      %394 = vmatprep.subr.bf16.mxu0 0
      %395 = vmatpush1.bf16.msra.mxu0 0
      %396 = vmatprep.subr.bf16.mxu0 0
      %397 = vmatpush1.bf16.msra.mxu0 0
      %398 = vmatprep.subr.bf16.mxu0 0
      %399 = vmatpush1.bf16.msra.mxu0 0
      %400 = vmatprep.subr.bf16.mxu0 0
      %401 = vmatpush1.bf16.msra.mxu0 0
      %402 = vmatprep.subr.bf16.mxu0 0
      %403 = vmatpush1.bf16.msra.mxu0 0
      %404 = vmatprep.subr.bf16.mxu0 0
      %405 = vmatpush1.bf16.msra.mxu0 0
      %406 = vmatprep.mubr.bf16.mxu0 0
      %407 = vmatmul.mubr.bf16.gmra.mrb[0].mxu0 %v369
      %v408 = vpop.f32.mrb[0].mxu0
      %v409 = vadd.f32 %v359, %v408
      %v410 = vpop.f32.mrb[0].mxu0
      %v411 = vpop.f32.mrb[0].mxu0
      %v412 = vadd.f32 %v359, %v411
      %v413 = vpop.f32.mrb[0].mxu0
      %414 = vmatprep.mubr.bf16.mxu0 0
      %415 = vmatmul.mubr.bf16.gmra.mrb[0].mxu0 %v372
      %v416 = vpop.f32.mrb[0].mxu0
      %v417 = vadd.f32 %v359, %v416
      %v418 = vpop.f32.mrb[0].mxu0
      %v419 = vpop.f32.mrb[0].mxu0
      %v420 = vadd.f32 %v359, %v419
      %v421 = vpop.f32.mrb[0].mxu0
      %422 = vdwg.mxu0
      %v423 = vmax.f32 %v409, 0.0
      %v424 = vmax.f32 %v412, 0.0
      %v425 = vmax.f32 %v417, 0.0
      %v426 = vmax.f32 %v420, 0.0
      %v427 = vpack.c.bf16 %v424, %v423
      %v428 = vpack.c.bf16 %v426, %v425
      %v431 = vunpack.c.l.b16 %v427
      %v432 = vunpack.c.h.b16 %v427
      %v433 = vunpack.c.l.b16 %v428
      %v434 = vunpack.c.h.b16 %v428
      %v435 = vpack.c.b16 %v431, %v431
      %v436 = vpack.c.b16 %v432, %v432
      %v437 = vpack.c.b16 %v433, %v433
      %v438 = vpack.c.b16 %v434, %v434
      %vm443 = vcmask 125952
      %444 = vst.msk [vmem:[%s226] sm:$0xf] %vm443, %v435
      %445 = vst.msk [vmem:[%s226 + $0x4] sm:$0xf] %vm443, %v436
      %446 = vst.msk [vmem:[%s226 + $0x8] sm:$0xf] %vm443, %v437
      %447 = vst.msk [vmem:[%s226 + $0xc] sm:$0xf] %vm443, %v438
      %s448 = smul.u32 4, %s16
      %p449 = scmp.lt.s32.totalorder %s448, 7
      %s450 = scalar_select %p449, %s448, 7
      %s451 = smul.addr %s450, 4
      %s452 = scalar_lea.vmem %s5, %s451
      // Predicated region
      $region41: #{repvggnet_forward.9} parent=39 // pred_check
        %p453 = pneg %p144
      $region42: #{repvggnet_forward.9} parent=39 // pred_check_branch
        %455 = sbr.rel (%p453) target = $region44
      $region43: #{repvggnet_forward.9} parent=39 // pred_region
        %s456 = smul.u32 4, %s16
      $region44: #{repvggnet_forward.9} parent=39 // pred_fallthru
        _
    $region40: #{repvggnet_forward.9} parent=5 // pred_fallthru
      _
    %p457 = scmp.le.s32.totalorder 2, %s11
    // Predicated region
    $region45: #{repvggnet_forward.9} parent=5 // pred_check
      %p458 = pneg %p457
    $region46: #{repvggnet_forward.9} parent=5 // pred_check_branch
      %460 = sbr.rel (%p458) target = $region48
    $region47: #{repvggnet_forward.9} parent=5 // pred_region
      %s461 = ssub.s32 %s11, 2
      // Predicated region
      $region49: #{repvggnet_forward.9} parent=47 // pred_check
        %p462 = pneg %p150
      $region50: #{repvggnet_forward.9} parent=47 // pred_check_branch
        %464 = sbr.rel (%p462) target = $region52
      $region51: #{repvggnet_forward.9} parent=47 // pred_region
        %s465 = smul.u32 4, %s17
        %p466 = scmp.lt.s32.totalorder %s465, 7
        %s467 = scalar_select %p466, %s465, 7
        %s468 = smul.addr %s467, 4
        %s469 = scalar_lea.vmem %s5, %s468
      $region52: #{repvggnet_forward.9} parent=47 // pred_fallthru
        _
    $region48: #{repvggnet_forward.9} parent=5 // pred_fallthru
      _
  $region6: #{repvggnet_forward.9} parent=0 // loop_footer
    %s15 = sadd.s32 1, %s11
  $region7: #{repvggnet_forward.9} parent=0 // loop_footer_branch
    %10 = sbr.rel target = $region3
  $region8: #{repvggnet_forward.9} parent=0 // loop_exit
    _

// kernel: repvggnet_forward.10
$region0: #{repvggnet_forward.10}
  #allocation0 [shape = 'u32[]', space=smem, size = 0x4, offset = 0x4, fixed_abs, tag = 'smem constant byte address 0x4 - core index']
  #allocation1 [shape = 'u32[144,128]{1,0:T(1,128)}', space=vmem, size = 0x12000, scoped, tag = 'internal scratch']
  %s0 = inlined_call_operand.vmem [shape: bf16[64,16], index: 0, kind: input, shape index: {}]
  %s1 = inlined_call_operand.vmem [shape: bf16[16,16], index: 1, kind: input, shape index: {}]
  %s2 = inlined_call_operand.vmem [shape: f32[1,16], index: 2, kind: input, shape index: {}]
  %s3 = inlined_call_operand.vmem [shape: bf16[64,16], index: 3, kind: output, shape index: {}]
  %s4 = sld [smem:[#allocation0]]
  $region45: #{repvggnet_forward.10} parent=0
    _
  %s6 = ssub.s32 1, %s4
  %s7 = scalar_select 0, %s6, %s4
  loop: start=0, step=1, limit=4
  $region2: #{repvggnet_forward.10} parent=0 // loop_pre_header
    _
  $region3: #{repvggnet_forward.10} parent=0 // loop_header
    %s9 = sphi 0, %s13
    %p10 = scmp.ge.s32.totalorder %s9, 4
    %s19 = sphi 0, %s21
    %s22 = sphi 0, %s19
    %s23 = sphi 0, %s22
    %s39 = sphi 0, %s23
    %s43 = sphi 0, %s43
    %s45 = sphi 0, %s43
    %s46 = sphi 0, %s45
    %s60 = sphi 0, %s46
    %s64 = sphi 0, %s64
    %s66 = sphi 0, %s64
    %s67 = sphi 0, %s66
    %s81 = sphi 0, %s67
    %s87 = sphi 0, %s89
    %s90 = sphi 0, %s87
    %s91 = sphi 0, %s90
    %s107 = sphi 0, %s91
  $region4: #{repvggnet_forward.10} parent=0 // loop_header_branch
    %12 = sbr.rel (%p10) target = $region8
  $region5: #{repvggnet_forward.10} parent=0 // loop_body
    %s14 = ssub.s32 %s9, 1
    %s15 = ssub.s32 %s9, 2
    %s16 = sadd.s32 %s9, 1
    %s17 = ssub.s32 %s9, %s16
    %p18 = scmp.eq.s32.totalorder %s17, 0
    %s20 = sadd.s32 %s19, 1
    %s21 = scalar_select %p18, %s19, %s20
    %p24 = pneg %p18
    %p25 = scmp.eq.s32.totalorder %s9, 1
    %p26 = por %p24, %p25
    %p27 = scmp.ne.s32.totalorder %s19, %s22
    %p28 = scmp.eq.s32.totalorder %s9, 0
    %p29 = por %p27, %p28
    %p30 = scmp.ne.s32.totalorder %s19, %s22
    %p31 = scmp.eq.s32.totalorder %s14, 1
    %p32 = por %p30, %p31
    %p33 = scmp.ne.s32.totalorder %s22, %s23
    %p34 = scmp.eq.s32.totalorder %s14, 0
    %p35 = por %p33, %p34
    %p36 = scmp.ne.s32.totalorder %s22, %s23
    %p37 = scmp.eq.s32.totalorder %s15, 1
    %p38 = por %p36, %p37
    %p40 = scmp.ne.s32.totalorder %s23, %s39
    %p41 = scmp.eq.s32.totalorder %s15, 0
    %p42 = por %p40, %p41
    %s44 = sadd.s32 %s43, 1
    %p47 = scmp.eq.s32.totalorder %s9, 1
    %p48 = scmp.ne.s32.totalorder %s43, %s45
    %p49 = scmp.eq.s32.totalorder %s9, 0
    %p50 = por %p48, %p49
    %p51 = scmp.ne.s32.totalorder %s43, %s45
    %p52 = scmp.eq.s32.totalorder %s14, 1
    %p53 = por %p51, %p52
    %p54 = scmp.ne.s32.totalorder %s45, %s46
    %p55 = scmp.eq.s32.totalorder %s14, 0
    %p56 = por %p54, %p55
    %p57 = scmp.ne.s32.totalorder %s45, %s46
    %p58 = scmp.eq.s32.totalorder %s15, 1
    %p59 = por %p57, %p58
    %p61 = scmp.ne.s32.totalorder %s46, %s60
    %p62 = scmp.eq.s32.totalorder %s15, 0
    %p63 = por %p61, %p62
    %s65 = sadd.s32 %s64, 1
    %p68 = scmp.eq.s32.totalorder %s9, 1
    %p69 = scmp.ne.s32.totalorder %s64, %s66
    %p70 = scmp.eq.s32.totalorder %s9, 0
    %p71 = por %p69, %p70
    %p72 = scmp.ne.s32.totalorder %s64, %s66
    %p73 = scmp.eq.s32.totalorder %s14, 1
    %p74 = por %p72, %p73
    %p75 = scmp.ne.s32.totalorder %s66, %s67
    %p76 = scmp.eq.s32.totalorder %s14, 0
    %p77 = por %p75, %p76
    %p78 = scmp.ne.s32.totalorder %s66, %s67
    %p79 = scmp.eq.s32.totalorder %s15, 1
    %p80 = por %p78, %p79
    %p82 = scmp.ne.s32.totalorder %s67, %s81
    %p83 = scmp.eq.s32.totalorder %s15, 0
    %p84 = por %p82, %p83
    %s85 = ssub.s32 %s9, %s16
    %p86 = scmp.eq.s32.totalorder %s85, 0
    %s88 = sadd.s32 %s87, 1
    %s89 = scalar_select %p86, %s87, %s88
    %p92 = pneg %p86
    %p93 = scmp.eq.s32.totalorder %s9, 1
    %p94 = por %p92, %p93
    %p95 = scmp.ne.s32.totalorder %s87, %s90
    %p96 = scmp.eq.s32.totalorder %s9, 0
    %p97 = por %p95, %p96
    %p98 = scmp.ne.s32.totalorder %s87, %s90
    %p99 = scmp.eq.s32.totalorder %s14, 1
    %p100 = por %p98, %p99
    %p101 = scmp.ne.s32.totalorder %s90, %s91
    %p102 = scmp.eq.s32.totalorder %s14, 0
    %p103 = por %p101, %p102
    %p104 = scmp.ne.s32.totalorder %s90, %s91
    %p105 = scmp.eq.s32.totalorder %s15, 1
    %p106 = por %p104, %p105
    %p108 = scmp.ne.s32.totalorder %s91, %s107
    %p109 = scmp.eq.s32.totalorder %s15, 0
    %p110 = por %p108, %p109
    %p111 = scmp.le.s32.totalorder 1, %s9
    %p112 = scmp.lt.s32.totalorder %s9, 3
    %p113 = pnand %p111, %p112
    %p114 = pneg %p113
    // Predicated region
    $region9: #{repvggnet_forward.10} parent=5 // pred_check
      _
    $region10: #{repvggnet_forward.10} parent=5 // pred_check_branch
      %116 = sbr.rel (%p113) target = $region12
    $region11: #{repvggnet_forward.10} parent=5 // pred_region
      %s117 = ssub.s32 %s9, 1
      // Predicated region
      $region13: #{repvggnet_forward.10} parent=11 // pred_check
        %p118 = pneg %p56
      $region14: #{repvggnet_forward.10} parent=11 // pred_check_branch
        %120 = sbr.rel (%p118) target = $region16
      $region15: #{repvggnet_forward.10} parent=11 // pred_region
        _
      $region16: #{repvggnet_forward.10} parent=11 // pred_fallthru
        _
      // Predicated region
      $region17: #{repvggnet_forward.10} parent=11 // pred_check
        %p121 = pneg %p77
      $region18: #{repvggnet_forward.10} parent=11 // pred_check_branch
        %123 = sbr.rel (%p121) target = $region20
      $region19: #{repvggnet_forward.10} parent=11 // pred_region
        _
      $region20: #{repvggnet_forward.10} parent=11 // pred_fallthru
        _
    $region12: #{repvggnet_forward.10} parent=5 // pred_fallthru
      _
    %p124 = scmp.lt.s32.totalorder %s9, 2
    // Predicated region
    $region21: #{repvggnet_forward.10} parent=5 // pred_check
      %p125 = pneg %p124
    $region22: #{repvggnet_forward.10} parent=5 // pred_check_branch
      %127 = sbr.rel (%p125) target = $region24
    $region23: #{repvggnet_forward.10} parent=5 // pred_region
      // Predicated region
      $region25: #{repvggnet_forward.10} parent=23 // pred_check
        %p128 = pneg %p29
      $region26: #{repvggnet_forward.10} parent=23 // pred_check_branch
        %130 = sbr.rel (%p128) target = $region28
      $region27: #{repvggnet_forward.10} parent=23 // pred_region
        %s131 = smul.u32 4, %s9
        %p132 = scmp.lt.s32.totalorder %s131, 7
        %s133 = scalar_select %p132, %s131, 7
        %s134 = smul.addr %s133, 4
        %s135 = scalar_lea.vmem %s0, %s134
        %s136 = smul.u32 4, %s9
      $region28: #{repvggnet_forward.10} parent=23 // pred_fallthru
        _
    $region24: #{repvggnet_forward.10} parent=5 // pred_fallthru
      _
    %p137 = scmp.le.s32.totalorder 1, %s9
    %p138 = scmp.lt.s32.totalorder %s9, 3
    %p139 = pnand %p137, %p138
    %p140 = pneg %p139
    // Predicated region
    $region29: #{repvggnet_forward.10} parent=5 // pred_check
      _
    $region30: #{repvggnet_forward.10} parent=5 // pred_check_branch
      %142 = sbr.rel (%p139) target = $region32
    $region31: #{repvggnet_forward.10} parent=5 // pred_region
      %s143 = ssub.s32 %s9, 1
      %s144 = smul.u32 4, %s14
      %p145 = scmp.lt.s32.totalorder %s144, 7
      %s146 = scalar_select %p145, %s144, 7
      %s147 = smul.addr %s146, 4
      %s148 = scalar_lea.vmem %s0, %s147
      %p149 = pneg %p35
      %p150 = pneg %p32
      %p151 = pneg %p56
      %p152 = pneg %p53
      %p153 = pneg %p77
      %p154 = pneg %p74
      %p155 = pneg %p103
      %p156 = pneg %p100
      %s157 = smul.u32 4, %s14
      %p158 = scmp.lt.s32.totalorder %s157, 7
      %s159 = scalar_select %p158, %s157, 7
      %s160 = smul.addr %s159, 4
      %s161 = scalar_lea.vmem %s3, %s160
      %s162 = smul.u32 4, %s14
      %p163 = scmp.lt.s32.totalorder %s162, 7
      %s164 = scalar_select %p163, %s162, 7
      %s165 = smul.addr %s164, 4
      %s166 = scalar_lea.vmem %s0, %s165
      %s167 = smul.u32 4, %s14
      %s168 = smul.u32 4, %s14
      %p169 = scmp.lt.s32.totalorder %s168, 7
      %s170 = scalar_select %p169, %s168, 7
      %s171 = smul.addr %s170, 4
      %s172 = scalar_lea.vmem %s3, %s171
      %s173 = smul.u32 4, %s14
      %v175 = vld [vmem:[%s166] sm:$0xf]
      %v176 = vld [vmem:[%s166 + $0x4] sm:$0xf]
      %v177 = vld [vmem:[%s166 + $0x8] sm:$0xf]
      %v178 = vld [vmem:[%s166 + $0xc] sm:$0xf]
      %v179 = vld [vmem:[%s1] sm:$0xf]
      %v180 = vld [vmem:[%s1 + $0x4] sm:$0xf]
      %v181 = vld [vmem:[%s2] sm:$0x1]
      %v183 = vlaneseq
      %v184 = vshrl.u32 %v183, 7
      %v185 = vsub.s32 0, %v184
      %v186 = vrot.slane %v181, %v185
      %v192 = vunpack.c.l.b16 %v175
      %v193 = vunpack.c.l.b16 %v176
      %v194 = vunpack.c.l.b16 %v177
      %v195 = vunpack.c.l.b16 %v178
      %v196 = vpack.c.b16 %v193, %v192
      %v197 = vpack.c.b16 %v195, %v194
      %v200 = vunpack.c.l.b16 %v179
      %v201 = vunpack.c.l.b16 %v180
      %v202 = vpack.c.b16 %v201, %v200
      %vm204 = vcmask 130048
      %v206 = vsel %vm204, %v196, 0
      %v209 = vsel %vm204, %v197, 0
      %211 = vmatprep.subr.bf16.mxu0 0
      %212 = vmatpush1.bf16.msra.mxu0 %v202
      %213 = vmatprep.subr.bf16.mxu0 0
      %214 = vmatpush1.bf16.msra.mxu0 0
      %215 = vmatprep.subr.bf16.mxu0 0
      %216 = vmatpush1.bf16.msra.mxu0 0
      %217 = vmatprep.subr.bf16.mxu0 0
      %218 = vmatpush1.bf16.msra.mxu0 0
      %219 = vmatprep.subr.bf16.mxu0 0
      %220 = vmatpush1.bf16.msra.mxu0 0
      %221 = vmatprep.subr.bf16.mxu0 0
      %222 = vmatpush1.bf16.msra.mxu0 0
      %223 = vmatprep.subr.bf16.mxu0 0
      %224 = vmatpush1.bf16.msra.mxu0 0
      %225 = vmatprep.subr.bf16.mxu0 0
      %226 = vmatpush1.bf16.msra.mxu0 0
      %227 = vmatprep.subr.bf16.mxu0 0
      %228 = vmatpush1.bf16.msra.mxu0 0
      %229 = vmatprep.subr.bf16.mxu0 0
      %230 = vmatpush1.bf16.msra.mxu0 0
      %231 = vmatprep.subr.bf16.mxu0 0
      %232 = vmatpush1.bf16.msra.mxu0 0
      %233 = vmatprep.subr.bf16.mxu0 0
      %234 = vmatpush1.bf16.msra.mxu0 0
      %235 = vmatprep.subr.bf16.mxu0 0
      %236 = vmatpush1.bf16.msra.mxu0 0
      %237 = vmatprep.subr.bf16.mxu0 0
      %238 = vmatpush1.bf16.msra.mxu0 0
      %239 = vmatprep.subr.bf16.mxu0 0
      %240 = vmatpush1.bf16.msra.mxu0 0
      %241 = vmatprep.subr.bf16.mxu0 0
      %242 = vmatpush1.bf16.msra.mxu0 0
      %243 = vmatprep.mubr.bf16.mxu0 0
      %244 = vmatmul.mubr.bf16.gmra.mrb[0].mxu0 %v206
      %v245 = vpop.f32.mrb[0].mxu0
      %v246 = vadd.f32 %v186, %v245
      %v247 = vpop.f32.mrb[0].mxu0
      %v248 = vpop.f32.mrb[0].mxu0
      %v249 = vadd.f32 %v186, %v248
      %v250 = vpop.f32.mrb[0].mxu0
      %251 = vmatprep.mubr.bf16.mxu0 0
      %252 = vmatmul.mubr.bf16.gmra.mrb[0].mxu0 %v209
      %v253 = vpop.f32.mrb[0].mxu0
      %v254 = vadd.f32 %v186, %v253
      %v255 = vpop.f32.mrb[0].mxu0
      %v256 = vpop.f32.mrb[0].mxu0
      %v257 = vadd.f32 %v186, %v256
      %v258 = vpop.f32.mrb[0].mxu0
      %259 = vdwg.mxu0
      %v260 = vmax.f32 %v246, 0.0
      %v261 = vmax.f32 %v249, 0.0
      %v262 = vmax.f32 %v254, 0.0
      %v263 = vmax.f32 %v257, 0.0
      %v264 = vpack.c.bf16 %v261, %v260
      %v265 = vpack.c.bf16 %v263, %v262
      %v268 = vunpack.c.l.b16 %v264
      %v269 = vunpack.c.h.b16 %v264
      %v270 = vunpack.c.l.b16 %v265
      %v271 = vunpack.c.h.b16 %v265
      %v272 = vpack.c.b16 %v268, %v268
      %v273 = vpack.c.b16 %v269, %v269
      %v274 = vpack.c.b16 %v270, %v270
      %v275 = vpack.c.b16 %v271, %v271
      %vm280 = vcmask 125952
      %281 = vst.msk [vmem:[%s172] sm:$0xf] %vm280, %v272
      %282 = vst.msk [vmem:[%s172 + $0x4] sm:$0xf] %vm280, %v273
      %283 = vst.msk [vmem:[%s172 + $0x8] sm:$0xf] %vm280, %v274
      %284 = vst.msk [vmem:[%s172 + $0xc] sm:$0xf] %vm280, %v275
      %s285 = smul.u32 4, %s14
      %p286 = scmp.lt.s32.totalorder %s285, 7
      %s287 = scalar_select %p286, %s285, 7
      %s288 = smul.addr %s287, 4
      %s289 = scalar_lea.vmem %s3, %s288
      // Predicated region
      $region33: #{repvggnet_forward.10} parent=31 // pred_check
        %p290 = pneg %p100
      $region34: #{repvggnet_forward.10} parent=31 // pred_check_branch
        %292 = sbr.rel (%p290) target = $region36
      $region35: #{repvggnet_forward.10} parent=31 // pred_region
        %s293 = smul.u32 4, %s14
      $region36: #{repvggnet_forward.10} parent=31 // pred_fallthru
        _
    $region32: #{repvggnet_forward.10} parent=5 // pred_fallthru
      _
    %p294 = scmp.le.s32.totalorder 2, %s9
    // Predicated region
    $region37: #{repvggnet_forward.10} parent=5 // pred_check
      %p295 = pneg %p294
    $region38: #{repvggnet_forward.10} parent=5 // pred_check_branch
      %297 = sbr.rel (%p295) target = $region40
    $region39: #{repvggnet_forward.10} parent=5 // pred_region
      %s298 = ssub.s32 %s9, 2
      // Predicated region
      $region41: #{repvggnet_forward.10} parent=39 // pred_check
        %p299 = pneg %p106
      $region42: #{repvggnet_forward.10} parent=39 // pred_check_branch
        %301 = sbr.rel (%p299) target = $region44
      $region43: #{repvggnet_forward.10} parent=39 // pred_region
        %s302 = smul.u32 4, %s15
        %p303 = scmp.lt.s32.totalorder %s302, 7
        %s304 = scalar_select %p303, %s302, 7
        %s305 = smul.addr %s304, 4
        %s306 = scalar_lea.vmem %s3, %s305
      $region44: #{repvggnet_forward.10} parent=39 // pred_fallthru
        _
    $region40: #{repvggnet_forward.10} parent=5 // pred_fallthru
      _
  $region6: #{repvggnet_forward.10} parent=0 // loop_footer
    %s13 = sadd.s32 1, %s9
  $region7: #{repvggnet_forward.10} parent=0 // loop_footer_branch
    %8 = sbr.rel target = $region3
  $region8: #{repvggnet_forward.10} parent=0 // loop_exit
    _

// kernel: repvggnet_forward.11
$region0: #{repvggnet_forward.11}
  #allocation0 [shape = 'u32[]', space=smem, size = 0x4, offset = 0x4, fixed_abs, tag = 'smem constant byte address 0x4 - core index']
  #allocation1 [shape = 'u32[144,128]{1,0:T(1,128)}', space=vmem, size = 0x12000, scoped, tag = 'internal scratch']
  %s0 = inlined_call_operand.vmem [shape: bf16[16,400], index: 0, kind: input, shape index: {}]
  %s1 = inlined_call_operand.vmem [shape: bf16[400,512], index: 1, kind: input, shape index: {}]
  %s2 = inlined_call_operand.vmem [shape: f32[1,512], index: 2, kind: input, shape index: {}]
  %s3 = inlined_call_operand.vmem [shape: bf16[16,512], index: 3, kind: output, shape index: {}]
  %s4 = sld [smem:[#allocation0]]
  $region22: #{repvggnet_forward.11} parent=0
    _
  %s6 = ssub.s32 1, %s4
  %s7 = scalar_select 0, %s6, %s4
  // Predicated region
  $region2: #{repvggnet_forward.11} parent=0 // pred_check
    _
  $region3: #{repvggnet_forward.11} parent=0 // pred_check_branch
    %9 = sbr.rel (0) target = $region5
  $region4: #{repvggnet_forward.11} parent=0 // pred_region
    _
  $region5: #{repvggnet_forward.11} parent=0 // pred_fallthru
    _
  // Predicated region
  $region6: #{repvggnet_forward.11} parent=0 // pred_check
    _
  $region7: #{repvggnet_forward.11} parent=0 // pred_check_branch
    %11 = sbr.rel (0) target = $region9
  $region8: #{repvggnet_forward.11} parent=0 // pred_region
    _
  $region9: #{repvggnet_forward.11} parent=0 // pred_fallthru
    _
  // Predicated region
  $region10: #{repvggnet_forward.11} parent=0 // pred_check
    _
  $region11: #{repvggnet_forward.11} parent=0 // pred_check_branch
    %13 = sbr.rel (0) target = $region13
  $region12: #{repvggnet_forward.11} parent=0 // pred_region
    _
  $region13: #{repvggnet_forward.11} parent=0 // pred_fallthru
    _
  %v15 = vld [vmem:[%s0] sm:$0xff]
  %v16 = vld [vmem:[%s0 + $0x8] sm:$0xff]
  %v17 = vld [vmem:[%s0 + $0x10] sm:$0xff]
  %v18 = vld [vmem:[%s0 + $0x18] sm:$0xff]
  %v19 = vld [vmem:[%s1] sm:$0xff]
  %v20 = vld [vmem:[%s1 + $0x8] sm:$0xff]
  %v21 = vld [vmem:[%s1 + $0x10] sm:$0xff]
  %v22 = vld [vmem:[%s1 + $0x18] sm:$0xff]
  %v23 = vld [vmem:[%s1 + $0x20] sm:$0xff]
  %v24 = vld [vmem:[%s1 + $0x28] sm:$0xff]
  %v25 = vld [vmem:[%s1 + $0x30] sm:$0xff]
  %v26 = vld [vmem:[%s1 + $0x38] sm:$0xff]
  %v27 = vld [vmem:[%s1 + $0x40] sm:$0xff]
  %v28 = vld [vmem:[%s1 + $0x48] sm:$0xff]
  %v29 = vld [vmem:[%s1 + $0x50] sm:$0xff]
  %v30 = vld [vmem:[%s1 + $0x58] sm:$0xff]
  %v31 = vld [vmem:[%s1 + $0x60] sm:$0xff]
  %v32 = vld [vmem:[%s1 + $0x68] sm:$0xff]
  %v33 = vld [vmem:[%s1 + $0x70] sm:$0xff]
  %v34 = vld [vmem:[%s1 + $0x78] sm:$0xff]
  %v35 = vld [vmem:[%s1 + $0x80] sm:$0xff]
  %v36 = vld [vmem:[%s1 + $0x88] sm:$0xff]
  %v37 = vld [vmem:[%s1 + $0x90] sm:$0xff]
  %v38 = vld [vmem:[%s1 + $0x98] sm:$0xff]
  %v39 = vld [vmem:[%s1 + $0xa0] sm:$0xff]
  %v40 = vld [vmem:[%s1 + $0xa8] sm:$0xff]
  %v41 = vld [vmem:[%s1 + $0xb0] sm:$0xff]
  %v42 = vld [vmem:[%s1 + $0xb8] sm:$0xff]
  %v43 = vld [vmem:[%s1 + $0xc0] sm:$0xff]
  %v44 = vld [vmem:[%s1 + $0xc8] sm:$0xff]
  %v45 = vld [vmem:[%s1 + $0xd0] sm:$0xff]
  %v46 = vld [vmem:[%s1 + $0xd8] sm:$0xff]
  %v47 = vld [vmem:[%s1 + $0xe0] sm:$0xff]
  %v48 = vld [vmem:[%s1 + $0xe8] sm:$0xff]
  %v49 = vld [vmem:[%s1 + $0xf0] sm:$0xff]
  %v50 = vld [vmem:[%s1 + $0xf8] sm:$0xff]
  %v51 = vld [vmem:[%s1 + $0x100] sm:$0xff]
  %v52 = vld [vmem:[%s1 + $0x108] sm:$0xff]
  %v53 = vld [vmem:[%s1 + $0x110] sm:$0xff]
  %v54 = vld [vmem:[%s1 + $0x118] sm:$0xff]
  %v55 = vld [vmem:[%s1 + $0x120] sm:$0xff]
  %v56 = vld [vmem:[%s1 + $0x128] sm:$0xff]
  %v57 = vld [vmem:[%s1 + $0x130] sm:$0xff]
  %v58 = vld [vmem:[%s1 + $0x138] sm:$0xff]
  %v59 = vld [vmem:[%s1 + $0x140] sm:$0xff]
  %v60 = vld [vmem:[%s1 + $0x148] sm:$0xff]
  %v61 = vld [vmem:[%s1 + $0x150] sm:$0xff]
  %v62 = vld [vmem:[%s1 + $0x158] sm:$0xff]
  %v63 = vld [vmem:[%s1 + $0x160] sm:$0xff]
  %v64 = vld [vmem:[%s1 + $0x168] sm:$0xff]
  %v65 = vld [vmem:[%s1 + $0x170] sm:$0xff]
  %v66 = vld [vmem:[%s1 + $0x178] sm:$0xff]
  %v67 = vld [vmem:[%s1 + $0x180] sm:$0xff]
  %v68 = vld [vmem:[%s1 + $0x188] sm:$0xff]
  %v69 = vld [vmem:[%s1 + $0x190] sm:$0xff]
  %v70 = vld [vmem:[%s1 + $0x198] sm:$0xff]
  %v71 = vld [vmem:[%s1 + $0x1a0] sm:$0xff]
  %v72 = vld [vmem:[%s1 + $0x1a8] sm:$0xff]
  %v73 = vld [vmem:[%s1 + $0x1b0] sm:$0xff]
  %v74 = vld [vmem:[%s1 + $0x1b8] sm:$0xff]
  %v75 = vld [vmem:[%s1 + $0x1c0] sm:$0xff]
  %v76 = vld [vmem:[%s1 + $0x1c8] sm:$0xff]
  %v77 = vld [vmem:[%s1 + $0x1d0] sm:$0xff]
  %v78 = vld [vmem:[%s1 + $0x1d8] sm:$0xff]
  %v79 = vld [vmem:[%s1 + $0x1e0] sm:$0xff]
  %v80 = vld [vmem:[%s1 + $0x1e8] sm:$0xff]
  %v81 = vld [vmem:[%s1 + $0x1f0] sm:$0xff]
  %v82 = vld [vmem:[%s1 + $0x1f8] sm:$0xff]
  %v83 = vld [vmem:[%s1 + $0x200] sm:$0xff]
  %v84 = vld [vmem:[%s1 + $0x208] sm:$0xff]
  %v85 = vld [vmem:[%s1 + $0x210] sm:$0xff]
  %v86 = vld [vmem:[%s1 + $0x218] sm:$0xff]
  %v87 = vld [vmem:[%s1 + $0x220] sm:$0xff]
  %v88 = vld [vmem:[%s1 + $0x228] sm:$0xff]
  %v89 = vld [vmem:[%s1 + $0x230] sm:$0xff]
  %v90 = vld [vmem:[%s1 + $0x238] sm:$0xff]
  %v91 = vld [vmem:[%s1 + $0x240] sm:$0xff]
  %v92 = vld [vmem:[%s1 + $0x248] sm:$0xff]
  %v93 = vld [vmem:[%s1 + $0x250] sm:$0xff]
  %v94 = vld [vmem:[%s1 + $0x258] sm:$0xff]
  %v95 = vld [vmem:[%s1 + $0x260] sm:$0xff]
  %v96 = vld [vmem:[%s1 + $0x268] sm:$0xff]
  %v97 = vld [vmem:[%s1 + $0x270] sm:$0xff]
  %v98 = vld [vmem:[%s1 + $0x278] sm:$0xff]
  %v99 = vld [vmem:[%s1 + $0x280] sm:$0xff]
  %v100 = vld [vmem:[%s1 + $0x288] sm:$0xff]
  %v101 = vld [vmem:[%s1 + $0x290] sm:$0xff]
  %v102 = vld [vmem:[%s1 + $0x298] sm:$0xff]
  %v103 = vld [vmem:[%s1 + $0x2a0] sm:$0xff]
  %v104 = vld [vmem:[%s1 + $0x2a8] sm:$0xff]
  %v105 = vld [vmem:[%s1 + $0x2b0] sm:$0xff]
  %v106 = vld [vmem:[%s1 + $0x2b8] sm:$0xff]
  %v107 = vld [vmem:[%s1 + $0x2c0] sm:$0xff]
  %v108 = vld [vmem:[%s1 + $0x2c8] sm:$0xff]
  %v109 = vld [vmem:[%s1 + $0x2d0] sm:$0xff]
  %v110 = vld [vmem:[%s1 + $0x2d8] sm:$0xff]
  %v111 = vld [vmem:[%s1 + $0x2e0] sm:$0xff]
  %v112 = vld [vmem:[%s1 + $0x2e8] sm:$0xff]
  %v113 = vld [vmem:[%s1 + $0x2f0] sm:$0xff]
  %v114 = vld [vmem:[%s1 + $0x2f8] sm:$0xff]
  %v115 = vld [vmem:[%s1 + $0x300] sm:$0xff]
  %v116 = vld [vmem:[%s1 + $0x308] sm:$0xff]
  %v117 = vld [vmem:[%s1 + $0x310] sm:$0xff]
  %v118 = vld [vmem:[%s1 + $0x318] sm:$0xff]
  %v119 = vld [vmem:[%s2] sm:$0xf]
  %v121 = vlaneseq
  %v122 = vshrl.u32 %v121, 7
  %v123 = vsub.s32 0, %v122
  %v124 = vrot.slane %v119, %v123
  %v125 = vlaneseq
  %v126 = vshrl.u32 %v125, 7
  %v127 = vsub.s32 1, %v126
  %v128 = vrot.slane %v119, %v127
  %v129 = vlaneseq
  %v130 = vshrl.u32 %v129, 7
  %v131 = vsub.s32 2, %v130
  %v132 = vrot.slane %v119, %v131
  %v133 = vlaneseq
  %v134 = vshrl.u32 %v133, 7
  %v135 = vsub.s32 3, %v134
  %v136 = vrot.slane %v119, %v135
  %v145 = vunpack.c.l.b16 %v15
  %v146 = vunpack.c.h.b16 %v15
  %v147 = vunpack.c.l.b16 %v16
  %v148 = vunpack.c.h.b16 %v16
  %v149 = vunpack.c.l.b16 %v17
  %v150 = vunpack.c.h.b16 %v17
  %v151 = vunpack.c.l.b16 %v18
  %v152 = vunpack.c.h.b16 %v18
  %v153 = vpack.c.b16 %v149, %v145
  %v154 = vpack.c.b16 %v150, %v146
  %v155 = vpack.c.b16 %v151, %v147
  %v156 = vpack.c.b16 %v152, %v148
  %v260 = vunpack.c.l.b16 %v19
  %v261 = vunpack.c.h.b16 %v19
  %v262 = vunpack.c.l.b16 %v20
  %v263 = vunpack.c.h.b16 %v20
  %v264 = vunpack.c.l.b16 %v21
  %v265 = vunpack.c.h.b16 %v21
  %v266 = vunpack.c.l.b16 %v22
  %v267 = vunpack.c.h.b16 %v22
  %v268 = vunpack.c.l.b16 %v23
  %v269 = vunpack.c.h.b16 %v23
  %v270 = vunpack.c.l.b16 %v24
  %v271 = vunpack.c.h.b16 %v24
  %v272 = vunpack.c.l.b16 %v25
  %v273 = vunpack.c.h.b16 %v25
  %v274 = vunpack.c.l.b16 %v26
  %v275 = vunpack.c.h.b16 %v26
  %v276 = vunpack.c.l.b16 %v27
  %v277 = vunpack.c.h.b16 %v27
  %v278 = vunpack.c.l.b16 %v28
  %v279 = vunpack.c.h.b16 %v28
  %v280 = vunpack.c.l.b16 %v29
  %v281 = vunpack.c.h.b16 %v29
  %v282 = vunpack.c.l.b16 %v30
  %v283 = vunpack.c.h.b16 %v30
  %v284 = vunpack.c.l.b16 %v31
  %v285 = vunpack.c.h.b16 %v31
  %v286 = vunpack.c.l.b16 %v32
  %v287 = vunpack.c.h.b16 %v32
  %v288 = vunpack.c.l.b16 %v33
  %v289 = vunpack.c.h.b16 %v33
  %v290 = vunpack.c.l.b16 %v34
  %v291 = vunpack.c.h.b16 %v34
  %v292 = vunpack.c.l.b16 %v35
  %v293 = vunpack.c.h.b16 %v35
  %v294 = vunpack.c.l.b16 %v36
  %v295 = vunpack.c.h.b16 %v36
  %v296 = vunpack.c.l.b16 %v37
  %v297 = vunpack.c.h.b16 %v37
  %v298 = vunpack.c.l.b16 %v38
  %v299 = vunpack.c.h.b16 %v38
  %v300 = vunpack.c.l.b16 %v39
  %v301 = vunpack.c.h.b16 %v39
  %v302 = vunpack.c.l.b16 %v40
  %v303 = vunpack.c.h.b16 %v40
  %v304 = vunpack.c.l.b16 %v41
  %v305 = vunpack.c.h.b16 %v41
  %v306 = vunpack.c.l.b16 %v42
  %v307 = vunpack.c.h.b16 %v42
  %v308 = vunpack.c.l.b16 %v43
  %v309 = vunpack.c.h.b16 %v43
  %v310 = vunpack.c.l.b16 %v44
  %v311 = vunpack.c.h.b16 %v44
  %v312 = vunpack.c.l.b16 %v45
  %v313 = vunpack.c.h.b16 %v45
  %v314 = vunpack.c.l.b16 %v46
  %v315 = vunpack.c.h.b16 %v46
  %v316 = vunpack.c.l.b16 %v47
  %v317 = vunpack.c.h.b16 %v47
  %v318 = vunpack.c.l.b16 %v48
  %v319 = vunpack.c.h.b16 %v48
  %v320 = vunpack.c.l.b16 %v49
  %v321 = vunpack.c.h.b16 %v49
  %v322 = vunpack.c.l.b16 %v50
  %v323 = vunpack.c.h.b16 %v50
  %v324 = vunpack.c.l.b16 %v51
  %v325 = vunpack.c.h.b16 %v51
  %v326 = vunpack.c.l.b16 %v52
  %v327 = vunpack.c.h.b16 %v52
  %v328 = vunpack.c.l.b16 %v53
  %v329 = vunpack.c.h.b16 %v53
  %v330 = vunpack.c.l.b16 %v54
  %v331 = vunpack.c.h.b16 %v54
  %v332 = vunpack.c.l.b16 %v55
  %v333 = vunpack.c.h.b16 %v55
  %v334 = vunpack.c.l.b16 %v56
  %v335 = vunpack.c.h.b16 %v56
  %v336 = vunpack.c.l.b16 %v57
  %v337 = vunpack.c.h.b16 %v57
  %v338 = vunpack.c.l.b16 %v58
  %v339 = vunpack.c.h.b16 %v58
  %v340 = vunpack.c.l.b16 %v59
  %v341 = vunpack.c.h.b16 %v59
  %v342 = vunpack.c.l.b16 %v60
  %v343 = vunpack.c.h.b16 %v60
  %v344 = vunpack.c.l.b16 %v61
  %v345 = vunpack.c.h.b16 %v61
  %v346 = vunpack.c.l.b16 %v62
  %v347 = vunpack.c.h.b16 %v62
  %v348 = vunpack.c.l.b16 %v63
  %v349 = vunpack.c.h.b16 %v63
  %v350 = vunpack.c.l.b16 %v64
  %v351 = vunpack.c.h.b16 %v64
  %v352 = vunpack.c.l.b16 %v65
  %v353 = vunpack.c.h.b16 %v65
  %v354 = vunpack.c.l.b16 %v66
  %v355 = vunpack.c.h.b16 %v66
  %v356 = vunpack.c.l.b16 %v67
  %v357 = vunpack.c.h.b16 %v67
  %v358 = vunpack.c.l.b16 %v68
  %v359 = vunpack.c.h.b16 %v68
  %v360 = vunpack.c.l.b16 %v69
  %v361 = vunpack.c.h.b16 %v69
  %v362 = vunpack.c.l.b16 %v70
  %v363 = vunpack.c.h.b16 %v70
  %v364 = vunpack.c.l.b16 %v71
  %v365 = vunpack.c.h.b16 %v71
  %v366 = vunpack.c.l.b16 %v72
  %v367 = vunpack.c.h.b16 %v72
  %v368 = vunpack.c.l.b16 %v73
  %v369 = vunpack.c.h.b16 %v73
  %v370 = vunpack.c.l.b16 %v74
  %v371 = vunpack.c.h.b16 %v74
  %v372 = vunpack.c.l.b16 %v75
  %v373 = vunpack.c.h.b16 %v75
  %v374 = vunpack.c.l.b16 %v76
  %v375 = vunpack.c.h.b16 %v76
  %v376 = vunpack.c.l.b16 %v77
  %v377 = vunpack.c.h.b16 %v77
  %v378 = vunpack.c.l.b16 %v78
  %v379 = vunpack.c.h.b16 %v78
  %v380 = vunpack.c.l.b16 %v79
  %v381 = vunpack.c.h.b16 %v79
  %v382 = vunpack.c.l.b16 %v80
  %v383 = vunpack.c.h.b16 %v80
  %v384 = vunpack.c.l.b16 %v81
  %v385 = vunpack.c.h.b16 %v81
  %v386 = vunpack.c.l.b16 %v82
  %v387 = vunpack.c.h.b16 %v82
  %v388 = vunpack.c.l.b16 %v83
  %v389 = vunpack.c.h.b16 %v83
  %v390 = vunpack.c.l.b16 %v84
  %v391 = vunpack.c.h.b16 %v84
  %v392 = vunpack.c.l.b16 %v85
  %v393 = vunpack.c.h.b16 %v85
  %v394 = vunpack.c.l.b16 %v86
  %v395 = vunpack.c.h.b16 %v86
  %v396 = vunpack.c.l.b16 %v87
  %v397 = vunpack.c.h.b16 %v87
  %v398 = vunpack.c.l.b16 %v88
  %v399 = vunpack.c.h.b16 %v88
  %v400 = vunpack.c.l.b16 %v89
  %v401 = vunpack.c.h.b16 %v89
  %v402 = vunpack.c.l.b16 %v90
  %v403 = vunpack.c.h.b16 %v90
  %v404 = vunpack.c.l.b16 %v91
  %v405 = vunpack.c.h.b16 %v91
  %v406 = vunpack.c.l.b16 %v92
  %v407 = vunpack.c.h.b16 %v92
  %v408 = vunpack.c.l.b16 %v93
  %v409 = vunpack.c.h.b16 %v93
  %v410 = vunpack.c.l.b16 %v94
  %v411 = vunpack.c.h.b16 %v94
  %v412 = vunpack.c.l.b16 %v95
  %v413 = vunpack.c.h.b16 %v95
  %v414 = vunpack.c.l.b16 %v96
  %v415 = vunpack.c.h.b16 %v96
  %v416 = vunpack.c.l.b16 %v97
  %v417 = vunpack.c.h.b16 %v97
  %v418 = vunpack.c.l.b16 %v98
  %v419 = vunpack.c.h.b16 %v98
  %v420 = vunpack.c.l.b16 %v99
  %v421 = vunpack.c.h.b16 %v99
  %v422 = vunpack.c.l.b16 %v100
  %v423 = vunpack.c.h.b16 %v100
  %v424 = vunpack.c.l.b16 %v101
  %v425 = vunpack.c.h.b16 %v101
  %v426 = vunpack.c.l.b16 %v102
  %v427 = vunpack.c.h.b16 %v102
  %v428 = vunpack.c.l.b16 %v103
  %v429 = vunpack.c.h.b16 %v103
  %v430 = vunpack.c.l.b16 %v104
  %v431 = vunpack.c.h.b16 %v104
  %v432 = vunpack.c.l.b16 %v105
  %v433 = vunpack.c.h.b16 %v105
  %v434 = vunpack.c.l.b16 %v106
  %v435 = vunpack.c.h.b16 %v106
  %v436 = vunpack.c.l.b16 %v107
  %v437 = vunpack.c.h.b16 %v107
  %v438 = vunpack.c.l.b16 %v108
  %v439 = vunpack.c.h.b16 %v108
  %v440 = vunpack.c.l.b16 %v109
  %v441 = vunpack.c.h.b16 %v109
  %v442 = vunpack.c.l.b16 %v110
  %v443 = vunpack.c.h.b16 %v110
  %v444 = vunpack.c.l.b16 %v111
  %v445 = vunpack.c.h.b16 %v111
  %v446 = vunpack.c.l.b16 %v112
  %v447 = vunpack.c.h.b16 %v112
  %v448 = vunpack.c.l.b16 %v113
  %v449 = vunpack.c.h.b16 %v113
  %v450 = vunpack.c.l.b16 %v114
  %v451 = vunpack.c.h.b16 %v114
  %v452 = vunpack.c.l.b16 %v115
  %v453 = vunpack.c.h.b16 %v115
  %v454 = vunpack.c.l.b16 %v116
  %v455 = vunpack.c.h.b16 %v116
  %v456 = vunpack.c.l.b16 %v117
  %v457 = vunpack.c.h.b16 %v117
  %v458 = vunpack.c.l.b16 %v118
  %v459 = vunpack.c.h.b16 %v118
  %v460 = vpack.c.b16 %v264, %v260
  %v461 = vpack.c.b16 %v265, %v261
  %v462 = vpack.c.b16 %v266, %v262
  %v463 = vpack.c.b16 %v267, %v263
  %v464 = vpack.c.b16 %v272, %v268
  %v465 = vpack.c.b16 %v273, %v269
  %v466 = vpack.c.b16 %v274, %v270
  %v467 = vpack.c.b16 %v275, %v271
  %v468 = vpack.c.b16 %v280, %v276
  %v469 = vpack.c.b16 %v281, %v277
  %v470 = vpack.c.b16 %v282, %v278
  %v471 = vpack.c.b16 %v283, %v279
  %v472 = vpack.c.b16 %v288, %v284
  %v473 = vpack.c.b16 %v289, %v285
  %v474 = vpack.c.b16 %v290, %v286
  %v475 = vpack.c.b16 %v291, %v287
  %v476 = vpack.c.b16 %v296, %v292
  %v477 = vpack.c.b16 %v297, %v293
  %v478 = vpack.c.b16 %v298, %v294
  %v479 = vpack.c.b16 %v299, %v295
  %v480 = vpack.c.b16 %v304, %v300
  %v481 = vpack.c.b16 %v305, %v301
  %v482 = vpack.c.b16 %v306, %v302
  %v483 = vpack.c.b16 %v307, %v303
  %v484 = vpack.c.b16 %v312, %v308
  %v485 = vpack.c.b16 %v313, %v309
  %v486 = vpack.c.b16 %v314, %v310
  %v487 = vpack.c.b16 %v315, %v311
  %v488 = vpack.c.b16 %v320, %v316
  %v489 = vpack.c.b16 %v321, %v317
  %v490 = vpack.c.b16 %v322, %v318
  %v491 = vpack.c.b16 %v323, %v319
  %v492 = vpack.c.b16 %v328, %v324
  %v493 = vpack.c.b16 %v329, %v325
  %v494 = vpack.c.b16 %v330, %v326
  %v495 = vpack.c.b16 %v331, %v327
  %v496 = vpack.c.b16 %v336, %v332
  %v497 = vpack.c.b16 %v337, %v333
  %v498 = vpack.c.b16 %v338, %v334
  %v499 = vpack.c.b16 %v339, %v335
  %v500 = vpack.c.b16 %v344, %v340
  %v501 = vpack.c.b16 %v345, %v341
  %v502 = vpack.c.b16 %v346, %v342
  %v503 = vpack.c.b16 %v347, %v343
  %v504 = vpack.c.b16 %v352, %v348
  %v505 = vpack.c.b16 %v353, %v349
  %v506 = vpack.c.b16 %v354, %v350
  %v507 = vpack.c.b16 %v355, %v351
  %v508 = vpack.c.b16 %v360, %v356
  %v509 = vpack.c.b16 %v361, %v357
  %v510 = vpack.c.b16 %v362, %v358
  %v511 = vpack.c.b16 %v363, %v359
  %v512 = vpack.c.b16 %v368, %v364
  %v513 = vpack.c.b16 %v369, %v365
  %v514 = vpack.c.b16 %v370, %v366
  %v515 = vpack.c.b16 %v371, %v367
  %v516 = vpack.c.b16 %v376, %v372
  %v517 = vpack.c.b16 %v377, %v373
  %v518 = vpack.c.b16 %v378, %v374
  %v519 = vpack.c.b16 %v379, %v375
  %v520 = vpack.c.b16 %v384, %v380
  %v521 = vpack.c.b16 %v385, %v381
  %v522 = vpack.c.b16 %v386, %v382
  %v523 = vpack.c.b16 %v387, %v383
  %v524 = vpack.c.b16 %v392, %v388
  %v525 = vpack.c.b16 %v393, %v389
  %v526 = vpack.c.b16 %v394, %v390
  %v527 = vpack.c.b16 %v395, %v391
  %v528 = vpack.c.b16 %v400, %v396
  %v529 = vpack.c.b16 %v401, %v397
  %v530 = vpack.c.b16 %v402, %v398
  %v531 = vpack.c.b16 %v403, %v399
  %v532 = vpack.c.b16 %v408, %v404
  %v533 = vpack.c.b16 %v409, %v405
  %v534 = vpack.c.b16 %v410, %v406
  %v535 = vpack.c.b16 %v411, %v407
  %v536 = vpack.c.b16 %v416, %v412
  %v537 = vpack.c.b16 %v417, %v413
  %v538 = vpack.c.b16 %v418, %v414
  %v539 = vpack.c.b16 %v419, %v415
  %v540 = vpack.c.b16 %v424, %v420
  %v541 = vpack.c.b16 %v425, %v421
  %v542 = vpack.c.b16 %v426, %v422
  %v543 = vpack.c.b16 %v427, %v423
  %v544 = vpack.c.b16 %v432, %v428
  %v545 = vpack.c.b16 %v433, %v429
  %v546 = vpack.c.b16 %v434, %v430
  %v547 = vpack.c.b16 %v435, %v431
  %v548 = vpack.c.b16 %v440, %v436
  %v549 = vpack.c.b16 %v441, %v437
  %v550 = vpack.c.b16 %v442, %v438
  %v551 = vpack.c.b16 %v443, %v439
  %v552 = vpack.c.b16 %v448, %v444
  %v553 = vpack.c.b16 %v449, %v445
  %v554 = vpack.c.b16 %v450, %v446
  %v555 = vpack.c.b16 %v451, %v447
  %v556 = vpack.c.b16 %v456, %v452
  %v557 = vpack.c.b16 %v457, %v453
  %v558 = vpack.c.b16 %v458, %v454
  %v559 = vpack.c.b16 %v459, %v455
  %vm660 = vcmask 130048
  %v662 = vsel %vm660, %v156, 0
  %664 = vmatprep.subr.bf16.mxu0 %v461
  %665 = vmatpush1.bf16.msra.mxu0 %v460
  %666 = vmatprep.subr.bf16.mxu0 %v465
  %667 = vmatpush1.bf16.msra.mxu0 %v464
  %668 = vmatprep.subr.bf16.mxu0 %v469
  %669 = vmatpush1.bf16.msra.mxu0 %v468
  %670 = vmatprep.subr.bf16.mxu0 %v473
  %671 = vmatpush1.bf16.msra.mxu0 %v472
  %672 = vmatprep.subr.bf16.mxu0 %v477
  %673 = vmatpush1.bf16.msra.mxu0 %v476
  %674 = vmatprep.subr.bf16.mxu0 %v481
  %675 = vmatpush1.bf16.msra.mxu0 %v480
  %676 = vmatprep.subr.bf16.mxu0 %v485
  %677 = vmatpush1.bf16.msra.mxu0 %v484
  %678 = vmatprep.subr.bf16.mxu0 %v489
  %679 = vmatpush1.bf16.msra.mxu0 %v488
  %680 = vmatprep.subr.bf16.mxu0 %v493
  %681 = vmatpush1.bf16.msra.mxu0 %v492
  %682 = vmatprep.subr.bf16.mxu0 %v497
  %683 = vmatpush1.bf16.msra.mxu0 %v496
  %684 = vmatprep.subr.bf16.mxu0 %v501
  %685 = vmatpush1.bf16.msra.mxu0 %v500
  %686 = vmatprep.subr.bf16.mxu0 %v505
  %687 = vmatpush1.bf16.msra.mxu0 %v504
  %688 = vmatprep.subr.bf16.mxu0 %v509
  %689 = vmatpush1.bf16.msra.mxu0 %v508
  %690 = vmatprep.subr.bf16.mxu0 %v513
  %691 = vmatpush1.bf16.msra.mxu0 %v512
  %692 = vmatprep.subr.bf16.mxu0 %v517
  %693 = vmatpush1.bf16.msra.mxu0 %v516
  %694 = vmatprep.subr.bf16.mxu0 %v521
  %695 = vmatpush1.bf16.msra.mxu0 %v520
  %696 = vmatprep.mubr.bf16.mxu0 %v154
  %697 = vmatmul.mubr.bf16.gmra.mrb[0].mxu0 %v153
  %v698 = vpop.f32.mrb[0].mxu0
  %v699 = vadd.f32 %v124, %v698
  %v700 = vpop.f32.mrb[0].mxu0
  %v701 = vadd.f32 %v128, %v700
  %v702 = vpop.f32.mrb[0].mxu0
  %v703 = vadd.f32 %v124, %v702
  %v704 = vpop.f32.mrb[0].mxu0
  %v705 = vadd.f32 %v128, %v704
  %706 = vdwg.mxu0
  %707 = vmatprep.subr.bf16.mxu0 %v525
  %708 = vmatpush1.bf16.msra.mxu0 %v524
  %709 = vmatprep.subr.bf16.mxu0 %v529
  %710 = vmatpush1.bf16.msra.mxu0 %v528
  %711 = vmatprep.subr.bf16.mxu0 %v533
  %712 = vmatpush1.bf16.msra.mxu0 %v532
  %713 = vmatprep.subr.bf16.mxu0 %v537
  %714 = vmatpush1.bf16.msra.mxu0 %v536
  %715 = vmatprep.subr.bf16.mxu0 %v541
  %716 = vmatpush1.bf16.msra.mxu0 %v540
  %717 = vmatprep.subr.bf16.mxu0 %v545
  %718 = vmatpush1.bf16.msra.mxu0 %v544
  %719 = vmatprep.subr.bf16.mxu0 %v549
  %720 = vmatpush1.bf16.msra.mxu0 %v548
  %721 = vmatprep.subr.bf16.mxu0 %v553
  %722 = vmatpush1.bf16.msra.mxu0 %v552
  %723 = vmatprep.subr.bf16.mxu0 %v557
  %724 = vmatpush1.bf16.msra.mxu0 %v556
  %725 = vmatprep.subr.bf16.mxu0 0
  %726 = vmatpush1.bf16.msra.mxu0 0
  %727 = vmatprep.subr.bf16.mxu0 0
  %728 = vmatpush1.bf16.msra.mxu0 0
  %729 = vmatprep.subr.bf16.mxu0 0
  %730 = vmatpush1.bf16.msra.mxu0 0
  %731 = vmatprep.subr.bf16.mxu0 0
  %732 = vmatpush1.bf16.msra.mxu0 0
  %733 = vmatprep.subr.bf16.mxu0 0
  %734 = vmatpush1.bf16.msra.mxu0 0
  %735 = vmatprep.subr.bf16.mxu0 0
  %736 = vmatpush1.bf16.msra.mxu0 0
  %737 = vmatprep.subr.bf16.mxu0 0
  %738 = vmatpush1.bf16.msra.mxu0 0
  %739 = vmatprep.mubr.bf16.mxu0 %v662
  %740 = vmatmul.mubr.bf16.gmra.mrb[0].mxu0 %v155
  %v741 = vpop.f32.mrb[0].mxu0
  %v742 = vadd.f32 %v699, %v741
  %v743 = vpop.f32.mrb[0].mxu0
  %v744 = vadd.f32 %v701, %v743
  %v745 = vpop.f32.mrb[0].mxu0
  %v746 = vadd.f32 %v703, %v745
  %v747 = vpop.f32.mrb[0].mxu0
  %v748 = vadd.f32 %v705, %v747
  %749 = vdwg.mxu0
  %750 = vmatprep.subr.bf16.mxu0 %v463
  %751 = vmatpush1.bf16.msra.mxu0 %v462
  %752 = vmatprep.subr.bf16.mxu0 %v467
  %753 = vmatpush1.bf16.msra.mxu0 %v466
  %754 = vmatprep.subr.bf16.mxu0 %v471
  %755 = vmatpush1.bf16.msra.mxu0 %v470
  %756 = vmatprep.subr.bf16.mxu0 %v475
  %757 = vmatpush1.bf16.msra.mxu0 %v474
  %758 = vmatprep.subr.bf16.mxu0 %v479
  %759 = vmatpush1.bf16.msra.mxu0 %v478
  %760 = vmatprep.subr.bf16.mxu0 %v483
  %761 = vmatpush1.bf16.msra.mxu0 %v482
  %762 = vmatprep.subr.bf16.mxu0 %v487
  %763 = vmatpush1.bf16.msra.mxu0 %v486
  %764 = vmatprep.subr.bf16.mxu0 %v491
  %765 = vmatpush1.bf16.msra.mxu0 %v490
  %766 = vmatprep.subr.bf16.mxu0 %v495
  %767 = vmatpush1.bf16.msra.mxu0 %v494
  %768 = vmatprep.subr.bf16.mxu0 %v499
  %769 = vmatpush1.bf16.msra.mxu0 %v498
  %770 = vmatprep.subr.bf16.mxu0 %v503
  %771 = vmatpush1.bf16.msra.mxu0 %v502
  %772 = vmatprep.subr.bf16.mxu0 %v507
  %773 = vmatpush1.bf16.msra.mxu0 %v506
  %774 = vmatprep.subr.bf16.mxu0 %v511
  %775 = vmatpush1.bf16.msra.mxu0 %v510
  %776 = vmatprep.subr.bf16.mxu0 %v515
  %777 = vmatpush1.bf16.msra.mxu0 %v514
  %778 = vmatprep.subr.bf16.mxu0 %v519
  %779 = vmatpush1.bf16.msra.mxu0 %v518
  %780 = vmatprep.subr.bf16.mxu0 %v523
  %781 = vmatpush1.bf16.msra.mxu0 %v522
  %782 = vmatprep.mubr.bf16.mxu0 %v154
  %783 = vmatmul.mubr.bf16.gmra.mrb[0].mxu0 %v153
  %v784 = vpop.f32.mrb[0].mxu0
  %v785 = vadd.f32 %v132, %v784
  %v786 = vpop.f32.mrb[0].mxu0
  %v787 = vadd.f32 %v136, %v786
  %v788 = vpop.f32.mrb[0].mxu0
  %v789 = vadd.f32 %v132, %v788
  %v790 = vpop.f32.mrb[0].mxu0
  %v791 = vadd.f32 %v136, %v790
  %792 = vdwg.mxu0
  %793 = vmatprep.subr.bf16.mxu0 %v527
  %794 = vmatpush1.bf16.msra.mxu0 %v526
  %795 = vmatprep.subr.bf16.mxu0 %v531
  %796 = vmatpush1.bf16.msra.mxu0 %v530
  %797 = vmatprep.subr.bf16.mxu0 %v535
  %798 = vmatpush1.bf16.msra.mxu0 %v534
  %799 = vmatprep.subr.bf16.mxu0 %v539
  %800 = vmatpush1.bf16.msra.mxu0 %v538
  %801 = vmatprep.subr.bf16.mxu0 %v543
  %802 = vmatpush1.bf16.msra.mxu0 %v542
  %803 = vmatprep.subr.bf16.mxu0 %v547
  %804 = vmatpush1.bf16.msra.mxu0 %v546
  %805 = vmatprep.subr.bf16.mxu0 %v551
  %806 = vmatpush1.bf16.msra.mxu0 %v550
  %807 = vmatprep.subr.bf16.mxu0 %v555
  %808 = vmatpush1.bf16.msra.mxu0 %v554
  %809 = vmatprep.subr.bf16.mxu0 %v559
  %810 = vmatpush1.bf16.msra.mxu0 %v558
  %811 = vmatprep.subr.bf16.mxu0 0
  %812 = vmatpush1.bf16.msra.mxu0 0
  %813 = vmatprep.subr.bf16.mxu0 0
  %814 = vmatpush1.bf16.msra.mxu0 0
  %815 = vmatprep.subr.bf16.mxu0 0
  %816 = vmatpush1.bf16.msra.mxu0 0
  %817 = vmatprep.subr.bf16.mxu0 0
  %818 = vmatpush1.bf16.msra.mxu0 0
  %819 = vmatprep.subr.bf16.mxu0 0
  %820 = vmatpush1.bf16.msra.mxu0 0
  %821 = vmatprep.subr.bf16.mxu0 0
  %822 = vmatpush1.bf16.msra.mxu0 0
  %823 = vmatprep.subr.bf16.mxu0 0
  %824 = vmatpush1.bf16.msra.mxu0 0
  %825 = vmatprep.mubr.bf16.mxu0 %v662
  %826 = vmatmul.mubr.bf16.gmra.mrb[0].mxu0 %v155
  %v827 = vpop.f32.mrb[0].mxu0
  %v828 = vadd.f32 %v785, %v827
  %v829 = vpop.f32.mrb[0].mxu0
  %v830 = vadd.f32 %v787, %v829
  %v831 = vpop.f32.mrb[0].mxu0
  %v832 = vadd.f32 %v789, %v831
  %v833 = vpop.f32.mrb[0].mxu0
  %v834 = vadd.f32 %v791, %v833
  %835 = vdwg.mxu0
  %v836 = vmax.f32 %v742, 0.0
  %v837 = vmax.f32 %v744, 0.0
  %v838 = vmax.f32 %v828, 0.0
  %v839 = vmax.f32 %v830, 0.0
  %v840 = vmax.f32 %v746, 0.0
  %v841 = vmax.f32 %v748, 0.0
  %v842 = vmax.f32 %v832, 0.0
  %v843 = vmax.f32 %v834, 0.0
  %v844 = vpack.c.bf16 %v840, %v836
  %v845 = vpack.c.bf16 %v841, %v837
  %v846 = vpack.c.bf16 %v842, %v838
  %v847 = vpack.c.bf16 %v843, %v839
  %v852 = vunpack.c.l.b16 %v844
  %v853 = vunpack.c.l.b16 %v845
  %v854 = vunpack.c.l.b16 %v846
  %v855 = vunpack.c.l.b16 %v847
  %v856 = vunpack.c.h.b16 %v844
  %v857 = vunpack.c.h.b16 %v845
  %v858 = vunpack.c.h.b16 %v846
  %v859 = vunpack.c.h.b16 %v847
  %v860 = vpack.c.b16 %v853, %v852
  %v861 = vpack.c.b16 %v855, %v854
  %v862 = vpack.c.b16 %v857, %v856
  %v863 = vpack.c.b16 %v859, %v858
  %868 = vst [vmem:[%s3] sm:$0xff] %v860
  %869 = vst [vmem:[%s3 + $0x8] sm:$0xff] %v861
  %870 = vst [vmem:[%s3 + $0x10] sm:$0xff] %v862
  %871 = vst [vmem:[%s3 + $0x18] sm:$0xff] %v863
  // Predicated region
  $region14: #{repvggnet_forward.11} parent=0 // pred_check
    _
  $region15: #{repvggnet_forward.11} parent=0 // pred_check_branch
    %873 = sbr.rel (0) target = $region17
  $region16: #{repvggnet_forward.11} parent=0 // pred_region
    _
  $region17: #{repvggnet_forward.11} parent=0 // pred_fallthru
    _
  // Predicated region
  $region18: #{repvggnet_forward.11} parent=0 // pred_check
    _
  $region19: #{repvggnet_forward.11} parent=0 // pred_check_branch
    %875 = sbr.rel (0) target = $region21
  $region20: #{repvggnet_forward.11} parent=0 // pred_region
    _
  $region21: #{repvggnet_forward.11} parent=0 // pred_fallthru
    _

</llo_original>
